<compile_context>
chip_gen: v5e
topology: v5e:2x2
jax: 0.10.0
libtpu: 0.0.40
codegen_flags: <defaults>
</compile_context>

<pallas_src>
import jax
import jax.numpy as jnp
from jax.experimental import pallas as pl
from jax.experimental.pallas import tpu as pltpu

EMBED_DIM = 256      # resnet50(num_classes=256) output width
CONV_CH = 128        # stand-in conv-stem width (lane-dense)
FEATURE_DIM = 32     # AnalogySiamese(feature_dim=32)
IMGS_PER_STEP = 8    # G images embedded per grid step (multiple of 8 sublanes)


# ---------------------------------------------------------------- kernel -----
def _fused_kernel(p_ref, wc_ref, bc_ref, wp_ref, bp_ref,
                  sl_ref, sr_ref, w1a_ref, w1b_ref, b1_ref, w2_ref, b2_ref,
                  o_ref, e_sc):
    i = pl.program_id(0)
    g, p_sz, k = p_ref.shape
    cc = wc_ref.shape[1]

    # -------- embedding stage: G images per grid step --------
    x = p_ref[...].reshape(g * p_sz, k)                                # (G*P, K)
    h = jnp.dot(x, wc_ref[...], preferred_element_type=jnp.float32) + bc_ref[...]
    h = jnp.maximum(h, 0.0)                                            # conv + ReLU
    pooled = jnp.mean(h.reshape(g, p_sz, cc), axis=1)                  # GAP -> (G, Cc)
    e = jnp.dot(pooled, wp_ref[...], preferred_element_type=jnp.float32) + bp_ref[...]
    base = pl.multiple_of(i * g, g)
    e_sc[pl.ds(base, g), :] = e                                        # stays in VMEM

    # -------- Siamese head: runs once, on the last grid step --------
    @pl.when(i == pl.num_programs(0) - 1)
    def _():
        e_all = e_sc[...]                                              # (n_pad, 256)
        # one-hot selection matmuls == gather of (A, C, C, ...) / (B, D1, D2, ...)
        left = jnp.dot(sl_ref[...], e_all, preferred_element_type=jnp.float32)
        right = jnp.dot(sr_ref[...], e_all, preferred_element_type=jnp.float32)
        # concat([left, right]) @ w1  ==  left @ w1[:256] + right @ w1[256:]
        hh = (jnp.dot(left, w1a_ref[...], preferred_element_type=jnp.float32)
              + jnp.dot(right, w1b_ref[...], preferred_element_type=jnp.float32)
              + b1_ref[...])
        hh = jnp.maximum(hh, 0.0)                                      # nn.ReLU(True)
        y = jnp.dot(hh, w2_ref[...], preferred_element_type=jnp.float32) + b2_ref[...]
        # torch.norm(p=2, dim=1) + div  ->  single rsqrt-multiply (no eps, as in ref)
        inv = jax.lax.rsqrt(jnp.sum(y * y, axis=1, keepdims=True))
        o_ref[...] = (y * inv).astype(o_ref.dtype)


# --------------------------------------------------------------- helpers -----
def _im2col_3x3(x_nhwc):
    n, h, w, c = x_nhwc.shape
    xp = jnp.pad(x_nhwc, ((0, 0), (1, 1), (1, 1), (0, 0)))
    cols = [xp[:, i:i + h, j:j + w, :] for i in range(3) for j in range(3)]
    patches = jnp.concatenate(cols, axis=-1).reshape(n, h * w, 9 * c)
    k = patches.shape[-1]
    kp = ((k + 7) // 8) * 8                                  # pad contraction dim (zeros)
    return jnp.pad(patches, ((0, 0), (0, 0), (0, kp - k)))


def _selection_matrices(b, t, n_pad):
    # Row order matches the reference: per batch -> (A,B), then (C,D1), (C,D2), ...
    left_idx, right_idx = [], []
    for bi in range(b):
        left_idx.append(bi * t + 0)
        right_idx.append(bi * t + 1)
        for j in range(t - 3):
            left_idx.append(bi * t + 2)
            right_idx.append(bi * t + 3 + j)
    sel_l = jax.nn.one_hot(jnp.array(left_idx, jnp.int32), n_pad, dtype=jnp.float32)
    sel_r = jax.nn.one_hot(jnp.array(right_idx, jnp.int32), n_pad, dtype=jnp.float32)
    return sel_l, sel_r


# ---------------------------------------------------------------- wrapper ----
def analogy_siamese_forward(x, params, feature_dim=FEATURE_DIM, g=IMGS_PER_STEP):
    # x: (B, total, C, H, W) -- ndim==5 => separate=True branch of the module
    assert x.ndim == 5
    b, t, c, h, w = x.shape
    n = b * t
    imgs = x.reshape(n, c, h, w).transpose(0, 2, 3, 1)        # NCHW -> NHWC
    patches = _im2col_3x3(imgs)                               # (n, P, K)
    _, p_sz, k = patches.shape

    n_pad = ((n + g - 1) // g) * g                            # pad image axis to G
    patches = jnp.pad(patches, ((0, n_pad - n), (0, 0), (0, 0)))

    m = b * (t - 2)                                           # number of pairs
    sel_l, sel_r = _selection_matrices(b, t, n_pad)           # (m, n_pad) one-hot
    w1a = params["w1"][:EMBED_DIM]                            # split for concat-free head
    w1b = params["w1"][EMBED_DIM:]
    d = 2 * EMBED_DIM

    out = pl.pallas_call(
        _fused_kernel,
        out_shape=jax.ShapeDtypeStruct((m, feature_dim), jnp.float32),
        grid=(n_pad // g,),
        in_specs=[
            pl.BlockSpec((g, p_sz, k), lambda i: (i, 0, 0)),            # patches (per step)
            pl.BlockSpec((k, CONV_CH), lambda i: (0, 0)),               # wc (resident)
            pl.BlockSpec((1, CONV_CH), lambda i: (0, 0)),               # bc
            pl.BlockSpec((CONV_CH, EMBED_DIM), lambda i: (0, 0)),       # wp
            pl.BlockSpec((1, EMBED_DIM), lambda i: (0, 0)),             # bp
            pl.BlockSpec((m, n_pad), lambda i: (0, 0)),                 # sel_left
            pl.BlockSpec((m, n_pad), lambda i: (0, 0)),                 # sel_right
            pl.BlockSpec((EMBED_DIM, d), lambda i: (0, 0)),             # w1 top half
            pl.BlockSpec((EMBED_DIM, d), lambda i: (0, 0)),             # w1 bottom half
            pl.BlockSpec((1, d), lambda i: (0, 0)),                     # b1
            pl.BlockSpec((d, feature_dim), lambda i: (0, 0)),           # w2
            pl.BlockSpec((1, feature_dim), lambda i: (0, 0)),           # b2
        ],
        out_specs=pl.BlockSpec((m, feature_dim), lambda i: (0, 0)),
        scratch_shapes=[pltpu.VMEM((n_pad, EMBED_DIM), jnp.float32)],   # embeddings
        compiler_params=pltpu.CompilerParams(dimension_semantics=("arbitrary",)),
    )(patches, params["wc"], params["bc"], params["wp"], params["bp"],
      sel_l, sel_r, w1a, w1b, params["b1"], params["w2"], params["b2"])

    return out.reshape(b, t - 2, feature_dim)                 # separate=True reshape


# -------------------------------------------------------------- reference ----
def reference_forward(x, params, feature_dim=FEATURE_DIM):
    b, t, c, h, w = x.shape
    imgs = x.reshape(b * t, c, h, w).transpose(0, 2, 3, 1)
    patches = _im2col_3x3(imgs)
    hid = jnp.maximum(patches @ params["wc"] + params["bc"], 0.0)
    pooled = jnp.mean(hid, axis=1)
    e = (pooled @ params["wp"] + params["bp"]).reshape(b, t, EMBED_DIM)
    x_a, x_b, x_c, x_d = e[:, 0:1], e[:, 1:2], e[:, 2:3], e[:, 3:]
    x_ab = jnp.concatenate([x_a, x_b], axis=-1)
    x_cd = jnp.concatenate([jnp.tile(x_c, (1, t - 3, 1)), x_d], axis=-1)
    z = jnp.concatenate([x_ab, x_cd], axis=1).reshape(b * (t - 2), 2 * EMBED_DIM)
    hh = jnp.maximum(z @ params["w1"] + params["b1"], 0.0)
    y = hh @ params["w2"] + params["b2"]
    y = y / jnp.sqrt(jnp.sum(y * y, axis=1, keepdims=True))
    return y.reshape(b, t - 2, feature_dim)


def init_params(key, in_ch, feature_dim=FEATURE_DIM):
    k = 9 * in_ch
    kp = ((k + 7) // 8) * 8
    ks = jax.random.split(key, 8)
    s = 0.05
    d = 2 * EMBED_DIM  # combined_feat_dim for method='concat'
    return {
        "wc": jax.random.normal(ks[0], (kp, CONV_CH), jnp.float32) * s,
        "bc": jax.random.normal(ks[1], (1, CONV_CH), jnp.float32) * s,
        "wp": jax.random.normal(ks[2], (CONV_CH, EMBED_DIM), jnp.float32) * s,
        "bp": jax.random.normal(ks[3], (1, EMBED_DIM), jnp.float32) * s,
        "w1": jax.random.normal(ks[4], (d, d), jnp.float32) * s,
        "b1": jax.random.normal(ks[5], (1, d), jnp.float32) * s,
        "w2": jax.random.normal(ks[6], (d, feature_dim), jnp.float32) * s,
        "b2": jax.random.normal(ks[7], (1, feature_dim), jnp.float32) * s,
    }


if __name__ == "__main__":
    key = jax.random.PRNGKey(0)
    kx, kp = jax.random.split(key)
    B, T, C, H, W = 2, 5, 3, 16, 16          # total=5 -> pairs AB, C-D1, C-D2
    x = jax.random.normal(kx, (B, T, C, H, W), jnp.float32)
    params = init_params(kp, C, FEATURE_DIM)

    out = analogy_siamese_forward(x, params, FEATURE_DIM)
    out = jax.block_until_ready(out)

    ref = reference_forward(x, params, FEATURE_DIM)
    assert out.shape == (B, T - 2, FEATURE_DIM), out.shape
    assert jnp.allclose(out, ref, atol=5e-4, rtol=5e-4), float(jnp.max(jnp.abs(out - ref)))
    print("KERNEL_OK")
</pallas_src>

<mosaic_0001>
module attributes {stable_mosaic.version = 11 : i64} {
  func.func @_fused_kernel(%arg0: i32, %arg1: memref<8x256x32xf32, #tpu.memory_space<vmem>>, %arg2: memref<32x128xf32, #tpu.memory_space<vmem>>, %arg3: memref<1x128xf32, #tpu.memory_space<vmem>>, %arg4: memref<128x256xf32, #tpu.memory_space<vmem>>, %arg5: memref<1x256xf32, #tpu.memory_space<vmem>>, %arg6: memref<6x16xf32, #tpu.memory_space<vmem>>, %arg7: memref<6x16xf32, #tpu.memory_space<vmem>>, %arg8: memref<256x512xf32, #tpu.memory_space<vmem>>, %arg9: memref<256x512xf32, #tpu.memory_space<vmem>>, %arg10: memref<1x512xf32, #tpu.memory_space<vmem>>, %arg11: memref<512x32xf32, #tpu.memory_space<vmem>>, %arg12: memref<1x32xf32, #tpu.memory_space<vmem>>, %arg13: memref<6x32xf32, #tpu.memory_space<vmem>>, %arg14: memref<16x256xf32, #tpu.memory_space<vmem>>) attributes {dimension_semantics = [#tpu.dimension_semantics<arbitrary>], iteration_bounds = array<i64: 2>, scalar_prefetch = 0 : i64, scratch_operands = 1 : i64, tpu.core_type = #tpu.core_type<tc>, window_params = [{transform_indices = @transform_0, window_bounds = array<i64: 8, 256, 32>}, {pipeline_mode = #tpu.pipeline_mode<synchronous>, transform_indices = @transform_1, window_bounds = array<i64: 32, 128>}, {pipeline_mode = #tpu.pipeline_mode<synchronous>, transform_indices = @transform_2, window_bounds = array<i64: 1, 128>}, {pipeline_mode = #tpu.pipeline_mode<synchronous>, transform_indices = @transform_3, window_bounds = array<i64: 128, 256>}, {pipeline_mode = #tpu.pipeline_mode<synchronous>, transform_indices = @transform_4, window_bounds = array<i64: 1, 256>}, {pipeline_mode = #tpu.pipeline_mode<synchronous>, transform_indices = @transform_5, window_bounds = array<i64: 6, 16>}, {pipeline_mode = #tpu.pipeline_mode<synchronous>, transform_indices = @transform_6, window_bounds = array<i64: 6, 16>}, {pipeline_mode = #tpu.pipeline_mode<synchronous>, transform_indices = @transform_7, window_bounds = array<i64: 256, 512>}, {pipeline_mode = #tpu.pipeline_mode<synchronous>, transform_indices = @transform_8, window_bounds = array<i64: 256, 512>}, {pipeline_mode = #tpu.pipeline_mode<synchronous>, transform_indices = @transform_9, window_bounds = array<i64: 1, 512>}, {pipeline_mode = #tpu.pipeline_mode<synchronous>, transform_indices = @transform_10, window_bounds = array<i64: 512, 32>}, {pipeline_mode = #tpu.pipeline_mode<synchronous>, transform_indices = @transform_11, window_bounds = array<i64: 1, 32>}, {pipeline_mode = #tpu.pipeline_mode<synchronous>, transform_indices = @transform_12, window_bounds = array<i64: 6, 32>}]} {
    %c0 = arith.constant 0 : index
    %c0_0 = arith.constant 0 : index
    %c0_1 = arith.constant 0 : index
    %0 = vector.load %arg1[%c0, %c0_0, %c0_1] : memref<8x256x32xf32, #tpu.memory_space<vmem>>, vector<8x256x32xf32>
    %1 = vector.shape_cast %0 : vector<8x256x32xf32> to vector<2048x32xf32>
    %c0_2 = arith.constant 0 : index
    %c0_3 = arith.constant 0 : index
    %2 = vector.load %arg2[%c0_2, %c0_3] : memref<32x128xf32, #tpu.memory_space<vmem>>, vector<32x128xf32>
    %cst = arith.constant dense<0.000000e+00> : vector<2048x128xf32>
    %3 = tpu.matmul %1, %2, %cst {dimension_numbers = #tpu.dot_dimension_numbers<[1], [0], [0], [1], [0, 0, 1, 1], [], []>} : vector<2048x32xf32>, vector<32x128xf32>, vector<2048x128xf32> -> vector<2048x128xf32>
    %c0_4 = arith.constant 0 : index
    %c0_5 = arith.constant 0 : index
    %4 = vector.load %arg3[%c0_4, %c0_5] : memref<1x128xf32, #tpu.memory_space<vmem>>, vector<1x128xf32>
    %5 = vector.broadcast %4 : vector<1x128xf32> to vector<2048x128xf32>
    %6 = arith.addf %3, %5 : vector<2048x128xf32>
    %cst_6 = arith.constant 0.000000e+00 : f32
    %7 = vector.broadcast %cst_6 : f32 to vector<2048x128xf32>
    %8 = arith.maximumf %6, %7 : vector<2048x128xf32>
    %9 = vector.shape_cast %8 : vector<2048x128xf32> to vector<8x256x128xf32>
    %cst_7 = arith.constant dense<0.000000e+00> : vector<8x128xf32>
    %10 = vector.multi_reduction <add>, %9, %cst_7 [1] : vector<8x256x128xf32> to vector<8x128xf32>
    %cst_8 = arith.constant 2.560000e+02 : f32
    %11 = vector.broadcast %cst_8 : f32 to vector<8x128xf32>
    %12 = arith.divf %10, %11 : vector<8x128xf32>
    %c0_9 = arith.constant 0 : index
    %c0_10 = arith.constant 0 : index
    %13 = vector.load %arg4[%c0_9, %c0_10] : memref<128x256xf32, #tpu.memory_space<vmem>>, vector<128x256xf32>
    %cst_11 = arith.constant dense<0.000000e+00> : vector<8x256xf32>
    %14 = tpu.matmul %12, %13, %cst_11 {dimension_numbers = #tpu.dot_dimension_numbers<[1], [0], [0], [1], [0, 0, 1, 1], [], []>} : vector<8x128xf32>, vector<128x256xf32>, vector<8x256xf32> -> vector<8x256xf32>
    %c0_12 = arith.constant 0 : index
    %c0_13 = arith.constant 0 : index
    %15 = vector.load %arg5[%c0_12, %c0_13] : memref<1x256xf32, #tpu.memory_space<vmem>>, vector<1x256xf32>
    %16 = vector.broadcast %15 : vector<1x256xf32> to vector<8x256xf32>
    %17 = arith.addf %14, %16 : vector<8x256xf32>
    %c8_i32 = arith.constant 8 : i32
    %18 = arith.muli %arg0, %c8_i32 : i32
    %19 = tpu.assume_multiple %18, 8 : i32
    %20 = arith.index_cast %19 : i32 to index
    %c0_14 = arith.constant 0 : index
    %21 = vector.load %arg14[%20, %c0_14] : memref<16x256xf32, #tpu.memory_space<vmem>>, vector<8x256xf32>
    tpu.vector_store %arg14[%20, %c0_14], %17 {strides = array<i32>} : memref<16x256xf32, #tpu.memory_space<vmem>>, vector<8x256xf32>,
    %c1_i32 = arith.constant 1 : i32
    %22 = arith.cmpi eq, %arg0, %c1_i32 : i32
    %23 = arith.extui %22 : i1 to i32
    %c0_i32 = arith.constant 0 : i32
    %24 = arith.cmpi ne, %23, %c0_i32 : i32
    scf.if %24 {
      %c0_15 = arith.constant 0 : index
      %c0_16 = arith.constant 0 : index
      %25 = vector.load %arg14[%c0_15, %c0_16] : memref<16x256xf32, #tpu.memory_space<vmem>>, vector<16x256xf32>
      %c0_17 = arith.constant 0 : index
      %c0_18 = arith.constant 0 : index
      %26 = vector.load %arg6[%c0_17, %c0_18] : memref<6x16xf32, #tpu.memory_space<vmem>>, vector<6x16xf32>
      %cst_19 = arith.constant dense<0.000000e+00> : vector<6x256xf32>
      %27 = tpu.matmul %26, %25, %cst_19 {dimension_numbers = #tpu.dot_dimension_numbers<[1], [0], [0], [1], [0, 0, 1, 1], [], []>} : vector<6x16xf32>, vector<16x256xf32>, vector<6x256xf32> -> vector<6x256xf32>
      %c0_20 = arith.constant 0 : index
      %c0_21 = arith.constant 0 : index
      %28 = vector.load %arg7[%c0_20, %c0_21] : memref<6x16xf32, #tpu.memory_space<vmem>>, vector<6x16xf32>
      %cst_22 = arith.constant dense<0.000000e+00> : vector<6x256xf32>
      %29 = tpu.matmul %28, %25, %cst_22 {dimension_numbers = #tpu.dot_dimension_numbers<[1], [0], [0], [1], [0, 0, 1, 1], [], []>} : vector<6x16xf32>, vector<16x256xf32>, vector<6x256xf32> -> vector<6x256xf32>
      %c0_23 = arith.constant 0 : index
      %c0_24 = arith.constant 0 : index
      %30 = vector.load %arg8[%c0_23, %c0_24] : memref<256x512xf32, #tpu.memory_space<vmem>>, vector<256x512xf32>
      %cst_25 = arith.constant dense<0.000000e+00> : vector<6x512xf32>
      %31 = tpu.matmul %27, %30, %cst_25 {dimension_numbers = #tpu.dot_dimension_numbers<[1], [0], [0], [1], [0, 0, 1, 1], [], []>} : vector<6x256xf32>, vector<256x512xf32>, vector<6x512xf32> -> vector<6x512xf32>
      %c0_26 = arith.constant 0 : index
      %c0_27 = arith.constant 0 : index
      %32 = vector.load %arg9[%c0_26, %c0_27] : memref<256x512xf32, #tpu.memory_space<vmem>>, vector<256x512xf32>
      %cst_28 = arith.constant dense<0.000000e+00> : vector<6x512xf32>
      %33 = tpu.matmul %29, %32, %cst_28 {dimension_numbers = #tpu.dot_dimension_numbers<[1], [0], [0], [1], [0, 0, 1, 1], [], []>} : vector<6x256xf32>, vector<256x512xf32>, vector<6x512xf32> -> vector<6x512xf32>
      %34 = arith.addf %31, %33 : vector<6x512xf32>
      %c0_29 = arith.constant 0 : index
      %c0_30 = arith.constant 0 : index
      %35 = vector.load %arg10[%c0_29, %c0_30] : memref<1x512xf32, #tpu.memory_space<vmem>>, vector<1x512xf32>
      %36 = vector.broadcast %35 : vector<1x512xf32> to vector<6x512xf32>
      %37 = arith.addf %34, %36 : vector<6x512xf32>
      %cst_31 = arith.constant 0.000000e+00 : f32
      %38 = vector.broadcast %cst_31 : f32 to vector<6x512xf32>
      %39 = arith.maximumf %37, %38 : vector<6x512xf32>
      %c0_32 = arith.constant 0 : index
      %c0_33 = arith.constant 0 : index
      %40 = vector.load %arg11[%c0_32, %c0_33] : memref<512x32xf32, #tpu.memory_space<vmem>>, vector<512x32xf32>
      %cst_34 = arith.constant dense<0.000000e+00> : vector<6x32xf32>
      %41 = tpu.matmul %39, %40, %cst_34 {dimension_numbers = #tpu.dot_dimension_numbers<[1], [0], [0], [1], [0, 0, 1, 1], [], []>} : vector<6x512xf32>, vector<512x32xf32>, vector<6x32xf32> -> vector<6x32xf32>
      %c0_35 = arith.constant 0 : index
      %c0_36 = arith.constant 0 : index
      %42 = vector.load %arg12[%c0_35, %c0_36] : memref<1x32xf32, #tpu.memory_space<vmem>>, vector<1x32xf32>
      %43 = vector.broadcast %42 : vector<1x32xf32> to vector<6x32xf32>
      %44 = arith.addf %41, %43 : vector<6x32xf32>
      %45 = arith.mulf %44, %44 : vector<6x32xf32>
      %cst_37 = arith.constant dense<0.000000e+00> : vector<6xf32>
      %46 = vector.multi_reduction <add>, %45, %cst_37 [1] : vector<6x32xf32> to vector<6xf32>
      %47 = vector.shape_cast %46 : vector<6xf32> to vector<6x1xf32>
      %48 = math.rsqrt %47 : vector<6x1xf32>
      %49 = vector.broadcast %48 : vector<6x1xf32> to vector<6x32xf32>
      %50 = arith.mulf %44, %49 : vector<6x32xf32>
      %c0_38 = arith.constant 0 : index
      %c0_39 = arith.constant 0 : index
      %51 = vector.load %arg13[%c0_38, %c0_39] : memref<6x32xf32, #tpu.memory_space<vmem>>, vector<6x32xf32>
      tpu.vector_store %arg13[%c0_38, %c0_39], %50 {strides = array<i32>} : memref<6x32xf32, #tpu.memory_space<vmem>>, vector<6x32xf32>,
    } else {
    }
    return
  }
  func.func @transform_0(%arg0: i32) -> (i32, i32, i32) {
    %c0_i32 = arith.constant 0 : i32
    %c0_i32_0 = arith.constant 0 : i32
    %c0_i32_1 = arith.constant 0 : i32
    return %arg0, %c0_i32, %c0_i32_0 : i32, i32, i32
  }
  func.func @transform_1(%arg0: i32) -> (i32, i32) {
    %c0_i32 = arith.constant 0 : i32
    %c0_i32_0 = arith.constant 0 : i32
    %c0_i32_1 = arith.constant 0 : i32
    return %c0_i32, %c0_i32_0 : i32, i32
  }
  func.func @transform_2(%arg0: i32) -> (i32, i32) {
    %c0_i32 = arith.constant 0 : i32
    %c0_i32_0 = arith.constant 0 : i32
    %c0_i32_1 = arith.constant 0 : i32
    return %c0_i32, %c0_i32_0 : i32, i32
  }
  func.func @transform_3(%arg0: i32) -> (i32, i32) {
    %c0_i32 = arith.constant 0 : i32
    %c0_i32_0 = arith.constant 0 : i32
    %c0_i32_1 = arith.constant 0 : i32
    return %c0_i32, %c0_i32_0 : i32, i32
  }
  func.func @transform_4(%arg0: i32) -> (i32, i32) {
    %c0_i32 = arith.constant 0 : i32
    %c0_i32_0 = arith.constant 0 : i32
    %c0_i32_1 = arith.constant 0 : i32
    return %c0_i32, %c0_i32_0 : i32, i32
  }
  func.func @transform_5(%arg0: i32) -> (i32, i32) {
    %c0_i32 = arith.constant 0 : i32
    %c0_i32_0 = arith.constant 0 : i32
    %c0_i32_1 = arith.constant 0 : i32
    return %c0_i32, %c0_i32_0 : i32, i32
  }
  func.func @transform_6(%arg0: i32) -> (i32, i32) {
    %c0_i32 = arith.constant 0 : i32
    %c0_i32_0 = arith.constant 0 : i32
    %c0_i32_1 = arith.constant 0 : i32
    return %c0_i32, %c0_i32_0 : i32, i32
  }
  func.func @transform_7(%arg0: i32) -> (i32, i32) {
    %c0_i32 = arith.constant 0 : i32
    %c0_i32_0 = arith.constant 0 : i32
    %c0_i32_1 = arith.constant 0 : i32
    return %c0_i32, %c0_i32_0 : i32, i32
  }
  func.func @transform_8(%arg0: i32) -> (i32, i32) {
    %c0_i32 = arith.constant 0 : i32
    %c0_i32_0 = arith.constant 0 : i32
    %c0_i32_1 = arith.constant 0 : i32
    return %c0_i32, %c0_i32_0 : i32, i32
  }
  func.func @transform_9(%arg0: i32) -> (i32, i32) {
    %c0_i32 = arith.constant 0 : i32
    %c0_i32_0 = arith.constant 0 : i32
    %c0_i32_1 = arith.constant 0 : i32
    return %c0_i32, %c0_i32_0 : i32, i32
  }
  func.func @transform_10(%arg0: i32) -> (i32, i32) {
    %c0_i32 = arith.constant 0 : i32
    %c0_i32_0 = arith.constant 0 : i32
    %c0_i32_1 = arith.constant 0 : i32
    return %c0_i32, %c0_i32_0 : i32, i32
  }
  func.func @transform_11(%arg0: i32) -> (i32, i32) {
    %c0_i32 = arith.constant 0 : i32
    %c0_i32_0 = arith.constant 0 : i32
    %c0_i32_1 = arith.constant 0 : i32
    return %c0_i32, %c0_i32_0 : i32, i32
  }
  func.func @transform_12(%arg0: i32) -> (i32, i32) {
    %c0_i32 = arith.constant 0 : i32
    %c0_i32_0 = arith.constant 0 : i32
    %c0_i32_1 = arith.constant 0 : i32
    return %c0_i32, %c0_i32_0 : i32, i32
  }
}

</mosaic_0001>

<llo_original>
// kernel: tpu_custom_call.1
$region0: #{tpu_custom_call.1}
  #allocation0 [shape = 'u32[]', space=smem, size = 0x4, offset = 0x4, fixed_abs, tag = 'smem constant byte address 0x4 - core index']
  #allocation1 [shape = 'u32[72,128]{1,0:T(1,128)}', space=vmem, size = 0x9000, scoped, tag = 'internal scratch']
  #allocation2 [shape = 'f32[16,256]{1,0:T(8,128)}', space=vmem, size = 0x4000, scoped, tag = 'scratch operand']
  %s0 = inlined_call_operand.vmem [shape: f32[16,256,32], index: 0, kind: input, shape index: {}]
  %s1 = inlined_call_operand.vmem [shape: f32[32,128], index: 1, kind: input, shape index: {}]
  %s2 = inlined_call_operand.vmem [shape: f32[1,128], index: 2, kind: input, shape index: {}]
  %s3 = inlined_call_operand.vmem [shape: f32[128,256], index: 3, kind: input, shape index: {}]
  %s4 = inlined_call_operand.vmem [shape: f32[1,256], index: 4, kind: input, shape index: {}]
  %s5 = inlined_call_operand.vmem [shape: f32[6,16], index: 5, kind: input, shape index: {}]
  %s6 = inlined_call_operand.vmem [shape: f32[6,16], index: 6, kind: input, shape index: {}]
  %s7 = inlined_call_operand.vmem [shape: f32[256,512], index: 7, kind: input, shape index: {}]
  %s8 = inlined_call_operand.vmem [shape: f32[256,512], index: 8, kind: input, shape index: {}]
  %s9 = inlined_call_operand.vmem [shape: f32[1,512], index: 9, kind: input, shape index: {}]
  %s10 = inlined_call_operand.vmem [shape: f32[512,32], index: 10, kind: input, shape index: {}]
  %s11 = inlined_call_operand.vmem [shape: f32[1,32], index: 11, kind: input, shape index: {}]
  %s12 = inlined_call_operand.hbm [shape: f32[6,32], index: 12, kind: output, shape index: {}]
  %s13 = sld [smem:[#allocation0]]
  $region85: #{tpu_custom_call.1} parent=0
    _
  %s15 = ssub.s32 1, %s13
  %s16 = scalar_select 0, %s15, %s13
  $region1: #{tpu_custom_call.1} parent=0
    #allocation3 [shape = 'u8[4096]{0}', space=vmem, size = 0x1000, scoped, tag = 'output window, operand 0, single buffered']
    #allocation4 [shape = 's32[2]{0}', space=sflag, size = 0x8, scoped, tag = 'scoped memory for tpu_custom_call.1']
    %17 = vsyncpa [#allocation4], 0
    loop: start=0, step=1, limit=4
    $region2: #{tpu_custom_call.1} parent=1 // loop_pre_header
      _
    $region3: #{tpu_custom_call.1} parent=1 // loop_header
      %s19 = sphi 0, %s23
      %p20 = scmp.ge.s32.totalorder %s19, 4
      %s29 = sphi 0, %s31
      %s32 = sphi 0, %s29
      %s33 = sphi 0, %s32
      %s49 = sphi 0, %s33
      %s53 = sphi 0, %s53
      %s55 = sphi 0, %s53
      %s56 = sphi 0, %s55
      %s70 = sphi 0, %s56
      %s74 = sphi 0, %s74
      %s76 = sphi 0, %s74
      %s77 = sphi 0, %s76
      %s91 = sphi 0, %s77
      %s95 = sphi 0, %s95
      %s97 = sphi 0, %s95
      %s98 = sphi 0, %s97
      %s112 = sphi 0, %s98
      %s116 = sphi 0, %s116
      %s118 = sphi 0, %s116
      %s119 = sphi 0, %s118
      %s133 = sphi 0, %s119
      %s137 = sphi 0, %s137
      %s139 = sphi 0, %s137
      %s140 = sphi 0, %s139
      %s154 = sphi 0, %s140
      %s158 = sphi 0, %s158
      %s160 = sphi 0, %s158
      %s161 = sphi 0, %s160
      %s175 = sphi 0, %s161
      %s179 = sphi 0, %s179
      %s181 = sphi 0, %s179
      %s182 = sphi 0, %s181
      %s196 = sphi 0, %s182
      %s200 = sphi 0, %s200
      %s202 = sphi 0, %s200
      %s203 = sphi 0, %s202
      %s217 = sphi 0, %s203
      %s221 = sphi 0, %s221
      %s223 = sphi 0, %s221
      %s224 = sphi 0, %s223
      %s238 = sphi 0, %s224
      %s242 = sphi 0, %s242
      %s244 = sphi 0, %s242
      %s245 = sphi 0, %s244
      %s259 = sphi 0, %s245
      %s263 = sphi 0, %s263
      %s265 = sphi 0, %s263
      %s266 = sphi 0, %s265
      %s280 = sphi 0, %s266
      %s284 = sphi 0, %s284
      %s286 = sphi 0, %s284
      %s287 = sphi 0, %s286
      %s301 = sphi 0, %s287
    $region4: #{tpu_custom_call.1} parent=1 // loop_header_branch
      %22 = sbr.rel (%p20) target = $region8
    $region5: #{tpu_custom_call.1} parent=1 // loop_body
      %s24 = ssub.s32 %s19, 1
      %s25 = ssub.s32 %s19, 2
      %s26 = sadd.s32 %s19, 1
      %s27 = ssub.s32 %s19, %s26
      %p28 = scmp.eq.s32.totalorder %s27, 0
      %s30 = sadd.s32 %s29, 1
      %s31 = scalar_select %p28, %s29, %s30
      %p34 = pneg %p28
      %p35 = scmp.eq.s32.totalorder %s19, 1
      %p36 = por %p34, %p35
      %p37 = scmp.ne.s32.totalorder %s29, %s32
      %p38 = scmp.eq.s32.totalorder %s19, 0
      %p39 = por %p37, %p38
      %p40 = scmp.ne.s32.totalorder %s29, %s32
      %p41 = scmp.eq.s32.totalorder %s24, 1
      %p42 = por %p40, %p41
      %p43 = scmp.ne.s32.totalorder %s32, %s33
      %p44 = scmp.eq.s32.totalorder %s24, 0
      %p45 = por %p43, %p44
      %p46 = scmp.ne.s32.totalorder %s32, %s33
      %p47 = scmp.eq.s32.totalorder %s25, 1
      %p48 = por %p46, %p47
      %p50 = scmp.ne.s32.totalorder %s33, %s49
      %p51 = scmp.eq.s32.totalorder %s25, 0
      %p52 = por %p50, %p51
      %s54 = sadd.s32 %s53, 1
      %p57 = scmp.eq.s32.totalorder %s19, 1
      %p58 = scmp.ne.s32.totalorder %s53, %s55
      %p59 = scmp.eq.s32.totalorder %s19, 0
      %p60 = por %p58, %p59
      %p61 = scmp.ne.s32.totalorder %s53, %s55
      %p62 = scmp.eq.s32.totalorder %s24, 1
      %p63 = por %p61, %p62
      %p64 = scmp.ne.s32.totalorder %s55, %s56
      %p65 = scmp.eq.s32.totalorder %s24, 0
      %p66 = por %p64, %p65
      %p67 = scmp.ne.s32.totalorder %s55, %s56
      %p68 = scmp.eq.s32.totalorder %s25, 1
      %p69 = por %p67, %p68
      %p71 = scmp.ne.s32.totalorder %s56, %s70
      %p72 = scmp.eq.s32.totalorder %s25, 0
      %p73 = por %p71, %p72
      %s75 = sadd.s32 %s74, 1
      %p78 = scmp.eq.s32.totalorder %s19, 1
      %p79 = scmp.ne.s32.totalorder %s74, %s76
      %p80 = scmp.eq.s32.totalorder %s19, 0
      %p81 = por %p79, %p80
      %p82 = scmp.ne.s32.totalorder %s74, %s76
      %p83 = scmp.eq.s32.totalorder %s24, 1
      %p84 = por %p82, %p83
      %p85 = scmp.ne.s32.totalorder %s76, %s77
      %p86 = scmp.eq.s32.totalorder %s24, 0
      %p87 = por %p85, %p86
      %p88 = scmp.ne.s32.totalorder %s76, %s77
      %p89 = scmp.eq.s32.totalorder %s25, 1
      %p90 = por %p88, %p89
      %p92 = scmp.ne.s32.totalorder %s77, %s91
      %p93 = scmp.eq.s32.totalorder %s25, 0
      %p94 = por %p92, %p93
      %s96 = sadd.s32 %s95, 1
      %p99 = scmp.eq.s32.totalorder %s19, 1
      %p100 = scmp.ne.s32.totalorder %s95, %s97
      %p101 = scmp.eq.s32.totalorder %s19, 0
      %p102 = por %p100, %p101
      %p103 = scmp.ne.s32.totalorder %s95, %s97
      %p104 = scmp.eq.s32.totalorder %s24, 1
      %p105 = por %p103, %p104
      %p106 = scmp.ne.s32.totalorder %s97, %s98
      %p107 = scmp.eq.s32.totalorder %s24, 0
      %p108 = por %p106, %p107
      %p109 = scmp.ne.s32.totalorder %s97, %s98
      %p110 = scmp.eq.s32.totalorder %s25, 1
      %p111 = por %p109, %p110
      %p113 = scmp.ne.s32.totalorder %s98, %s112
      %p114 = scmp.eq.s32.totalorder %s25, 0
      %p115 = por %p113, %p114
      %s117 = sadd.s32 %s116, 1
      %p120 = scmp.eq.s32.totalorder %s19, 1
      %p121 = scmp.ne.s32.totalorder %s116, %s118
      %p122 = scmp.eq.s32.totalorder %s19, 0
      %p123 = por %p121, %p122
      %p124 = scmp.ne.s32.totalorder %s116, %s118
      %p125 = scmp.eq.s32.totalorder %s24, 1
      %p126 = por %p124, %p125
      %p127 = scmp.ne.s32.totalorder %s118, %s119
      %p128 = scmp.eq.s32.totalorder %s24, 0
      %p129 = por %p127, %p128
      %p130 = scmp.ne.s32.totalorder %s118, %s119
      %p131 = scmp.eq.s32.totalorder %s25, 1
      %p132 = por %p130, %p131
      %p134 = scmp.ne.s32.totalorder %s119, %s133
      %p135 = scmp.eq.s32.totalorder %s25, 0
      %p136 = por %p134, %p135
      %s138 = sadd.s32 %s137, 1
      %p141 = scmp.eq.s32.totalorder %s19, 1
      %p142 = scmp.ne.s32.totalorder %s137, %s139
      %p143 = scmp.eq.s32.totalorder %s19, 0
      %p144 = por %p142, %p143
      %p145 = scmp.ne.s32.totalorder %s137, %s139
      %p146 = scmp.eq.s32.totalorder %s24, 1
      %p147 = por %p145, %p146
      %p148 = scmp.ne.s32.totalorder %s139, %s140
      %p149 = scmp.eq.s32.totalorder %s24, 0
      %p150 = por %p148, %p149
      %p151 = scmp.ne.s32.totalorder %s139, %s140
      %p152 = scmp.eq.s32.totalorder %s25, 1
      %p153 = por %p151, %p152
      %p155 = scmp.ne.s32.totalorder %s140, %s154
      %p156 = scmp.eq.s32.totalorder %s25, 0
      %p157 = por %p155, %p156
      %s159 = sadd.s32 %s158, 1
      %p162 = scmp.eq.s32.totalorder %s19, 1
      %p163 = scmp.ne.s32.totalorder %s158, %s160
      %p164 = scmp.eq.s32.totalorder %s19, 0
      %p165 = por %p163, %p164
      %p166 = scmp.ne.s32.totalorder %s158, %s160
      %p167 = scmp.eq.s32.totalorder %s24, 1
      %p168 = por %p166, %p167
      %p169 = scmp.ne.s32.totalorder %s160, %s161
      %p170 = scmp.eq.s32.totalorder %s24, 0
      %p171 = por %p169, %p170
      %p172 = scmp.ne.s32.totalorder %s160, %s161
      %p173 = scmp.eq.s32.totalorder %s25, 1
      %p174 = por %p172, %p173
      %p176 = scmp.ne.s32.totalorder %s161, %s175
      %p177 = scmp.eq.s32.totalorder %s25, 0
      %p178 = por %p176, %p177
      %s180 = sadd.s32 %s179, 1
      %p183 = scmp.eq.s32.totalorder %s19, 1
      %p184 = scmp.ne.s32.totalorder %s179, %s181
      %p185 = scmp.eq.s32.totalorder %s19, 0
      %p186 = por %p184, %p185
      %p187 = scmp.ne.s32.totalorder %s179, %s181
      %p188 = scmp.eq.s32.totalorder %s24, 1
      %p189 = por %p187, %p188
      %p190 = scmp.ne.s32.totalorder %s181, %s182
      %p191 = scmp.eq.s32.totalorder %s24, 0
      %p192 = por %p190, %p191
      %p193 = scmp.ne.s32.totalorder %s181, %s182
      %p194 = scmp.eq.s32.totalorder %s25, 1
      %p195 = por %p193, %p194
      %p197 = scmp.ne.s32.totalorder %s182, %s196
      %p198 = scmp.eq.s32.totalorder %s25, 0
      %p199 = por %p197, %p198
      %s201 = sadd.s32 %s200, 1
      %p204 = scmp.eq.s32.totalorder %s19, 1
      %p205 = scmp.ne.s32.totalorder %s200, %s202
      %p206 = scmp.eq.s32.totalorder %s19, 0
      %p207 = por %p205, %p206
      %p208 = scmp.ne.s32.totalorder %s200, %s202
      %p209 = scmp.eq.s32.totalorder %s24, 1
      %p210 = por %p208, %p209
      %p211 = scmp.ne.s32.totalorder %s202, %s203
      %p212 = scmp.eq.s32.totalorder %s24, 0
      %p213 = por %p211, %p212
      %p214 = scmp.ne.s32.totalorder %s202, %s203
      %p215 = scmp.eq.s32.totalorder %s25, 1
      %p216 = por %p214, %p215
      %p218 = scmp.ne.s32.totalorder %s203, %s217
      %p219 = scmp.eq.s32.totalorder %s25, 0
      %p220 = por %p218, %p219
      %s222 = sadd.s32 %s221, 1
      %p225 = scmp.eq.s32.totalorder %s19, 1
      %p226 = scmp.ne.s32.totalorder %s221, %s223
      %p227 = scmp.eq.s32.totalorder %s19, 0
      %p228 = por %p226, %p227
      %p229 = scmp.ne.s32.totalorder %s221, %s223
      %p230 = scmp.eq.s32.totalorder %s24, 1
      %p231 = por %p229, %p230
      %p232 = scmp.ne.s32.totalorder %s223, %s224
      %p233 = scmp.eq.s32.totalorder %s24, 0
      %p234 = por %p232, %p233
      %p235 = scmp.ne.s32.totalorder %s223, %s224
      %p236 = scmp.eq.s32.totalorder %s25, 1
      %p237 = por %p235, %p236
      %p239 = scmp.ne.s32.totalorder %s224, %s238
      %p240 = scmp.eq.s32.totalorder %s25, 0
      %p241 = por %p239, %p240
      %s243 = sadd.s32 %s242, 1
      %p246 = scmp.eq.s32.totalorder %s19, 1
      %p247 = scmp.ne.s32.totalorder %s242, %s244
      %p248 = scmp.eq.s32.totalorder %s19, 0
      %p249 = por %p247, %p248
      %p250 = scmp.ne.s32.totalorder %s242, %s244
      %p251 = scmp.eq.s32.totalorder %s24, 1
      %p252 = por %p250, %p251
      %p253 = scmp.ne.s32.totalorder %s244, %s245
      %p254 = scmp.eq.s32.totalorder %s24, 0
      %p255 = por %p253, %p254
      %p256 = scmp.ne.s32.totalorder %s244, %s245
      %p257 = scmp.eq.s32.totalorder %s25, 1
      %p258 = por %p256, %p257
      %p260 = scmp.ne.s32.totalorder %s245, %s259
      %p261 = scmp.eq.s32.totalorder %s25, 0
      %p262 = por %p260, %p261
      %s264 = sadd.s32 %s263, 1
      %p267 = scmp.eq.s32.totalorder %s19, 1
      %p268 = scmp.ne.s32.totalorder %s263, %s265
      %p269 = scmp.eq.s32.totalorder %s19, 0
      %p270 = por %p268, %p269
      %p271 = scmp.ne.s32.totalorder %s263, %s265
      %p272 = scmp.eq.s32.totalorder %s24, 1
      %p273 = por %p271, %p272
      %p274 = scmp.ne.s32.totalorder %s265, %s266
      %p275 = scmp.eq.s32.totalorder %s24, 0
      %p276 = por %p274, %p275
      %p277 = scmp.ne.s32.totalorder %s265, %s266
      %p278 = scmp.eq.s32.totalorder %s25, 1
      %p279 = por %p277, %p278
      %p281 = scmp.ne.s32.totalorder %s266, %s280
      %p282 = scmp.eq.s32.totalorder %s25, 0
      %p283 = por %p281, %p282
      %s285 = sadd.s32 %s284, 1
      %p288 = scmp.eq.s32.totalorder %s19, 1
      %p289 = scmp.ne.s32.totalorder %s284, %s286
      %p290 = scmp.eq.s32.totalorder %s19, 0
      %p291 = por %p289, %p290
      %p292 = scmp.ne.s32.totalorder %s284, %s286
      %p293 = scmp.eq.s32.totalorder %s24, 1
      %p294 = por %p292, %p293
      %p295 = scmp.ne.s32.totalorder %s286, %s287
      %p296 = scmp.eq.s32.totalorder %s24, 0
      %p297 = por %p295, %p296
      %p298 = scmp.ne.s32.totalorder %s286, %s287
      %p299 = scmp.eq.s32.totalorder %s25, 1
      %p300 = por %p298, %p299
      %p302 = scmp.ne.s32.totalorder %s287, %s301
      %p303 = scmp.eq.s32.totalorder %s25, 0
      %p304 = por %p302, %p303
      %p305 = scmp.le.s32.totalorder 1, %s19
      %p306 = scmp.lt.s32.totalorder %s19, 3
      %p307 = pnand %p305, %p306
      %p308 = pneg %p307
      // Predicated region
      $region9: #{tpu_custom_call.1} parent=5 // pred_check
        _
      $region10: #{tpu_custom_call.1} parent=5 // pred_check_branch
        %310 = sbr.rel (%p307) target = $region12
      $region11: #{tpu_custom_call.1} parent=5 // pred_region
        %s311 = ssub.s32 %s19, 1
        // Predicated region
        $region13: #{tpu_custom_call.1} parent=11 // pred_check
          %p312 = pneg %p66
        $region14: #{tpu_custom_call.1} parent=11 // pred_check_branch
          %314 = sbr.rel (%p312) target = $region16
        $region15: #{tpu_custom_call.1} parent=11 // pred_region
          _
        $region16: #{tpu_custom_call.1} parent=11 // pred_fallthru
          _
        // Predicated region
        $region17: #{tpu_custom_call.1} parent=11 // pred_check
          %p315 = pneg %p87
        $region18: #{tpu_custom_call.1} parent=11 // pred_check_branch
          %317 = sbr.rel (%p315) target = $region20
        $region19: #{tpu_custom_call.1} parent=11 // pred_region
          _
        $region20: #{tpu_custom_call.1} parent=11 // pred_fallthru
          _
        // Predicated region
        $region21: #{tpu_custom_call.1} parent=11 // pred_check
          %p318 = pneg %p108
        $region22: #{tpu_custom_call.1} parent=11 // pred_check_branch
          %320 = sbr.rel (%p318) target = $region24
        $region23: #{tpu_custom_call.1} parent=11 // pred_region
          _
        $region24: #{tpu_custom_call.1} parent=11 // pred_fallthru
          _
        // Predicated region
        $region25: #{tpu_custom_call.1} parent=11 // pred_check
          %p321 = pneg %p129
        $region26: #{tpu_custom_call.1} parent=11 // pred_check_branch
          %323 = sbr.rel (%p321) target = $region28
        $region27: #{tpu_custom_call.1} parent=11 // pred_region
          _
        $region28: #{tpu_custom_call.1} parent=11 // pred_fallthru
          _
        // Predicated region
        $region29: #{tpu_custom_call.1} parent=11 // pred_check
          %p324 = pneg %p150
        $region30: #{tpu_custom_call.1} parent=11 // pred_check_branch
          %326 = sbr.rel (%p324) target = $region32
        $region31: #{tpu_custom_call.1} parent=11 // pred_region
          _
        $region32: #{tpu_custom_call.1} parent=11 // pred_fallthru
          _
        // Predicated region
        $region33: #{tpu_custom_call.1} parent=11 // pred_check
          %p327 = pneg %p171
        $region34: #{tpu_custom_call.1} parent=11 // pred_check_branch
          %329 = sbr.rel (%p327) target = $region36
        $region35: #{tpu_custom_call.1} parent=11 // pred_region
          _
        $region36: #{tpu_custom_call.1} parent=11 // pred_fallthru
          _
        // Predicated region
        $region37: #{tpu_custom_call.1} parent=11 // pred_check
          %p330 = pneg %p192
        $region38: #{tpu_custom_call.1} parent=11 // pred_check_branch
          %332 = sbr.rel (%p330) target = $region40
        $region39: #{tpu_custom_call.1} parent=11 // pred_region
          _
        $region40: #{tpu_custom_call.1} parent=11 // pred_fallthru
          _
        // Predicated region
        $region41: #{tpu_custom_call.1} parent=11 // pred_check
          %p333 = pneg %p213
        $region42: #{tpu_custom_call.1} parent=11 // pred_check_branch
          %335 = sbr.rel (%p333) target = $region44
        $region43: #{tpu_custom_call.1} parent=11 // pred_region
          _
        $region44: #{tpu_custom_call.1} parent=11 // pred_fallthru
          _
        // Predicated region
        $region45: #{tpu_custom_call.1} parent=11 // pred_check
          %p336 = pneg %p234
        $region46: #{tpu_custom_call.1} parent=11 // pred_check_branch
          %338 = sbr.rel (%p336) target = $region48
        $region47: #{tpu_custom_call.1} parent=11 // pred_region
          _
        $region48: #{tpu_custom_call.1} parent=11 // pred_fallthru
          _
        // Predicated region
        $region49: #{tpu_custom_call.1} parent=11 // pred_check
          %p339 = pneg %p255
        $region50: #{tpu_custom_call.1} parent=11 // pred_check_branch
          %341 = sbr.rel (%p339) target = $region52
        $region51: #{tpu_custom_call.1} parent=11 // pred_region
          _
        $region52: #{tpu_custom_call.1} parent=11 // pred_fallthru
          _
        // Predicated region
        $region53: #{tpu_custom_call.1} parent=11 // pred_check
          %p342 = pneg %p276
        $region54: #{tpu_custom_call.1} parent=11 // pred_check_branch
          %344 = sbr.rel (%p342) target = $region56
        $region55: #{tpu_custom_call.1} parent=11 // pred_region
          _
        $region56: #{tpu_custom_call.1} parent=11 // pred_fallthru
          _
      $region12: #{tpu_custom_call.1} parent=5 // pred_fallthru
        _
      %p345 = scmp.lt.s32.totalorder %s19, 2
      // Predicated region
      $region57: #{tpu_custom_call.1} parent=5 // pred_check
        %p346 = pneg %p345
      $region58: #{tpu_custom_call.1} parent=5 // pred_check_branch
        %348 = sbr.rel (%p346) target = $region60
      $region59: #{tpu_custom_call.1} parent=5 // pred_region
        // Predicated region
        $region61: #{tpu_custom_call.1} parent=59 // pred_check
          %p349 = pneg %p39
        $region62: #{tpu_custom_call.1} parent=59 // pred_check_branch
          %351 = sbr.rel (%p349) target = $region64
        $region63: #{tpu_custom_call.1} parent=59 // pred_region
          %s352 = smul.u32 8, %s19
          %p353 = scmp.lt.s32.totalorder %s352, 15
          %s354 = scalar_select %p353, %s352, 15
          %s355 = smul.addr %s354, 32
          %s356 = smul.addr %s355, 8
          %s357 = scalar_lea.vmem %s0, %s356
          %s358 = smul.u32 8, %s19
        $region64: #{tpu_custom_call.1} parent=59 // pred_fallthru
          _
      $region60: #{tpu_custom_call.1} parent=5 // pred_fallthru
        _
      %p359 = scmp.le.s32.totalorder 1, %s19
      %p360 = scmp.lt.s32.totalorder %s19, 3
      %p361 = pnand %p359, %p360
      %p362 = pneg %p361
      // Predicated region
      $region65: #{tpu_custom_call.1} parent=5 // pred_check
        _
      $region66: #{tpu_custom_call.1} parent=5 // pred_check_branch
        %364 = sbr.rel (%p361) target = $region68
      $region67: #{tpu_custom_call.1} parent=5 // pred_region
        %s365 = ssub.s32 %s19, 1
        %s366 = smul.u32 8, %s24
        %p367 = scmp.lt.s32.totalorder %s366, 15
        %s368 = scalar_select %p367, %s366, 15
        %s369 = smul.addr %s368, 32
        %s370 = smul.addr %s369, 8
        %s371 = scalar_lea.vmem %s0, %s370
        %p372 = pneg %p45
        %p373 = pneg %p42
        %p374 = pneg %p66
        %p375 = pneg %p63
        %p376 = pneg %p87
        %p377 = pneg %p84
        %p378 = pneg %p108
        %p379 = pneg %p105
        %p380 = pneg %p129
        %p381 = pneg %p126
        %p382 = pneg %p150
        %p383 = pneg %p147
        %p384 = pneg %p171
        %p385 = pneg %p168
        %p386 = pneg %p192
        %p387 = pneg %p189
        %p388 = pneg %p213
        %p389 = pneg %p210
        %p390 = pneg %p234
        %p391 = pneg %p231
        %p392 = pneg %p255
        %p393 = pneg %p252
        %p394 = pneg %p276
        %p395 = pneg %p273
        %p396 = pneg %p297
        %p397 = pneg %p294
        %s398 = smul.u32 8, %s24
        %p399 = scmp.lt.s32.totalorder %s398, 15
        %s400 = scalar_select %p399, %s398, 15
        %s401 = smul.addr %s400, 32
        %s402 = smul.addr %s401, 8
        %s403 = scalar_lea.vmem %s0, %s402
        %s404 = smul.u32 8, %s24
        %v405 = vld [vmem:[%s403] sm:$0xff]
        %v406 = vld [vmem:[%s403 + $0x8] sm:$0xff]
        %v407 = vld [vmem:[%s403 + $0x10] sm:$0xff]
        %v408 = vld [vmem:[%s403 + $0x18] sm:$0xff]
        %v409 = vld [vmem:[%s403 + $0x20] sm:$0xff]
        %v410 = vld [vmem:[%s403 + $0x28] sm:$0xff]
        %v411 = vld [vmem:[%s403 + $0x30] sm:$0xff]
        %v412 = vld [vmem:[%s403 + $0x38] sm:$0xff]
        %v413 = vld [vmem:[%s403 + $0x40] sm:$0xff]
        %v414 = vld [vmem:[%s403 + $0x48] sm:$0xff]
        %v415 = vld [vmem:[%s403 + $0x50] sm:$0xff]
        %v416 = vld [vmem:[%s403 + $0x58] sm:$0xff]
        %v417 = vld [vmem:[%s403 + $0x60] sm:$0xff]
        %v418 = vld [vmem:[%s403 + $0x68] sm:$0xff]
        %v419 = vld [vmem:[%s403 + $0x70] sm:$0xff]
        %v420 = vld [vmem:[%s403 + $0x78] sm:$0xff]
        %v421 = vld [vmem:[%s403 + $0x80] sm:$0xff]
        %v422 = vld [vmem:[%s403 + $0x88] sm:$0xff]
        %v423 = vld [vmem:[%s403 + $0x90] sm:$0xff]
        %v424 = vld [vmem:[%s403 + $0x98] sm:$0xff]
        %v425 = vld [vmem:[%s403 + $0xa0] sm:$0xff]
        %v426 = vld [vmem:[%s403 + $0xa8] sm:$0xff]
        %v427 = vld [vmem:[%s403 + $0xb0] sm:$0xff]
        %v428 = vld [vmem:[%s403 + $0xb8] sm:$0xff]
        %v429 = vld [vmem:[%s403 + $0xc0] sm:$0xff]
        %v430 = vld [vmem:[%s403 + $0xc8] sm:$0xff]
        %v431 = vld [vmem:[%s403 + $0xd0] sm:$0xff]
        %v432 = vld [vmem:[%s403 + $0xd8] sm:$0xff]
        %v433 = vld [vmem:[%s403 + $0xe0] sm:$0xff]
        %v434 = vld [vmem:[%s403 + $0xe8] sm:$0xff]
        %v435 = vld [vmem:[%s403 + $0xf0] sm:$0xff]
        %v436 = vld [vmem:[%s403 + $0xf8] sm:$0xff]
        %v437 = vld [vmem:[%s403 + $0x100] sm:$0xff]
        %v438 = vld [vmem:[%s403 + $0x108] sm:$0xff]
        %v439 = vld [vmem:[%s403 + $0x110] sm:$0xff]
        %v440 = vld [vmem:[%s403 + $0x118] sm:$0xff]
        %v441 = vld [vmem:[%s403 + $0x120] sm:$0xff]
        %v442 = vld [vmem:[%s403 + $0x128] sm:$0xff]
        %v443 = vld [vmem:[%s403 + $0x130] sm:$0xff]
        %v444 = vld [vmem:[%s403 + $0x138] sm:$0xff]
        %v445 = vld [vmem:[%s403 + $0x140] sm:$0xff]
        %v446 = vld [vmem:[%s403 + $0x148] sm:$0xff]
        %v447 = vld [vmem:[%s403 + $0x150] sm:$0xff]
        %v448 = vld [vmem:[%s403 + $0x158] sm:$0xff]
        %v449 = vld [vmem:[%s403 + $0x160] sm:$0xff]
        %v450 = vld [vmem:[%s403 + $0x168] sm:$0xff]
        %v451 = vld [vmem:[%s403 + $0x170] sm:$0xff]
        %v452 = vld [vmem:[%s403 + $0x178] sm:$0xff]
        %v453 = vld [vmem:[%s403 + $0x180] sm:$0xff]
        %v454 = vld [vmem:[%s403 + $0x188] sm:$0xff]
        %v455 = vld [vmem:[%s403 + $0x190] sm:$0xff]
        %v456 = vld [vmem:[%s403 + $0x198] sm:$0xff]
        %v457 = vld [vmem:[%s403 + $0x1a0] sm:$0xff]
        %v458 = vld [vmem:[%s403 + $0x1a8] sm:$0xff]
        %v459 = vld [vmem:[%s403 + $0x1b0] sm:$0xff]
        %v460 = vld [vmem:[%s403 + $0x1b8] sm:$0xff]
        %v461 = vld [vmem:[%s403 + $0x1c0] sm:$0xff]
        %v462 = vld [vmem:[%s403 + $0x1c8] sm:$0xff]
        %v463 = vld [vmem:[%s403 + $0x1d0] sm:$0xff]
        %v464 = vld [vmem:[%s403 + $0x1d8] sm:$0xff]
        %v465 = vld [vmem:[%s403 + $0x1e0] sm:$0xff]
        %v466 = vld [vmem:[%s403 + $0x1e8] sm:$0xff]
        %v467 = vld [vmem:[%s403 + $0x1f0] sm:$0xff]
        %v468 = vld [vmem:[%s403 + $0x1f8] sm:$0xff]
        %v469 = vld [vmem:[%s403 + $0x200] sm:$0xff]
        %v470 = vld [vmem:[%s403 + $0x208] sm:$0xff]
        %v471 = vld [vmem:[%s403 + $0x210] sm:$0xff]
        %v472 = vld [vmem:[%s403 + $0x218] sm:$0xff]
        %v473 = vld [vmem:[%s403 + $0x220] sm:$0xff]
        %v474 = vld [vmem:[%s403 + $0x228] sm:$0xff]
        %v475 = vld [vmem:[%s403 + $0x230] sm:$0xff]
        %v476 = vld [vmem:[%s403 + $0x238] sm:$0xff]
        %v477 = vld [vmem:[%s403 + $0x240] sm:$0xff]
        %v478 = vld [vmem:[%s403 + $0x248] sm:$0xff]
        %v479 = vld [vmem:[%s403 + $0x250] sm:$0xff]
        %v480 = vld [vmem:[%s403 + $0x258] sm:$0xff]
        %v481 = vld [vmem:[%s403 + $0x260] sm:$0xff]
        %v482 = vld [vmem:[%s403 + $0x268] sm:$0xff]
        %v483 = vld [vmem:[%s403 + $0x270] sm:$0xff]
        %v484 = vld [vmem:[%s403 + $0x278] sm:$0xff]
        %v485 = vld [vmem:[%s403 + $0x280] sm:$0xff]
        %v486 = vld [vmem:[%s403 + $0x288] sm:$0xff]
        %v487 = vld [vmem:[%s403 + $0x290] sm:$0xff]
        %v488 = vld [vmem:[%s403 + $0x298] sm:$0xff]
        %v489 = vld [vmem:[%s403 + $0x2a0] sm:$0xff]
        %v490 = vld [vmem:[%s403 + $0x2a8] sm:$0xff]
        %v491 = vld [vmem:[%s403 + $0x2b0] sm:$0xff]
        %v492 = vld [vmem:[%s403 + $0x2b8] sm:$0xff]
        %v493 = vld [vmem:[%s403 + $0x2c0] sm:$0xff]
        %v494 = vld [vmem:[%s403 + $0x2c8] sm:$0xff]
        %v495 = vld [vmem:[%s403 + $0x2d0] sm:$0xff]
        %v496 = vld [vmem:[%s403 + $0x2d8] sm:$0xff]
        %v497 = vld [vmem:[%s403 + $0x2e0] sm:$0xff]
        %v498 = vld [vmem:[%s403 + $0x2e8] sm:$0xff]
        %v499 = vld [vmem:[%s403 + $0x2f0] sm:$0xff]
        %v500 = vld [vmem:[%s403 + $0x2f8] sm:$0xff]
        %v501 = vld [vmem:[%s403 + $0x300] sm:$0xff]
        %v502 = vld [vmem:[%s403 + $0x308] sm:$0xff]
        %v503 = vld [vmem:[%s403 + $0x310] sm:$0xff]
        %v504 = vld [vmem:[%s403 + $0x318] sm:$0xff]
        %v505 = vld [vmem:[%s403 + $0x320] sm:$0xff]
        %v506 = vld [vmem:[%s403 + $0x328] sm:$0xff]
        %v507 = vld [vmem:[%s403 + $0x330] sm:$0xff]
        %v508 = vld [vmem:[%s403 + $0x338] sm:$0xff]
        %v509 = vld [vmem:[%s403 + $0x340] sm:$0xff]
        %v510 = vld [vmem:[%s403 + $0x348] sm:$0xff]
        %v511 = vld [vmem:[%s403 + $0x350] sm:$0xff]
        %v512 = vld [vmem:[%s403 + $0x358] sm:$0xff]
        %v513 = vld [vmem:[%s403 + $0x360] sm:$0xff]
        %v514 = vld [vmem:[%s403 + $0x368] sm:$0xff]
        %v515 = vld [vmem:[%s403 + $0x370] sm:$0xff]
        %v516 = vld [vmem:[%s403 + $0x378] sm:$0xff]
        %v517 = vld [vmem:[%s403 + $0x380] sm:$0xff]
        %v518 = vld [vmem:[%s403 + $0x388] sm:$0xff]
        %v519 = vld [vmem:[%s403 + $0x390] sm:$0xff]
        %v520 = vld [vmem:[%s403 + $0x398] sm:$0xff]
        %v521 = vld [vmem:[%s403 + $0x3a0] sm:$0xff]
        %v522 = vld [vmem:[%s403 + $0x3a8] sm:$0xff]
        %v523 = vld [vmem:[%s403 + $0x3b0] sm:$0xff]
        %v524 = vld [vmem:[%s403 + $0x3b8] sm:$0xff]
        %v525 = vld [vmem:[%s403 + $0x3c0] sm:$0xff]
        %v526 = vld [vmem:[%s403 + $0x3c8] sm:$0xff]
        %v527 = vld [vmem:[%s403 + $0x3d0] sm:$0xff]
        %v528 = vld [vmem:[%s403 + $0x3d8] sm:$0xff]
        %v529 = vld [vmem:[%s403 + $0x3e0] sm:$0xff]
        %v530 = vld [vmem:[%s403 + $0x3e8] sm:$0xff]
        %v531 = vld [vmem:[%s403 + $0x3f0] sm:$0xff]
        %v532 = vld [vmem:[%s403 + $0x3f8] sm:$0xff]
        %v533 = vld [vmem:[%s403 + $0x400] sm:$0xff]
        %v534 = vld [vmem:[%s403 + $0x408] sm:$0xff]
        %v535 = vld [vmem:[%s403 + $0x410] sm:$0xff]
        %v536 = vld [vmem:[%s403 + $0x418] sm:$0xff]
        %v537 = vld [vmem:[%s403 + $0x420] sm:$0xff]
        %v538 = vld [vmem:[%s403 + $0x428] sm:$0xff]
        %v539 = vld [vmem:[%s403 + $0x430] sm:$0xff]
        %v540 = vld [vmem:[%s403 + $0x438] sm:$0xff]
        %v541 = vld [vmem:[%s403 + $0x440] sm:$0xff]
        %v542 = vld [vmem:[%s403 + $0x448] sm:$0xff]
        %v543 = vld [vmem:[%s403 + $0x450] sm:$0xff]
        %v544 = vld [vmem:[%s403 + $0x458] sm:$0xff]
        %v545 = vld [vmem:[%s403 + $0x460] sm:$0xff]
        %v546 = vld [vmem:[%s403 + $0x468] sm:$0xff]
        %v547 = vld [vmem:[%s403 + $0x470] sm:$0xff]
        %v548 = vld [vmem:[%s403 + $0x478] sm:$0xff]
        %v549 = vld [vmem:[%s403 + $0x480] sm:$0xff]
        %v550 = vld [vmem:[%s403 + $0x488] sm:$0xff]
        %v551 = vld [vmem:[%s403 + $0x490] sm:$0xff]
        %v552 = vld [vmem:[%s403 + $0x498] sm:$0xff]
        %v553 = vld [vmem:[%s403 + $0x4a0] sm:$0xff]
        %v554 = vld [vmem:[%s403 + $0x4a8] sm:$0xff]
        %v555 = vld [vmem:[%s403 + $0x4b0] sm:$0xff]
        %v556 = vld [vmem:[%s403 + $0x4b8] sm:$0xff]
        %v557 = vld [vmem:[%s403 + $0x4c0] sm:$0xff]
        %v558 = vld [vmem:[%s403 + $0x4c8] sm:$0xff]
        %v559 = vld [vmem:[%s403 + $0x4d0] sm:$0xff]
        %v560 = vld [vmem:[%s403 + $0x4d8] sm:$0xff]
        %v561 = vld [vmem:[%s403 + $0x4e0] sm:$0xff]
        %v562 = vld [vmem:[%s403 + $0x4e8] sm:$0xff]
        %v563 = vld [vmem:[%s403 + $0x4f0] sm:$0xff]
        %v564 = vld [vmem:[%s403 + $0x4f8] sm:$0xff]
        %v565 = vld [vmem:[%s403 + $0x500] sm:$0xff]
        %v566 = vld [vmem:[%s403 + $0x508] sm:$0xff]
        %v567 = vld [vmem:[%s403 + $0x510] sm:$0xff]
        %v568 = vld [vmem:[%s403 + $0x518] sm:$0xff]
        %v569 = vld [vmem:[%s403 + $0x520] sm:$0xff]
        %v570 = vld [vmem:[%s403 + $0x528] sm:$0xff]
        %v571 = vld [vmem:[%s403 + $0x530] sm:$0xff]
        %v572 = vld [vmem:[%s403 + $0x538] sm:$0xff]
        %v573 = vld [vmem:[%s403 + $0x540] sm:$0xff]
        %v574 = vld [vmem:[%s403 + $0x548] sm:$0xff]
        %v575 = vld [vmem:[%s403 + $0x550] sm:$0xff]
        %v576 = vld [vmem:[%s403 + $0x558] sm:$0xff]
        %v577 = vld [vmem:[%s403 + $0x560] sm:$0xff]
        %v578 = vld [vmem:[%s403 + $0x568] sm:$0xff]
        %v579 = vld [vmem:[%s403 + $0x570] sm:$0xff]
        %v580 = vld [vmem:[%s403 + $0x578] sm:$0xff]
        %v581 = vld [vmem:[%s403 + $0x580] sm:$0xff]
        %v582 = vld [vmem:[%s403 + $0x588] sm:$0xff]
        %v583 = vld [vmem:[%s403 + $0x590] sm:$0xff]
        %v584 = vld [vmem:[%s403 + $0x598] sm:$0xff]
        %v585 = vld [vmem:[%s403 + $0x5a0] sm:$0xff]
        %v586 = vld [vmem:[%s403 + $0x5a8] sm:$0xff]
        %v587 = vld [vmem:[%s403 + $0x5b0] sm:$0xff]
        %v588 = vld [vmem:[%s403 + $0x5b8] sm:$0xff]
        %v589 = vld [vmem:[%s403 + $0x5c0] sm:$0xff]
        %v590 = vld [vmem:[%s403 + $0x5c8] sm:$0xff]
        %v591 = vld [vmem:[%s403 + $0x5d0] sm:$0xff]
        %v592 = vld [vmem:[%s403 + $0x5d8] sm:$0xff]
        %v593 = vld [vmem:[%s403 + $0x5e0] sm:$0xff]
        %v594 = vld [vmem:[%s403 + $0x5e8] sm:$0xff]
        %v595 = vld [vmem:[%s403 + $0x5f0] sm:$0xff]
        %v596 = vld [vmem:[%s403 + $0x5f8] sm:$0xff]
        %v597 = vld [vmem:[%s403 + $0x600] sm:$0xff]
        %v598 = vld [vmem:[%s403 + $0x608] sm:$0xff]
        %v599 = vld [vmem:[%s403 + $0x610] sm:$0xff]
        %v600 = vld [vmem:[%s403 + $0x618] sm:$0xff]
        %v601 = vld [vmem:[%s403 + $0x620] sm:$0xff]
        %v602 = vld [vmem:[%s403 + $0x628] sm:$0xff]
        %v603 = vld [vmem:[%s403 + $0x630] sm:$0xff]
        %v604 = vld [vmem:[%s403 + $0x638] sm:$0xff]
        %v605 = vld [vmem:[%s403 + $0x640] sm:$0xff]
        %v606 = vld [vmem:[%s403 + $0x648] sm:$0xff]
        %v607 = vld [vmem:[%s403 + $0x650] sm:$0xff]
        %v608 = vld [vmem:[%s403 + $0x658] sm:$0xff]
        %v609 = vld [vmem:[%s403 + $0x660] sm:$0xff]
        %v610 = vld [vmem:[%s403 + $0x668] sm:$0xff]
        %v611 = vld [vmem:[%s403 + $0x670] sm:$0xff]
        %v612 = vld [vmem:[%s403 + $0x678] sm:$0xff]
        %v613 = vld [vmem:[%s403 + $0x680] sm:$0xff]
        %v614 = vld [vmem:[%s403 + $0x688] sm:$0xff]
        %v615 = vld [vmem:[%s403 + $0x690] sm:$0xff]
        %v616 = vld [vmem:[%s403 + $0x698] sm:$0xff]
        %v617 = vld [vmem:[%s403 + $0x6a0] sm:$0xff]
        %v618 = vld [vmem:[%s403 + $0x6a8] sm:$0xff]
        %v619 = vld [vmem:[%s403 + $0x6b0] sm:$0xff]
        %v620 = vld [vmem:[%s403 + $0x6b8] sm:$0xff]
        %v621 = vld [vmem:[%s403 + $0x6c0] sm:$0xff]
        %v622 = vld [vmem:[%s403 + $0x6c8] sm:$0xff]
        %v623 = vld [vmem:[%s403 + $0x6d0] sm:$0xff]
        %v624 = vld [vmem:[%s403 + $0x6d8] sm:$0xff]
        %v625 = vld [vmem:[%s403 + $0x6e0] sm:$0xff]
        %v626 = vld [vmem:[%s403 + $0x6e8] sm:$0xff]
        %v627 = vld [vmem:[%s403 + $0x6f0] sm:$0xff]
        %v628 = vld [vmem:[%s403 + $0x6f8] sm:$0xff]
        %v629 = vld [vmem:[%s403 + $0x700] sm:$0xff]
        %v630 = vld [vmem:[%s403 + $0x708] sm:$0xff]
        %v631 = vld [vmem:[%s403 + $0x710] sm:$0xff]
        %v632 = vld [vmem:[%s403 + $0x718] sm:$0xff]
        %v633 = vld [vmem:[%s403 + $0x720] sm:$0xff]
        %v634 = vld [vmem:[%s403 + $0x728] sm:$0xff]
        %v635 = vld [vmem:[%s403 + $0x730] sm:$0xff]
        %v636 = vld [vmem:[%s403 + $0x738] sm:$0xff]
        %v637 = vld [vmem:[%s403 + $0x740] sm:$0xff]
        %v638 = vld [vmem:[%s403 + $0x748] sm:$0xff]
        %v639 = vld [vmem:[%s403 + $0x750] sm:$0xff]
        %v640 = vld [vmem:[%s403 + $0x758] sm:$0xff]
        %v641 = vld [vmem:[%s403 + $0x760] sm:$0xff]
        %v642 = vld [vmem:[%s403 + $0x768] sm:$0xff]
        %v643 = vld [vmem:[%s403 + $0x770] sm:$0xff]
        %v644 = vld [vmem:[%s403 + $0x778] sm:$0xff]
        %v645 = vld [vmem:[%s403 + $0x780] sm:$0xff]
        %v646 = vld [vmem:[%s403 + $0x788] sm:$0xff]
        %v647 = vld [vmem:[%s403 + $0x790] sm:$0xff]
        %v648 = vld [vmem:[%s403 + $0x798] sm:$0xff]
        %v649 = vld [vmem:[%s403 + $0x7a0] sm:$0xff]
        %v650 = vld [vmem:[%s403 + $0x7a8] sm:$0xff]
        %v651 = vld [vmem:[%s403 + $0x7b0] sm:$0xff]
        %v652 = vld [vmem:[%s403 + $0x7b8] sm:$0xff]
        %v653 = vld [vmem:[%s403 + $0x7c0] sm:$0xff]
        %v654 = vld [vmem:[%s403 + $0x7c8] sm:$0xff]
        %v655 = vld [vmem:[%s403 + $0x7d0] sm:$0xff]
        %v656 = vld [vmem:[%s403 + $0x7d8] sm:$0xff]
        %v657 = vld [vmem:[%s403 + $0x7e0] sm:$0xff]
        %v658 = vld [vmem:[%s403 + $0x7e8] sm:$0xff]
        %v659 = vld [vmem:[%s403 + $0x7f0] sm:$0xff]
        %v660 = vld [vmem:[%s403 + $0x7f8] sm:$0xff]
        %v661 = vld [vmem:[%s1] sm:$0xff]
        %v662 = vld [vmem:[%s1 + $0x8] sm:$0xff]
        %v663 = vld [vmem:[%s1 + $0x10] sm:$0xff]
        %v664 = vld [vmem:[%s1 + $0x18] sm:$0xff]
        %v665 = vld [vmem:[%s2] sm:$0x1]
        %v667 = vperm.slane %v665, 0
        %vm669 = vcmask 261120
        %v671 = vsel %vm669, %v405, 0
        %v674 = vsel %vm669, %v406, 0
        %v677 = vsel %vm669, %v407, 0
        %v680 = vsel %vm669, %v408, 0
        %v683 = vsel %vm669, %v409, 0
        %v686 = vsel %vm669, %v410, 0
        %v689 = vsel %vm669, %v411, 0
        %v692 = vsel %vm669, %v412, 0
        %v695 = vsel %vm669, %v413, 0
        %v698 = vsel %vm669, %v414, 0
        %v701 = vsel %vm669, %v415, 0
        %v704 = vsel %vm669, %v416, 0
        %v707 = vsel %vm669, %v417, 0
        %v710 = vsel %vm669, %v418, 0
        %v713 = vsel %vm669, %v419, 0
        %v716 = vsel %vm669, %v420, 0
        %v719 = vsel %vm669, %v421, 0
        %v722 = vsel %vm669, %v422, 0
        %v725 = vsel %vm669, %v423, 0
        %v728 = vsel %vm669, %v424, 0
        %v731 = vsel %vm669, %v425, 0
        %v734 = vsel %vm669, %v426, 0
        %v737 = vsel %vm669, %v427, 0
        %v740 = vsel %vm669, %v428, 0
        %v743 = vsel %vm669, %v429, 0
        %v746 = vsel %vm669, %v430, 0
        %v749 = vsel %vm669, %v431, 0
        %v752 = vsel %vm669, %v432, 0
        %v755 = vsel %vm669, %v433, 0
        %v758 = vsel %vm669, %v434, 0
        %v761 = vsel %vm669, %v435, 0
        %v764 = vsel %vm669, %v436, 0
        %v767 = vsel %vm669, %v437, 0
        %v770 = vsel %vm669, %v438, 0
        %v773 = vsel %vm669, %v439, 0
        %v776 = vsel %vm669, %v440, 0
        %v779 = vsel %vm669, %v441, 0
        %v782 = vsel %vm669, %v442, 0
        %v785 = vsel %vm669, %v443, 0
        %v788 = vsel %vm669, %v444, 0
        %v791 = vsel %vm669, %v445, 0
        %v794 = vsel %vm669, %v446, 0
        %v797 = vsel %vm669, %v447, 0
        %v800 = vsel %vm669, %v448, 0
        %v803 = vsel %vm669, %v449, 0
        %v806 = vsel %vm669, %v450, 0
        %v809 = vsel %vm669, %v451, 0
        %v812 = vsel %vm669, %v452, 0
        %v815 = vsel %vm669, %v453, 0
        %v818 = vsel %vm669, %v454, 0
        %v821 = vsel %vm669, %v455, 0
        %v824 = vsel %vm669, %v456, 0
        %v827 = vsel %vm669, %v457, 0
        %v830 = vsel %vm669, %v458, 0
        %v833 = vsel %vm669, %v459, 0
        %v836 = vsel %vm669, %v460, 0
        %v839 = vsel %vm669, %v461, 0
        %v842 = vsel %vm669, %v462, 0
        %v845 = vsel %vm669, %v463, 0
        %v848 = vsel %vm669, %v464, 0
        %v851 = vsel %vm669, %v465, 0
        %v854 = vsel %vm669, %v466, 0
        %v857 = vsel %vm669, %v467, 0
        %v860 = vsel %vm669, %v468, 0
        %v863 = vsel %vm669, %v469, 0
        %v866 = vsel %vm669, %v470, 0
        %v869 = vsel %vm669, %v471, 0
        %v872 = vsel %vm669, %v472, 0
        %v875 = vsel %vm669, %v473, 0
        %v878 = vsel %vm669, %v474, 0
        %v881 = vsel %vm669, %v475, 0
        %v884 = vsel %vm669, %v476, 0
        %v887 = vsel %vm669, %v477, 0
        %v890 = vsel %vm669, %v478, 0
        %v893 = vsel %vm669, %v479, 0
        %v896 = vsel %vm669, %v480, 0
        %v899 = vsel %vm669, %v481, 0
        %v902 = vsel %vm669, %v482, 0
        %v905 = vsel %vm669, %v483, 0
        %v908 = vsel %vm669, %v484, 0
        %v911 = vsel %vm669, %v485, 0
        %v914 = vsel %vm669, %v486, 0
        %v917 = vsel %vm669, %v487, 0
        %v920 = vsel %vm669, %v488, 0
        %v923 = vsel %vm669, %v489, 0
        %v926 = vsel %vm669, %v490, 0
        %v929 = vsel %vm669, %v491, 0
        %v932 = vsel %vm669, %v492, 0
        %v935 = vsel %vm669, %v493, 0
        %v938 = vsel %vm669, %v494, 0
        %v941 = vsel %vm669, %v495, 0
        %v944 = vsel %vm669, %v496, 0
        %v947 = vsel %vm669, %v497, 0
        %v950 = vsel %vm669, %v498, 0
        %v953 = vsel %vm669, %v499, 0
        %v956 = vsel %vm669, %v500, 0
        %v959 = vsel %vm669, %v501, 0
        %v962 = vsel %vm669, %v502, 0
        %v965 = vsel %vm669, %v503, 0
        %v968 = vsel %vm669, %v504, 0
        %v971 = vsel %vm669, %v505, 0
        %v974 = vsel %vm669, %v506, 0
        %v977 = vsel %vm669, %v507, 0
        %v980 = vsel %vm669, %v508, 0
        %v983 = vsel %vm669, %v509, 0
        %v986 = vsel %vm669, %v510, 0
        %v989 = vsel %vm669, %v511, 0
        %v992 = vsel %vm669, %v512, 0
        %v995 = vsel %vm669, %v513, 0
        %v998 = vsel %vm669, %v514, 0
        %v1001 = vsel %vm669, %v515, 0
        %v1004 = vsel %vm669, %v516, 0
        %v1007 = vsel %vm669, %v517, 0
        %v1010 = vsel %vm669, %v518, 0
        %v1013 = vsel %vm669, %v519, 0
        %v1016 = vsel %vm669, %v520, 0
        %v1019 = vsel %vm669, %v521, 0
        %v1022 = vsel %vm669, %v522, 0
        %v1025 = vsel %vm669, %v523, 0
        %v1028 = vsel %vm669, %v524, 0
        %v1031 = vsel %vm669, %v525, 0
        %v1034 = vsel %vm669, %v526, 0
        %v1037 = vsel %vm669, %v527, 0
        %v1040 = vsel %vm669, %v528, 0
        %v1043 = vsel %vm669, %v529, 0
        %v1046 = vsel %vm669, %v530, 0
        %v1049 = vsel %vm669, %v531, 0
        %v1052 = vsel %vm669, %v532, 0
        %v1055 = vsel %vm669, %v533, 0
        %v1058 = vsel %vm669, %v534, 0
        %v1061 = vsel %vm669, %v535, 0
        %v1064 = vsel %vm669, %v536, 0
        %v1067 = vsel %vm669, %v537, 0
        %v1070 = vsel %vm669, %v538, 0
        %v1073 = vsel %vm669, %v539, 0
        %v1076 = vsel %vm669, %v540, 0
        %v1079 = vsel %vm669, %v541, 0
        %v1082 = vsel %vm669, %v542, 0
        %v1085 = vsel %vm669, %v543, 0
        %v1088 = vsel %vm669, %v544, 0
        %v1091 = vsel %vm669, %v545, 0
        %v1094 = vsel %vm669, %v546, 0
        %v1097 = vsel %vm669, %v547, 0
        %v1100 = vsel %vm669, %v548, 0
        %v1103 = vsel %vm669, %v549, 0
        %v1106 = vsel %vm669, %v550, 0
        %v1109 = vsel %vm669, %v551, 0
        %v1112 = vsel %vm669, %v552, 0
        %v1115 = vsel %vm669, %v553, 0
        %v1118 = vsel %vm669, %v554, 0
        %v1121 = vsel %vm669, %v555, 0
        %v1124 = vsel %vm669, %v556, 0
        %v1127 = vsel %vm669, %v557, 0
        %v1130 = vsel %vm669, %v558, 0
        %v1133 = vsel %vm669, %v559, 0
        %v1136 = vsel %vm669, %v560, 0
        %v1139 = vsel %vm669, %v561, 0
        %v1142 = vsel %vm669, %v562, 0
        %v1145 = vsel %vm669, %v563, 0
        %v1148 = vsel %vm669, %v564, 0
        %v1151 = vsel %vm669, %v565, 0
        %v1154 = vsel %vm669, %v566, 0
        %v1157 = vsel %vm669, %v567, 0
        %v1160 = vsel %vm669, %v568, 0
        %v1163 = vsel %vm669, %v569, 0
        %v1166 = vsel %vm669, %v570, 0
        %v1169 = vsel %vm669, %v571, 0
        %v1172 = vsel %vm669, %v572, 0
        %v1175 = vsel %vm669, %v573, 0
        %v1178 = vsel %vm669, %v574, 0
        %v1181 = vsel %vm669, %v575, 0
        %v1184 = vsel %vm669, %v576, 0
        %v1187 = vsel %vm669, %v577, 0
        %v1190 = vsel %vm669, %v578, 0
        %v1193 = vsel %vm669, %v579, 0
        %v1196 = vsel %vm669, %v580, 0
        %v1199 = vsel %vm669, %v581, 0
        %v1202 = vsel %vm669, %v582, 0
        %v1205 = vsel %vm669, %v583, 0
        %v1208 = vsel %vm669, %v584, 0
        %v1211 = vsel %vm669, %v585, 0
        %v1214 = vsel %vm669, %v586, 0
        %v1217 = vsel %vm669, %v587, 0
        %v1220 = vsel %vm669, %v588, 0
        %v1223 = vsel %vm669, %v589, 0
        %v1226 = vsel %vm669, %v590, 0
        %v1229 = vsel %vm669, %v591, 0
        %v1232 = vsel %vm669, %v592, 0
        %v1235 = vsel %vm669, %v593, 0
        %v1238 = vsel %vm669, %v594, 0
        %v1241 = vsel %vm669, %v595, 0
        %v1244 = vsel %vm669, %v596, 0
        %v1247 = vsel %vm669, %v597, 0
        %v1250 = vsel %vm669, %v598, 0
        %v1253 = vsel %vm669, %v599, 0
        %v1256 = vsel %vm669, %v600, 0
        %v1259 = vsel %vm669, %v601, 0
        %v1262 = vsel %vm669, %v602, 0
        %v1265 = vsel %vm669, %v603, 0
        %v1268 = vsel %vm669, %v604, 0
        %v1271 = vsel %vm669, %v605, 0
        %v1274 = vsel %vm669, %v606, 0
        %v1277 = vsel %vm669, %v607, 0
        %v1280 = vsel %vm669, %v608, 0
        %v1283 = vsel %vm669, %v609, 0
        %v1286 = vsel %vm669, %v610, 0
        %v1289 = vsel %vm669, %v611, 0
        %v1292 = vsel %vm669, %v612, 0
        %v1295 = vsel %vm669, %v613, 0
        %v1298 = vsel %vm669, %v614, 0
        %v1301 = vsel %vm669, %v615, 0
        %v1304 = vsel %vm669, %v616, 0
        %v1307 = vsel %vm669, %v617, 0
        %v1310 = vsel %vm669, %v618, 0
        %v1313 = vsel %vm669, %v619, 0
        %v1316 = vsel %vm669, %v620, 0
        %v1319 = vsel %vm669, %v621, 0
        %v1322 = vsel %vm669, %v622, 0
        %v1325 = vsel %vm669, %v623, 0
        %v1328 = vsel %vm669, %v624, 0
        %v1331 = vsel %vm669, %v625, 0
        %v1334 = vsel %vm669, %v626, 0
        %v1337 = vsel %vm669, %v627, 0
        %v1340 = vsel %vm669, %v628, 0
        %v1343 = vsel %vm669, %v629, 0
        %v1346 = vsel %vm669, %v630, 0
        %v1349 = vsel %vm669, %v631, 0
        %v1352 = vsel %vm669, %v632, 0
        %v1355 = vsel %vm669, %v633, 0
        %v1358 = vsel %vm669, %v634, 0
        %v1361 = vsel %vm669, %v635, 0
        %v1364 = vsel %vm669, %v636, 0
        %v1367 = vsel %vm669, %v637, 0
        %v1370 = vsel %vm669, %v638, 0
        %v1373 = vsel %vm669, %v639, 0
        %v1376 = vsel %vm669, %v640, 0
        %v1379 = vsel %vm669, %v641, 0
        %v1382 = vsel %vm669, %v642, 0
        %v1385 = vsel %vm669, %v643, 0
        %v1388 = vsel %vm669, %v644, 0
        %v1391 = vsel %vm669, %v645, 0
        %v1394 = vsel %vm669, %v646, 0
        %v1397 = vsel %vm669, %v647, 0
        %v1400 = vsel %vm669, %v648, 0
        %v1403 = vsel %vm669, %v649, 0
        %v1406 = vsel %vm669, %v650, 0
        %v1409 = vsel %vm669, %v651, 0
        %v1412 = vsel %vm669, %v652, 0
        %v1415 = vsel %vm669, %v653, 0
        %v1418 = vsel %vm669, %v654, 0
        %v1421 = vsel %vm669, %v655, 0
        %v1424 = vsel %vm669, %v656, 0
        %v1427 = vsel %vm669, %v657, 0
        %v1430 = vsel %vm669, %v658, 0
        %v1433 = vsel %vm669, %v659, 0
        %v1436 = vsel %vm669, %v660, 0
        %1438 = vmatpush.msra.mxu0 0.0
        %1439 = vmatpush.msra.mxu0 0.0
        %1440 = vmatpush.msra.mxu0 0.0
        %1441 = vmatpush.msra.mxu0 0.0
        %1442 = vmatpush.msra.mxu0 0.0
        %1443 = vmatpush.msra.mxu0 0.0
        %1444 = vmatpush.msra.mxu0 0.0
        %1445 = vmatpush.msra.mxu0 0.0
        %1446 = vmatpush.msra.mxu0 0.0
        %1447 = vmatpush.msra.mxu0 0.0
        %1448 = vmatpush.msra.mxu0 0.0
        %1449 = vmatpush.msra.mxu0 0.0
        %1450 = vmatpush.msra.mxu0 %v664
        %1451 = vmatpush.msra.mxu0 %v663
        %1452 = vmatpush.msra.mxu0 %v662
        %1453 = vmatpush.msra.mxu0 %v661
        %1454 = vmatmul.f32.gmra.mxu0 %v671
        %v1455 = vpop.f32.mrf.mxu0
        %v1456 = vadd.f32 %v667, %v1455
        %1457 = vmatmul.f32.gmra.mxu0 %v674
        %v1458 = vpop.f32.mrf.mxu0
        %v1459 = vadd.f32 %v667, %v1458
        %1460 = vmatmul.f32.gmra.mxu0 %v677
        %v1461 = vpop.f32.mrf.mxu0
        %v1462 = vadd.f32 %v667, %v1461
        %1463 = vmatmul.f32.gmra.mxu0 %v680
        %v1464 = vpop.f32.mrf.mxu0
        %v1465 = vadd.f32 %v667, %v1464
        %1466 = vmatmul.f32.gmra.mxu0 %v683
        %v1467 = vpop.f32.mrf.mxu0
        %v1468 = vadd.f32 %v667, %v1467
        %1469 = vmatmul.f32.gmra.mxu0 %v686
        %v1470 = vpop.f32.mrf.mxu0
        %v1471 = vadd.f32 %v667, %v1470
        %1472 = vmatmul.f32.gmra.mxu0 %v689
        %v1473 = vpop.f32.mrf.mxu0
        %v1474 = vadd.f32 %v667, %v1473
        %1475 = vmatmul.f32.gmra.mxu0 %v692
        %v1476 = vpop.f32.mrf.mxu0
        %v1477 = vadd.f32 %v667, %v1476
        %1478 = vmatmul.f32.gmra.mxu0 %v695
        %v1479 = vpop.f32.mrf.mxu0
        %v1480 = vadd.f32 %v667, %v1479
        %1481 = vmatmul.f32.gmra.mxu0 %v698
        %v1482 = vpop.f32.mrf.mxu0
        %v1483 = vadd.f32 %v667, %v1482
        %1484 = vmatmul.f32.gmra.mxu0 %v701
        %v1485 = vpop.f32.mrf.mxu0
        %v1486 = vadd.f32 %v667, %v1485
        %1487 = vmatmul.f32.gmra.mxu0 %v704
        %v1488 = vpop.f32.mrf.mxu0
        %v1489 = vadd.f32 %v667, %v1488
        %1490 = vmatmul.f32.gmra.mxu0 %v707
        %v1491 = vpop.f32.mrf.mxu0
        %v1492 = vadd.f32 %v667, %v1491
        %1493 = vmatmul.f32.gmra.mxu0 %v710
        %v1494 = vpop.f32.mrf.mxu0
        %v1495 = vadd.f32 %v667, %v1494
        %1496 = vmatmul.f32.gmra.mxu0 %v713
        %v1497 = vpop.f32.mrf.mxu0
        %v1498 = vadd.f32 %v667, %v1497
        %1499 = vmatmul.f32.gmra.mxu0 %v716
        %v1500 = vpop.f32.mrf.mxu0
        %v1501 = vadd.f32 %v667, %v1500
        %1502 = vmatmul.f32.gmra.mxu0 %v719
        %v1503 = vpop.f32.mrf.mxu0
        %v1504 = vadd.f32 %v667, %v1503
        %1505 = vmatmul.f32.gmra.mxu0 %v722
        %v1506 = vpop.f32.mrf.mxu0
        %v1507 = vadd.f32 %v667, %v1506
        %1508 = vmatmul.f32.gmra.mxu0 %v725
        %v1509 = vpop.f32.mrf.mxu0
        %v1510 = vadd.f32 %v667, %v1509
        %1511 = vmatmul.f32.gmra.mxu0 %v728
        %v1512 = vpop.f32.mrf.mxu0
        %v1513 = vadd.f32 %v667, %v1512
        %1514 = vmatmul.f32.gmra.mxu0 %v731
        %v1515 = vpop.f32.mrf.mxu0
        %v1516 = vadd.f32 %v667, %v1515
        %1517 = vmatmul.f32.gmra.mxu0 %v734
        %v1518 = vpop.f32.mrf.mxu0
        %v1519 = vadd.f32 %v667, %v1518
        %1520 = vmatmul.f32.gmra.mxu0 %v737
        %v1521 = vpop.f32.mrf.mxu0
        %v1522 = vadd.f32 %v667, %v1521
        %1523 = vmatmul.f32.gmra.mxu0 %v740
        %v1524 = vpop.f32.mrf.mxu0
        %v1525 = vadd.f32 %v667, %v1524
        %1526 = vmatmul.f32.gmra.mxu0 %v743
        %v1527 = vpop.f32.mrf.mxu0
        %v1528 = vadd.f32 %v667, %v1527
        %1529 = vmatmul.f32.gmra.mxu0 %v746
        %v1530 = vpop.f32.mrf.mxu0
        %v1531 = vadd.f32 %v667, %v1530
        %1532 = vmatmul.f32.gmra.mxu0 %v749
        %v1533 = vpop.f32.mrf.mxu0
        %v1534 = vadd.f32 %v667, %v1533
        %1535 = vmatmul.f32.gmra.mxu0 %v752
        %v1536 = vpop.f32.mrf.mxu0
        %v1537 = vadd.f32 %v667, %v1536
        %1538 = vmatmul.f32.gmra.mxu0 %v755
        %v1539 = vpop.f32.mrf.mxu0
        %v1540 = vadd.f32 %v667, %v1539
        %1541 = vmatmul.f32.gmra.mxu0 %v758
        %v1542 = vpop.f32.mrf.mxu0
        %v1543 = vadd.f32 %v667, %v1542
        %1544 = vmatmul.f32.gmra.mxu0 %v761
        %v1545 = vpop.f32.mrf.mxu0
        %v1546 = vadd.f32 %v667, %v1545
        %1547 = vmatmul.f32.gmra.mxu0 %v764
        %v1548 = vpop.f32.mrf.mxu0
        %v1549 = vadd.f32 %v667, %v1548
        %1550 = vmatmul.f32.gmra.mxu0 %v767
        %v1551 = vpop.f32.mrf.mxu0
        %v1552 = vadd.f32 %v667, %v1551
        %1553 = vmatmul.f32.gmra.mxu0 %v770
        %v1554 = vpop.f32.mrf.mxu0
        %v1555 = vadd.f32 %v667, %v1554
        %1556 = vmatmul.f32.gmra.mxu0 %v773
        %v1557 = vpop.f32.mrf.mxu0
        %v1558 = vadd.f32 %v667, %v1557
        %1559 = vmatmul.f32.gmra.mxu0 %v776
        %v1560 = vpop.f32.mrf.mxu0
        %v1561 = vadd.f32 %v667, %v1560
        %1562 = vmatmul.f32.gmra.mxu0 %v779
        %v1563 = vpop.f32.mrf.mxu0
        %v1564 = vadd.f32 %v667, %v1563
        %1565 = vmatmul.f32.gmra.mxu0 %v782
        %v1566 = vpop.f32.mrf.mxu0
        %v1567 = vadd.f32 %v667, %v1566
        %1568 = vmatmul.f32.gmra.mxu0 %v785
        %v1569 = vpop.f32.mrf.mxu0
        %v1570 = vadd.f32 %v667, %v1569
        %1571 = vmatmul.f32.gmra.mxu0 %v788
        %v1572 = vpop.f32.mrf.mxu0
        %v1573 = vadd.f32 %v667, %v1572
        %1574 = vmatmul.f32.gmra.mxu0 %v791
        %v1575 = vpop.f32.mrf.mxu0
        %v1576 = vadd.f32 %v667, %v1575
        %1577 = vmatmul.f32.gmra.mxu0 %v794
        %v1578 = vpop.f32.mrf.mxu0
        %v1579 = vadd.f32 %v667, %v1578
        %1580 = vmatmul.f32.gmra.mxu0 %v797
        %v1581 = vpop.f32.mrf.mxu0
        %v1582 = vadd.f32 %v667, %v1581
        %1583 = vmatmul.f32.gmra.mxu0 %v800
        %v1584 = vpop.f32.mrf.mxu0
        %v1585 = vadd.f32 %v667, %v1584
        %1586 = vmatmul.f32.gmra.mxu0 %v803
        %v1587 = vpop.f32.mrf.mxu0
        %v1588 = vadd.f32 %v667, %v1587
        %1589 = vmatmul.f32.gmra.mxu0 %v806
        %v1590 = vpop.f32.mrf.mxu0
        %v1591 = vadd.f32 %v667, %v1590
        %1592 = vmatmul.f32.gmra.mxu0 %v809
        %v1593 = vpop.f32.mrf.mxu0
        %v1594 = vadd.f32 %v667, %v1593
        %1595 = vmatmul.f32.gmra.mxu0 %v812
        %v1596 = vpop.f32.mrf.mxu0
        %v1597 = vadd.f32 %v667, %v1596
        %1598 = vmatmul.f32.gmra.mxu0 %v815
        %v1599 = vpop.f32.mrf.mxu0
        %v1600 = vadd.f32 %v667, %v1599
        %1601 = vmatmul.f32.gmra.mxu0 %v818
        %v1602 = vpop.f32.mrf.mxu0
        %v1603 = vadd.f32 %v667, %v1602
        %1604 = vmatmul.f32.gmra.mxu0 %v821
        %v1605 = vpop.f32.mrf.mxu0
        %v1606 = vadd.f32 %v667, %v1605
        %1607 = vmatmul.f32.gmra.mxu0 %v824
        %v1608 = vpop.f32.mrf.mxu0
        %v1609 = vadd.f32 %v667, %v1608
        %1610 = vmatmul.f32.gmra.mxu0 %v827
        %v1611 = vpop.f32.mrf.mxu0
        %v1612 = vadd.f32 %v667, %v1611
        %1613 = vmatmul.f32.gmra.mxu0 %v830
        %v1614 = vpop.f32.mrf.mxu0
        %v1615 = vadd.f32 %v667, %v1614
        %1616 = vmatmul.f32.gmra.mxu0 %v833
        %v1617 = vpop.f32.mrf.mxu0
        %v1618 = vadd.f32 %v667, %v1617
        %1619 = vmatmul.f32.gmra.mxu0 %v836
        %v1620 = vpop.f32.mrf.mxu0
        %v1621 = vadd.f32 %v667, %v1620
        %1622 = vmatmul.f32.gmra.mxu0 %v839
        %v1623 = vpop.f32.mrf.mxu0
        %v1624 = vadd.f32 %v667, %v1623
        %1625 = vmatmul.f32.gmra.mxu0 %v842
        %v1626 = vpop.f32.mrf.mxu0
        %v1627 = vadd.f32 %v667, %v1626
        %1628 = vmatmul.f32.gmra.mxu0 %v845
        %v1629 = vpop.f32.mrf.mxu0
        %v1630 = vadd.f32 %v667, %v1629
        %1631 = vmatmul.f32.gmra.mxu0 %v848
        %v1632 = vpop.f32.mrf.mxu0
        %v1633 = vadd.f32 %v667, %v1632
        %1634 = vmatmul.f32.gmra.mxu0 %v851
        %v1635 = vpop.f32.mrf.mxu0
        %v1636 = vadd.f32 %v667, %v1635
        %1637 = vmatmul.f32.gmra.mxu0 %v854
        %v1638 = vpop.f32.mrf.mxu0
        %v1639 = vadd.f32 %v667, %v1638
        %1640 = vmatmul.f32.gmra.mxu0 %v857
        %v1641 = vpop.f32.mrf.mxu0
        %v1642 = vadd.f32 %v667, %v1641
        %1643 = vmatmul.f32.gmra.mxu0 %v860
        %v1644 = vpop.f32.mrf.mxu0
        %v1645 = vadd.f32 %v667, %v1644
        %1646 = vmatmul.f32.gmra.mxu0 %v863
        %v1647 = vpop.f32.mrf.mxu0
        %v1648 = vadd.f32 %v667, %v1647
        %1649 = vmatmul.f32.gmra.mxu0 %v866
        %v1650 = vpop.f32.mrf.mxu0
        %v1651 = vadd.f32 %v667, %v1650
        %1652 = vmatmul.f32.gmra.mxu0 %v869
        %v1653 = vpop.f32.mrf.mxu0
        %v1654 = vadd.f32 %v667, %v1653
        %1655 = vmatmul.f32.gmra.mxu0 %v872
        %v1656 = vpop.f32.mrf.mxu0
        %v1657 = vadd.f32 %v667, %v1656
        %1658 = vmatmul.f32.gmra.mxu0 %v875
        %v1659 = vpop.f32.mrf.mxu0
        %v1660 = vadd.f32 %v667, %v1659
        %1661 = vmatmul.f32.gmra.mxu0 %v878
        %v1662 = vpop.f32.mrf.mxu0
        %v1663 = vadd.f32 %v667, %v1662
        %1664 = vmatmul.f32.gmra.mxu0 %v881
        %v1665 = vpop.f32.mrf.mxu0
        %v1666 = vadd.f32 %v667, %v1665
        %1667 = vmatmul.f32.gmra.mxu0 %v884
        %v1668 = vpop.f32.mrf.mxu0
        %v1669 = vadd.f32 %v667, %v1668
        %1670 = vmatmul.f32.gmra.mxu0 %v887
        %v1671 = vpop.f32.mrf.mxu0
        %v1672 = vadd.f32 %v667, %v1671
        %1673 = vmatmul.f32.gmra.mxu0 %v890
        %v1674 = vpop.f32.mrf.mxu0
        %v1675 = vadd.f32 %v667, %v1674
        %1676 = vmatmul.f32.gmra.mxu0 %v893
        %v1677 = vpop.f32.mrf.mxu0
        %v1678 = vadd.f32 %v667, %v1677
        %1679 = vmatmul.f32.gmra.mxu0 %v896
        %v1680 = vpop.f32.mrf.mxu0
        %v1681 = vadd.f32 %v667, %v1680
        %1682 = vmatmul.f32.gmra.mxu0 %v899
        %v1683 = vpop.f32.mrf.mxu0
        %v1684 = vadd.f32 %v667, %v1683
        %1685 = vmatmul.f32.gmra.mxu0 %v902
        %v1686 = vpop.f32.mrf.mxu0
        %v1687 = vadd.f32 %v667, %v1686
        %1688 = vmatmul.f32.gmra.mxu0 %v905
        %v1689 = vpop.f32.mrf.mxu0
        %v1690 = vadd.f32 %v667, %v1689
        %1691 = vmatmul.f32.gmra.mxu0 %v908
        %v1692 = vpop.f32.mrf.mxu0
        %v1693 = vadd.f32 %v667, %v1692
        %1694 = vmatmul.f32.gmra.mxu0 %v911
        %v1695 = vpop.f32.mrf.mxu0
        %v1696 = vadd.f32 %v667, %v1695
        %1697 = vmatmul.f32.gmra.mxu0 %v914
        %v1698 = vpop.f32.mrf.mxu0
        %v1699 = vadd.f32 %v667, %v1698
        %1700 = vmatmul.f32.gmra.mxu0 %v917
        %v1701 = vpop.f32.mrf.mxu0
        %v1702 = vadd.f32 %v667, %v1701
        %1703 = vmatmul.f32.gmra.mxu0 %v920
        %v1704 = vpop.f32.mrf.mxu0
        %v1705 = vadd.f32 %v667, %v1704
        %1706 = vmatmul.f32.gmra.mxu0 %v923
        %v1707 = vpop.f32.mrf.mxu0
        %v1708 = vadd.f32 %v667, %v1707
        %1709 = vmatmul.f32.gmra.mxu0 %v926
        %v1710 = vpop.f32.mrf.mxu0
        %v1711 = vadd.f32 %v667, %v1710
        %1712 = vmatmul.f32.gmra.mxu0 %v929
        %v1713 = vpop.f32.mrf.mxu0
        %v1714 = vadd.f32 %v667, %v1713
        %1715 = vmatmul.f32.gmra.mxu0 %v932
        %v1716 = vpop.f32.mrf.mxu0
        %v1717 = vadd.f32 %v667, %v1716
        %1718 = vmatmul.f32.gmra.mxu0 %v935
        %v1719 = vpop.f32.mrf.mxu0
        %v1720 = vadd.f32 %v667, %v1719
        %1721 = vmatmul.f32.gmra.mxu0 %v938
        %v1722 = vpop.f32.mrf.mxu0
        %v1723 = vadd.f32 %v667, %v1722
        %1724 = vmatmul.f32.gmra.mxu0 %v941
        %v1725 = vpop.f32.mrf.mxu0
        %v1726 = vadd.f32 %v667, %v1725
        %1727 = vmatmul.f32.gmra.mxu0 %v944
        %v1728 = vpop.f32.mrf.mxu0
        %v1729 = vadd.f32 %v667, %v1728
        %1730 = vmatmul.f32.gmra.mxu0 %v947
        %v1731 = vpop.f32.mrf.mxu0
        %v1732 = vadd.f32 %v667, %v1731
        %1733 = vmatmul.f32.gmra.mxu0 %v950
        %v1734 = vpop.f32.mrf.mxu0
        %v1735 = vadd.f32 %v667, %v1734
        %1736 = vmatmul.f32.gmra.mxu0 %v953
        %v1737 = vpop.f32.mrf.mxu0
        %v1738 = vadd.f32 %v667, %v1737
        %1739 = vmatmul.f32.gmra.mxu0 %v956
        %v1740 = vpop.f32.mrf.mxu0
        %v1741 = vadd.f32 %v667, %v1740
        %1742 = vmatmul.f32.gmra.mxu0 %v959
        %v1743 = vpop.f32.mrf.mxu0
        %v1744 = vadd.f32 %v667, %v1743
        %1745 = vmatmul.f32.gmra.mxu0 %v962
        %v1746 = vpop.f32.mrf.mxu0
        %v1747 = vadd.f32 %v667, %v1746
        %1748 = vmatmul.f32.gmra.mxu0 %v965
        %v1749 = vpop.f32.mrf.mxu0
        %v1750 = vadd.f32 %v667, %v1749
        %1751 = vmatmul.f32.gmra.mxu0 %v968
        %v1752 = vpop.f32.mrf.mxu0
        %v1753 = vadd.f32 %v667, %v1752
        %1754 = vmatmul.f32.gmra.mxu0 %v971
        %v1755 = vpop.f32.mrf.mxu0
        %v1756 = vadd.f32 %v667, %v1755
        %1757 = vmatmul.f32.gmra.mxu0 %v974
        %v1758 = vpop.f32.mrf.mxu0
        %v1759 = vadd.f32 %v667, %v1758
        %1760 = vmatmul.f32.gmra.mxu0 %v977
        %v1761 = vpop.f32.mrf.mxu0
        %v1762 = vadd.f32 %v667, %v1761
        %1763 = vmatmul.f32.gmra.mxu0 %v980
        %v1764 = vpop.f32.mrf.mxu0
        %v1765 = vadd.f32 %v667, %v1764
        %1766 = vmatmul.f32.gmra.mxu0 %v983
        %v1767 = vpop.f32.mrf.mxu0
        %v1768 = vadd.f32 %v667, %v1767
        %1769 = vmatmul.f32.gmra.mxu0 %v986
        %v1770 = vpop.f32.mrf.mxu0
        %v1771 = vadd.f32 %v667, %v1770
        %1772 = vmatmul.f32.gmra.mxu0 %v989
        %v1773 = vpop.f32.mrf.mxu0
        %v1774 = vadd.f32 %v667, %v1773
        %1775 = vmatmul.f32.gmra.mxu0 %v992
        %v1776 = vpop.f32.mrf.mxu0
        %v1777 = vadd.f32 %v667, %v1776
        %1778 = vmatmul.f32.gmra.mxu0 %v995
        %v1779 = vpop.f32.mrf.mxu0
        %v1780 = vadd.f32 %v667, %v1779
        %1781 = vmatmul.f32.gmra.mxu0 %v998
        %v1782 = vpop.f32.mrf.mxu0
        %v1783 = vadd.f32 %v667, %v1782
        %1784 = vmatmul.f32.gmra.mxu0 %v1001
        %v1785 = vpop.f32.mrf.mxu0
        %v1786 = vadd.f32 %v667, %v1785
        %1787 = vmatmul.f32.gmra.mxu0 %v1004
        %v1788 = vpop.f32.mrf.mxu0
        %v1789 = vadd.f32 %v667, %v1788
        %1790 = vmatmul.f32.gmra.mxu0 %v1007
        %v1791 = vpop.f32.mrf.mxu0
        %v1792 = vadd.f32 %v667, %v1791
        %1793 = vmatmul.f32.gmra.mxu0 %v1010
        %v1794 = vpop.f32.mrf.mxu0
        %v1795 = vadd.f32 %v667, %v1794
        %1796 = vmatmul.f32.gmra.mxu0 %v1013
        %v1797 = vpop.f32.mrf.mxu0
        %v1798 = vadd.f32 %v667, %v1797
        %1799 = vmatmul.f32.gmra.mxu0 %v1016
        %v1800 = vpop.f32.mrf.mxu0
        %v1801 = vadd.f32 %v667, %v1800
        %1802 = vmatmul.f32.gmra.mxu0 %v1019
        %v1803 = vpop.f32.mrf.mxu0
        %v1804 = vadd.f32 %v667, %v1803
        %1805 = vmatmul.f32.gmra.mxu0 %v1022
        %v1806 = vpop.f32.mrf.mxu0
        %v1807 = vadd.f32 %v667, %v1806
        %1808 = vmatmul.f32.gmra.mxu0 %v1025
        %v1809 = vpop.f32.mrf.mxu0
        %v1810 = vadd.f32 %v667, %v1809
        %1811 = vmatmul.f32.gmra.mxu0 %v1028
        %v1812 = vpop.f32.mrf.mxu0
        %v1813 = vadd.f32 %v667, %v1812
        %1814 = vmatmul.f32.gmra.mxu0 %v1031
        %v1815 = vpop.f32.mrf.mxu0
        %v1816 = vadd.f32 %v667, %v1815
        %1817 = vmatmul.f32.gmra.mxu0 %v1034
        %v1818 = vpop.f32.mrf.mxu0
        %v1819 = vadd.f32 %v667, %v1818
        %1820 = vmatmul.f32.gmra.mxu0 %v1037
        %v1821 = vpop.f32.mrf.mxu0
        %v1822 = vadd.f32 %v667, %v1821
        %1823 = vmatmul.f32.gmra.mxu0 %v1040
        %v1824 = vpop.f32.mrf.mxu0
        %v1825 = vadd.f32 %v667, %v1824
        %1826 = vmatmul.f32.gmra.mxu0 %v1043
        %v1827 = vpop.f32.mrf.mxu0
        %v1828 = vadd.f32 %v667, %v1827
        %1829 = vmatmul.f32.gmra.mxu0 %v1046
        %v1830 = vpop.f32.mrf.mxu0
        %v1831 = vadd.f32 %v667, %v1830
        %1832 = vmatmul.f32.gmra.mxu0 %v1049
        %v1833 = vpop.f32.mrf.mxu0
        %v1834 = vadd.f32 %v667, %v1833
        %1835 = vmatmul.f32.gmra.mxu0 %v1052
        %v1836 = vpop.f32.mrf.mxu0
        %v1837 = vadd.f32 %v667, %v1836
        %1838 = vmatmul.f32.gmra.mxu0 %v1055
        %v1839 = vpop.f32.mrf.mxu0
        %v1840 = vadd.f32 %v667, %v1839
        %1841 = vmatmul.f32.gmra.mxu0 %v1058
        %v1842 = vpop.f32.mrf.mxu0
        %v1843 = vadd.f32 %v667, %v1842
        %1844 = vmatmul.f32.gmra.mxu0 %v1061
        %v1845 = vpop.f32.mrf.mxu0
        %v1846 = vadd.f32 %v667, %v1845
        %1847 = vmatmul.f32.gmra.mxu0 %v1064
        %v1848 = vpop.f32.mrf.mxu0
        %v1849 = vadd.f32 %v667, %v1848
        %1850 = vmatmul.f32.gmra.mxu0 %v1067
        %v1851 = vpop.f32.mrf.mxu0
        %v1852 = vadd.f32 %v667, %v1851
        %1853 = vmatmul.f32.gmra.mxu0 %v1070
        %v1854 = vpop.f32.mrf.mxu0
        %v1855 = vadd.f32 %v667, %v1854
        %1856 = vmatmul.f32.gmra.mxu0 %v1073
        %v1857 = vpop.f32.mrf.mxu0
        %v1858 = vadd.f32 %v667, %v1857
        %1859 = vmatmul.f32.gmra.mxu0 %v1076
        %v1860 = vpop.f32.mrf.mxu0
        %v1861 = vadd.f32 %v667, %v1860
        %1862 = vmatmul.f32.gmra.mxu0 %v1079
        %v1863 = vpop.f32.mrf.mxu0
        %v1864 = vadd.f32 %v667, %v1863
        %1865 = vmatmul.f32.gmra.mxu0 %v1082
        %v1866 = vpop.f32.mrf.mxu0
        %v1867 = vadd.f32 %v667, %v1866
        %1868 = vmatmul.f32.gmra.mxu0 %v1085
        %v1869 = vpop.f32.mrf.mxu0
        %v1870 = vadd.f32 %v667, %v1869
        %1871 = vmatmul.f32.gmra.mxu0 %v1088
        %v1872 = vpop.f32.mrf.mxu0
        %v1873 = vadd.f32 %v667, %v1872
        %1874 = vmatmul.f32.gmra.mxu0 %v1091
        %v1875 = vpop.f32.mrf.mxu0
        %v1876 = vadd.f32 %v667, %v1875
        %1877 = vmatmul.f32.gmra.mxu0 %v1094
        %v1878 = vpop.f32.mrf.mxu0
        %v1879 = vadd.f32 %v667, %v1878
        %1880 = vmatmul.f32.gmra.mxu0 %v1097
        %v1881 = vpop.f32.mrf.mxu0
        %v1882 = vadd.f32 %v667, %v1881
        %1883 = vmatmul.f32.gmra.mxu0 %v1100
        %v1884 = vpop.f32.mrf.mxu0
        %v1885 = vadd.f32 %v667, %v1884
        %1886 = vmatmul.f32.gmra.mxu0 %v1103
        %v1887 = vpop.f32.mrf.mxu0
        %v1888 = vadd.f32 %v667, %v1887
        %1889 = vmatmul.f32.gmra.mxu0 %v1106
        %v1890 = vpop.f32.mrf.mxu0
        %v1891 = vadd.f32 %v667, %v1890
        %1892 = vmatmul.f32.gmra.mxu0 %v1109
        %v1893 = vpop.f32.mrf.mxu0
        %v1894 = vadd.f32 %v667, %v1893
        %1895 = vmatmul.f32.gmra.mxu0 %v1112
        %v1896 = vpop.f32.mrf.mxu0
        %v1897 = vadd.f32 %v667, %v1896
        %1898 = vmatmul.f32.gmra.mxu0 %v1115
        %v1899 = vpop.f32.mrf.mxu0
        %v1900 = vadd.f32 %v667, %v1899
        %1901 = vmatmul.f32.gmra.mxu0 %v1118
        %v1902 = vpop.f32.mrf.mxu0
        %v1903 = vadd.f32 %v667, %v1902
        %1904 = vmatmul.f32.gmra.mxu0 %v1121
        %v1905 = vpop.f32.mrf.mxu0
        %v1906 = vadd.f32 %v667, %v1905
        %1907 = vmatmul.f32.gmra.mxu0 %v1124
        %v1908 = vpop.f32.mrf.mxu0
        %v1909 = vadd.f32 %v667, %v1908
        %1910 = vmatmul.f32.gmra.mxu0 %v1127
        %v1911 = vpop.f32.mrf.mxu0
        %v1912 = vadd.f32 %v667, %v1911
        %1913 = vmatmul.f32.gmra.mxu0 %v1130
        %v1914 = vpop.f32.mrf.mxu0
        %v1915 = vadd.f32 %v667, %v1914
        %1916 = vmatmul.f32.gmra.mxu0 %v1133
        %v1917 = vpop.f32.mrf.mxu0
        %v1918 = vadd.f32 %v667, %v1917
        %1919 = vmatmul.f32.gmra.mxu0 %v1136
        %v1920 = vpop.f32.mrf.mxu0
        %v1921 = vadd.f32 %v667, %v1920
        %1922 = vmatmul.f32.gmra.mxu0 %v1139
        %v1923 = vpop.f32.mrf.mxu0
        %v1924 = vadd.f32 %v667, %v1923
        %1925 = vmatmul.f32.gmra.mxu0 %v1142
        %v1926 = vpop.f32.mrf.mxu0
        %v1927 = vadd.f32 %v667, %v1926
        %1928 = vmatmul.f32.gmra.mxu0 %v1145
        %v1929 = vpop.f32.mrf.mxu0
        %v1930 = vadd.f32 %v667, %v1929
        %1931 = vmatmul.f32.gmra.mxu0 %v1148
        %v1932 = vpop.f32.mrf.mxu0
        %v1933 = vadd.f32 %v667, %v1932
        %1934 = vmatmul.f32.gmra.mxu0 %v1151
        %v1935 = vpop.f32.mrf.mxu0
        %v1936 = vadd.f32 %v667, %v1935
        %1937 = vmatmul.f32.gmra.mxu0 %v1154
        %v1938 = vpop.f32.mrf.mxu0
        %v1939 = vadd.f32 %v667, %v1938
        %1940 = vmatmul.f32.gmra.mxu0 %v1157
        %v1941 = vpop.f32.mrf.mxu0
        %v1942 = vadd.f32 %v667, %v1941
        %1943 = vmatmul.f32.gmra.mxu0 %v1160
        %v1944 = vpop.f32.mrf.mxu0
        %v1945 = vadd.f32 %v667, %v1944
        %1946 = vmatmul.f32.gmra.mxu0 %v1163
        %v1947 = vpop.f32.mrf.mxu0
        %v1948 = vadd.f32 %v667, %v1947
        %1949 = vmatmul.f32.gmra.mxu0 %v1166
        %v1950 = vpop.f32.mrf.mxu0
        %v1951 = vadd.f32 %v667, %v1950
        %1952 = vmatmul.f32.gmra.mxu0 %v1169
        %v1953 = vpop.f32.mrf.mxu0
        %v1954 = vadd.f32 %v667, %v1953
        %1955 = vmatmul.f32.gmra.mxu0 %v1172
        %v1956 = vpop.f32.mrf.mxu0
        %v1957 = vadd.f32 %v667, %v1956
        %1958 = vmatmul.f32.gmra.mxu0 %v1175
        %v1959 = vpop.f32.mrf.mxu0
        %v1960 = vadd.f32 %v667, %v1959
        %1961 = vmatmul.f32.gmra.mxu0 %v1178
        %v1962 = vpop.f32.mrf.mxu0
        %v1963 = vadd.f32 %v667, %v1962
        %1964 = vmatmul.f32.gmra.mxu0 %v1181
        %v1965 = vpop.f32.mrf.mxu0
        %v1966 = vadd.f32 %v667, %v1965
        %1967 = vmatmul.f32.gmra.mxu0 %v1184
        %v1968 = vpop.f32.mrf.mxu0
        %v1969 = vadd.f32 %v667, %v1968
        %1970 = vmatmul.f32.gmra.mxu0 %v1187
        %v1971 = vpop.f32.mrf.mxu0
        %v1972 = vadd.f32 %v667, %v1971
        %1973 = vmatmul.f32.gmra.mxu0 %v1190
        %v1974 = vpop.f32.mrf.mxu0
        %v1975 = vadd.f32 %v667, %v1974
        %1976 = vmatmul.f32.gmra.mxu0 %v1193
        %v1977 = vpop.f32.mrf.mxu0
        %v1978 = vadd.f32 %v667, %v1977
        %1979 = vmatmul.f32.gmra.mxu0 %v1196
        %v1980 = vpop.f32.mrf.mxu0
        %v1981 = vadd.f32 %v667, %v1980
        %1982 = vmatmul.f32.gmra.mxu0 %v1199
        %v1983 = vpop.f32.mrf.mxu0
        %v1984 = vadd.f32 %v667, %v1983
        %1985 = vmatmul.f32.gmra.mxu0 %v1202
        %v1986 = vpop.f32.mrf.mxu0
        %v1987 = vadd.f32 %v667, %v1986
        %1988 = vmatmul.f32.gmra.mxu0 %v1205
        %v1989 = vpop.f32.mrf.mxu0
        %v1990 = vadd.f32 %v667, %v1989
        %1991 = vmatmul.f32.gmra.mxu0 %v1208
        %v1992 = vpop.f32.mrf.mxu0
        %v1993 = vadd.f32 %v667, %v1992
        %1994 = vmatmul.f32.gmra.mxu0 %v1211
        %v1995 = vpop.f32.mrf.mxu0
        %v1996 = vadd.f32 %v667, %v1995
        %1997 = vmatmul.f32.gmra.mxu0 %v1214
        %v1998 = vpop.f32.mrf.mxu0
        %v1999 = vadd.f32 %v667, %v1998
        %2000 = vmatmul.f32.gmra.mxu0 %v1217
        %v2001 = vpop.f32.mrf.mxu0
        %v2002 = vadd.f32 %v667, %v2001
        %2003 = vmatmul.f32.gmra.mxu0 %v1220
        %v2004 = vpop.f32.mrf.mxu0
        %v2005 = vadd.f32 %v667, %v2004
        %2006 = vmatmul.f32.gmra.mxu0 %v1223
        %v2007 = vpop.f32.mrf.mxu0
        %v2008 = vadd.f32 %v667, %v2007
        %2009 = vmatmul.f32.gmra.mxu0 %v1226
        %v2010 = vpop.f32.mrf.mxu0
        %v2011 = vadd.f32 %v667, %v2010
        %2012 = vmatmul.f32.gmra.mxu0 %v1229
        %v2013 = vpop.f32.mrf.mxu0
        %v2014 = vadd.f32 %v667, %v2013
        %2015 = vmatmul.f32.gmra.mxu0 %v1232
        %v2016 = vpop.f32.mrf.mxu0
        %v2017 = vadd.f32 %v667, %v2016
        %2018 = vmatmul.f32.gmra.mxu0 %v1235
        %v2019 = vpop.f32.mrf.mxu0
        %v2020 = vadd.f32 %v667, %v2019
        %2021 = vmatmul.f32.gmra.mxu0 %v1238
        %v2022 = vpop.f32.mrf.mxu0
        %v2023 = vadd.f32 %v667, %v2022
        %2024 = vmatmul.f32.gmra.mxu0 %v1241
        %v2025 = vpop.f32.mrf.mxu0
        %v2026 = vadd.f32 %v667, %v2025
        %2027 = vmatmul.f32.gmra.mxu0 %v1244
        %v2028 = vpop.f32.mrf.mxu0
        %v2029 = vadd.f32 %v667, %v2028
        %2030 = vmatmul.f32.gmra.mxu0 %v1247
        %v2031 = vpop.f32.mrf.mxu0
        %v2032 = vadd.f32 %v667, %v2031
        %2033 = vmatmul.f32.gmra.mxu0 %v1250
        %v2034 = vpop.f32.mrf.mxu0
        %v2035 = vadd.f32 %v667, %v2034
        %2036 = vmatmul.f32.gmra.mxu0 %v1253
        %v2037 = vpop.f32.mrf.mxu0
        %v2038 = vadd.f32 %v667, %v2037
        %2039 = vmatmul.f32.gmra.mxu0 %v1256
        %v2040 = vpop.f32.mrf.mxu0
        %v2041 = vadd.f32 %v667, %v2040
        %2042 = vmatmul.f32.gmra.mxu0 %v1259
        %v2043 = vpop.f32.mrf.mxu0
        %v2044 = vadd.f32 %v667, %v2043
        %2045 = vmatmul.f32.gmra.mxu0 %v1262
        %v2046 = vpop.f32.mrf.mxu0
        %v2047 = vadd.f32 %v667, %v2046
        %2048 = vmatmul.f32.gmra.mxu0 %v1265
        %v2049 = vpop.f32.mrf.mxu0
        %v2050 = vadd.f32 %v667, %v2049
        %2051 = vmatmul.f32.gmra.mxu0 %v1268
        %v2052 = vpop.f32.mrf.mxu0
        %v2053 = vadd.f32 %v667, %v2052
        %2054 = vmatmul.f32.gmra.mxu0 %v1271
        %v2055 = vpop.f32.mrf.mxu0
        %v2056 = vadd.f32 %v667, %v2055
        %2057 = vmatmul.f32.gmra.mxu0 %v1274
        %v2058 = vpop.f32.mrf.mxu0
        %v2059 = vadd.f32 %v667, %v2058
        %2060 = vmatmul.f32.gmra.mxu0 %v1277
        %v2061 = vpop.f32.mrf.mxu0
        %v2062 = vadd.f32 %v667, %v2061
        %2063 = vmatmul.f32.gmra.mxu0 %v1280
        %v2064 = vpop.f32.mrf.mxu0
        %v2065 = vadd.f32 %v667, %v2064
        %2066 = vmatmul.f32.gmra.mxu0 %v1283
        %v2067 = vpop.f32.mrf.mxu0
        %v2068 = vadd.f32 %v667, %v2067
        %2069 = vmatmul.f32.gmra.mxu0 %v1286
        %v2070 = vpop.f32.mrf.mxu0
        %v2071 = vadd.f32 %v667, %v2070
        %2072 = vmatmul.f32.gmra.mxu0 %v1289
        %v2073 = vpop.f32.mrf.mxu0
        %v2074 = vadd.f32 %v667, %v2073
        %2075 = vmatmul.f32.gmra.mxu0 %v1292
        %v2076 = vpop.f32.mrf.mxu0
        %v2077 = vadd.f32 %v667, %v2076
        %2078 = vmatmul.f32.gmra.mxu0 %v1295
        %v2079 = vpop.f32.mrf.mxu0
        %v2080 = vadd.f32 %v667, %v2079
        %2081 = vmatmul.f32.gmra.mxu0 %v1298
        %v2082 = vpop.f32.mrf.mxu0
        %v2083 = vadd.f32 %v667, %v2082
        %2084 = vmatmul.f32.gmra.mxu0 %v1301
        %v2085 = vpop.f32.mrf.mxu0
        %v2086 = vadd.f32 %v667, %v2085
        %2087 = vmatmul.f32.gmra.mxu0 %v1304
        %v2088 = vpop.f32.mrf.mxu0
        %v2089 = vadd.f32 %v667, %v2088
        %2090 = vmatmul.f32.gmra.mxu0 %v1307
        %v2091 = vpop.f32.mrf.mxu0
        %v2092 = vadd.f32 %v667, %v2091
        %2093 = vmatmul.f32.gmra.mxu0 %v1310
        %v2094 = vpop.f32.mrf.mxu0
        %v2095 = vadd.f32 %v667, %v2094
        %2096 = vmatmul.f32.gmra.mxu0 %v1313
        %v2097 = vpop.f32.mrf.mxu0
        %v2098 = vadd.f32 %v667, %v2097
        %2099 = vmatmul.f32.gmra.mxu0 %v1316
        %v2100 = vpop.f32.mrf.mxu0
        %v2101 = vadd.f32 %v667, %v2100
        %2102 = vmatmul.f32.gmra.mxu0 %v1319
        %v2103 = vpop.f32.mrf.mxu0
        %v2104 = vadd.f32 %v667, %v2103
        %2105 = vmatmul.f32.gmra.mxu0 %v1322
        %v2106 = vpop.f32.mrf.mxu0
        %v2107 = vadd.f32 %v667, %v2106
        %2108 = vmatmul.f32.gmra.mxu0 %v1325
        %v2109 = vpop.f32.mrf.mxu0
        %v2110 = vadd.f32 %v667, %v2109
        %2111 = vmatmul.f32.gmra.mxu0 %v1328
        %v2112 = vpop.f32.mrf.mxu0
        %v2113 = vadd.f32 %v667, %v2112
        %2114 = vmatmul.f32.gmra.mxu0 %v1331
        %v2115 = vpop.f32.mrf.mxu0
        %v2116 = vadd.f32 %v667, %v2115
        %2117 = vmatmul.f32.gmra.mxu0 %v1334
        %v2118 = vpop.f32.mrf.mxu0
        %v2119 = vadd.f32 %v667, %v2118
        %2120 = vmatmul.f32.gmra.mxu0 %v1337
        %v2121 = vpop.f32.mrf.mxu0
        %v2122 = vadd.f32 %v667, %v2121
        %2123 = vmatmul.f32.gmra.mxu0 %v1340
        %v2124 = vpop.f32.mrf.mxu0
        %v2125 = vadd.f32 %v667, %v2124
        %2126 = vmatmul.f32.gmra.mxu0 %v1343
        %v2127 = vpop.f32.mrf.mxu0
        %v2128 = vadd.f32 %v667, %v2127
        %2129 = vmatmul.f32.gmra.mxu0 %v1346
        %v2130 = vpop.f32.mrf.mxu0
        %v2131 = vadd.f32 %v667, %v2130
        %2132 = vmatmul.f32.gmra.mxu0 %v1349
        %v2133 = vpop.f32.mrf.mxu0
        %v2134 = vadd.f32 %v667, %v2133
        %2135 = vmatmul.f32.gmra.mxu0 %v1352
        %v2136 = vpop.f32.mrf.mxu0
        %v2137 = vadd.f32 %v667, %v2136
        %2138 = vmatmul.f32.gmra.mxu0 %v1355
        %v2139 = vpop.f32.mrf.mxu0
        %v2140 = vadd.f32 %v667, %v2139
        %2141 = vmatmul.f32.gmra.mxu0 %v1358
        %v2142 = vpop.f32.mrf.mxu0
        %v2143 = vadd.f32 %v667, %v2142
        %2144 = vmatmul.f32.gmra.mxu0 %v1361
        %v2145 = vpop.f32.mrf.mxu0
        %v2146 = vadd.f32 %v667, %v2145
        %2147 = vmatmul.f32.gmra.mxu0 %v1364
        %v2148 = vpop.f32.mrf.mxu0
        %v2149 = vadd.f32 %v667, %v2148
        %2150 = vmatmul.f32.gmra.mxu0 %v1367
        %v2151 = vpop.f32.mrf.mxu0
        %v2152 = vadd.f32 %v667, %v2151
        %2153 = vmatmul.f32.gmra.mxu0 %v1370
        %v2154 = vpop.f32.mrf.mxu0
        %v2155 = vadd.f32 %v667, %v2154
        %2156 = vmatmul.f32.gmra.mxu0 %v1373
        %v2157 = vpop.f32.mrf.mxu0
        %v2158 = vadd.f32 %v667, %v2157
        %2159 = vmatmul.f32.gmra.mxu0 %v1376
        %v2160 = vpop.f32.mrf.mxu0
        %v2161 = vadd.f32 %v667, %v2160
        %2162 = vmatmul.f32.gmra.mxu0 %v1379
        %v2163 = vpop.f32.mrf.mxu0
        %v2164 = vadd.f32 %v667, %v2163
        %2165 = vmatmul.f32.gmra.mxu0 %v1382
        %v2166 = vpop.f32.mrf.mxu0
        %v2167 = vadd.f32 %v667, %v2166
        %2168 = vmatmul.f32.gmra.mxu0 %v1385
        %v2169 = vpop.f32.mrf.mxu0
        %v2170 = vadd.f32 %v667, %v2169
        %2171 = vmatmul.f32.gmra.mxu0 %v1388
        %v2172 = vpop.f32.mrf.mxu0
        %v2173 = vadd.f32 %v667, %v2172
        %2174 = vmatmul.f32.gmra.mxu0 %v1391
        %v2175 = vpop.f32.mrf.mxu0
        %v2176 = vadd.f32 %v667, %v2175
        %2177 = vmatmul.f32.gmra.mxu0 %v1394
        %v2178 = vpop.f32.mrf.mxu0
        %v2179 = vadd.f32 %v667, %v2178
        %2180 = vmatmul.f32.gmra.mxu0 %v1397
        %v2181 = vpop.f32.mrf.mxu0
        %v2182 = vadd.f32 %v667, %v2181
        %2183 = vmatmul.f32.gmra.mxu0 %v1400
        %v2184 = vpop.f32.mrf.mxu0
        %v2185 = vadd.f32 %v667, %v2184
        %2186 = vmatmul.f32.gmra.mxu0 %v1403
        %v2187 = vpop.f32.mrf.mxu0
        %v2188 = vadd.f32 %v667, %v2187
        %2189 = vmatmul.f32.gmra.mxu0 %v1406
        %v2190 = vpop.f32.mrf.mxu0
        %v2191 = vadd.f32 %v667, %v2190
        %2192 = vmatmul.f32.gmra.mxu0 %v1409
        %v2193 = vpop.f32.mrf.mxu0
        %v2194 = vadd.f32 %v667, %v2193
        %2195 = vmatmul.f32.gmra.mxu0 %v1412
        %v2196 = vpop.f32.mrf.mxu0
        %v2197 = vadd.f32 %v667, %v2196
        %2198 = vmatmul.f32.gmra.mxu0 %v1415
        %v2199 = vpop.f32.mrf.mxu0
        %v2200 = vadd.f32 %v667, %v2199
        %2201 = vmatmul.f32.gmra.mxu0 %v1418
        %v2202 = vpop.f32.mrf.mxu0
        %v2203 = vadd.f32 %v667, %v2202
        %2204 = vmatmul.f32.gmra.mxu0 %v1421
        %v2205 = vpop.f32.mrf.mxu0
        %v2206 = vadd.f32 %v667, %v2205
        %2207 = vmatmul.f32.gmra.mxu0 %v1424
        %v2208 = vpop.f32.mrf.mxu0
        %v2209 = vadd.f32 %v667, %v2208
        %2210 = vmatmul.f32.gmra.mxu0 %v1427
        %v2211 = vpop.f32.mrf.mxu0
        %v2212 = vadd.f32 %v667, %v2211
        %2213 = vmatmul.f32.gmra.mxu0 %v1430
        %v2214 = vpop.f32.mrf.mxu0
        %v2215 = vadd.f32 %v667, %v2214
        %2216 = vmatmul.f32.gmra.mxu0 %v1433
        %v2217 = vpop.f32.mrf.mxu0
        %v2218 = vadd.f32 %v667, %v2217
        %2219 = vmatmul.f32.gmra.mxu0 %v1436
        %v2220 = vpop.f32.mrf.mxu0
        %v2221 = vadd.f32 %v667, %v2220
        %2222 = vdwg.mxu0
        %v2223 = vmax.f32 %v1456, 0.0
        %v2224 = vmax.f32 %v1459, 0.0
        %v2225 = vmax.f32 %v1462, 0.0
        %v2226 = vmax.f32 %v1465, 0.0
        %v2227 = vmax.f32 %v1468, 0.0
        %v2228 = vmax.f32 %v1471, 0.0
        %v2229 = vmax.f32 %v1474, 0.0
        %v2230 = vmax.f32 %v1477, 0.0
        %v2231 = vmax.f32 %v1480, 0.0
        %v2232 = vmax.f32 %v1483, 0.0
        %v2233 = vmax.f32 %v1486, 0.0
        %v2234 = vmax.f32 %v1489, 0.0
        %v2235 = vmax.f32 %v1492, 0.0
        %v2236 = vmax.f32 %v1495, 0.0
        %v2237 = vmax.f32 %v1498, 0.0
        %v2238 = vmax.f32 %v1501, 0.0
        %v2239 = vmax.f32 %v1504, 0.0
        %v2240 = vmax.f32 %v1507, 0.0
        %v2241 = vmax.f32 %v1510, 0.0
        %v2242 = vmax.f32 %v1513, 0.0
        %v2243 = vmax.f32 %v1516, 0.0
        %v2244 = vmax.f32 %v1519, 0.0
        %v2245 = vmax.f32 %v1522, 0.0
        %v2246 = vmax.f32 %v1525, 0.0
        %v2247 = vmax.f32 %v1528, 0.0
        %v2248 = vmax.f32 %v1531, 0.0
        %v2249 = vmax.f32 %v1534, 0.0
        %v2250 = vmax.f32 %v1537, 0.0
        %v2251 = vmax.f32 %v1540, 0.0
        %v2252 = vmax.f32 %v1543, 0.0
        %v2253 = vmax.f32 %v1546, 0.0
        %v2254 = vmax.f32 %v1549, 0.0
        %v2255 = vmax.f32 %v1552, 0.0
        %v2256 = vmax.f32 %v1555, 0.0
        %v2257 = vmax.f32 %v1558, 0.0
        %v2258 = vmax.f32 %v1561, 0.0
        %v2259 = vmax.f32 %v1564, 0.0
        %v2260 = vmax.f32 %v1567, 0.0
        %v2261 = vmax.f32 %v1570, 0.0
        %v2262 = vmax.f32 %v1573, 0.0
        %v2263 = vmax.f32 %v1576, 0.0
        %v2264 = vmax.f32 %v1579, 0.0
        %v2265 = vmax.f32 %v1582, 0.0
        %v2266 = vmax.f32 %v1585, 0.0
        %v2267 = vmax.f32 %v1588, 0.0
        %v2268 = vmax.f32 %v1591, 0.0
        %v2269 = vmax.f32 %v1594, 0.0
        %v2270 = vmax.f32 %v1597, 0.0
        %v2271 = vmax.f32 %v1600, 0.0
        %v2272 = vmax.f32 %v1603, 0.0
        %v2273 = vmax.f32 %v1606, 0.0
        %v2274 = vmax.f32 %v1609, 0.0
        %v2275 = vmax.f32 %v1612, 0.0
        %v2276 = vmax.f32 %v1615, 0.0
        %v2277 = vmax.f32 %v1618, 0.0
        %v2278 = vmax.f32 %v1621, 0.0
        %v2279 = vmax.f32 %v1624, 0.0
        %v2280 = vmax.f32 %v1627, 0.0
        %v2281 = vmax.f32 %v1630, 0.0
        %v2282 = vmax.f32 %v1633, 0.0
        %v2283 = vmax.f32 %v1636, 0.0
        %v2284 = vmax.f32 %v1639, 0.0
        %v2285 = vmax.f32 %v1642, 0.0
        %v2286 = vmax.f32 %v1645, 0.0
        %v2287 = vmax.f32 %v1648, 0.0
        %v2288 = vmax.f32 %v1651, 0.0
        %v2289 = vmax.f32 %v1654, 0.0
        %v2290 = vmax.f32 %v1657, 0.0
        %v2291 = vmax.f32 %v1660, 0.0
        %v2292 = vmax.f32 %v1663, 0.0
        %v2293 = vmax.f32 %v1666, 0.0
        %v2294 = vmax.f32 %v1669, 0.0
        %v2295 = vmax.f32 %v1672, 0.0
        %v2296 = vmax.f32 %v1675, 0.0
        %v2297 = vmax.f32 %v1678, 0.0
        %v2298 = vmax.f32 %v1681, 0.0
        %v2299 = vmax.f32 %v1684, 0.0
        %v2300 = vmax.f32 %v1687, 0.0
        %v2301 = vmax.f32 %v1690, 0.0
        %v2302 = vmax.f32 %v1693, 0.0
        %v2303 = vmax.f32 %v1696, 0.0
        %v2304 = vmax.f32 %v1699, 0.0
        %v2305 = vmax.f32 %v1702, 0.0
        %v2306 = vmax.f32 %v1705, 0.0
        %v2307 = vmax.f32 %v1708, 0.0
        %v2308 = vmax.f32 %v1711, 0.0
        %v2309 = vmax.f32 %v1714, 0.0
        %v2310 = vmax.f32 %v1717, 0.0
        %v2311 = vmax.f32 %v1720, 0.0
        %v2312 = vmax.f32 %v1723, 0.0
        %v2313 = vmax.f32 %v1726, 0.0
        %v2314 = vmax.f32 %v1729, 0.0
        %v2315 = vmax.f32 %v1732, 0.0
        %v2316 = vmax.f32 %v1735, 0.0
        %v2317 = vmax.f32 %v1738, 0.0
        %v2318 = vmax.f32 %v1741, 0.0
        %v2319 = vmax.f32 %v1744, 0.0
        %v2320 = vmax.f32 %v1747, 0.0
        %v2321 = vmax.f32 %v1750, 0.0
        %v2322 = vmax.f32 %v1753, 0.0
        %v2323 = vmax.f32 %v1756, 0.0
        %v2324 = vmax.f32 %v1759, 0.0
        %v2325 = vmax.f32 %v1762, 0.0
        %v2326 = vmax.f32 %v1765, 0.0
        %v2327 = vmax.f32 %v1768, 0.0
        %v2328 = vmax.f32 %v1771, 0.0
        %v2329 = vmax.f32 %v1774, 0.0
        %v2330 = vmax.f32 %v1777, 0.0
        %v2331 = vmax.f32 %v1780, 0.0
        %v2332 = vmax.f32 %v1783, 0.0
        %v2333 = vmax.f32 %v1786, 0.0
        %v2334 = vmax.f32 %v1789, 0.0
        %v2335 = vmax.f32 %v1792, 0.0
        %v2336 = vmax.f32 %v1795, 0.0
        %v2337 = vmax.f32 %v1798, 0.0
        %v2338 = vmax.f32 %v1801, 0.0
        %v2339 = vmax.f32 %v1804, 0.0
        %v2340 = vmax.f32 %v1807, 0.0
        %v2341 = vmax.f32 %v1810, 0.0
        %v2342 = vmax.f32 %v1813, 0.0
        %v2343 = vmax.f32 %v1816, 0.0
        %v2344 = vmax.f32 %v1819, 0.0
        %v2345 = vmax.f32 %v1822, 0.0
        %v2346 = vmax.f32 %v1825, 0.0
        %v2347 = vmax.f32 %v1828, 0.0
        %v2348 = vmax.f32 %v1831, 0.0
        %v2349 = vmax.f32 %v1834, 0.0
        %v2350 = vmax.f32 %v1837, 0.0
        %v2351 = vmax.f32 %v1840, 0.0
        %v2352 = vmax.f32 %v1843, 0.0
        %v2353 = vmax.f32 %v1846, 0.0
        %v2354 = vmax.f32 %v1849, 0.0
        %v2355 = vmax.f32 %v1852, 0.0
        %v2356 = vmax.f32 %v1855, 0.0
        %v2357 = vmax.f32 %v1858, 0.0
        %v2358 = vmax.f32 %v1861, 0.0
        %v2359 = vmax.f32 %v1864, 0.0
        %v2360 = vmax.f32 %v1867, 0.0
        %v2361 = vmax.f32 %v1870, 0.0
        %v2362 = vmax.f32 %v1873, 0.0
        %v2363 = vmax.f32 %v1876, 0.0
        %v2364 = vmax.f32 %v1879, 0.0
        %v2365 = vmax.f32 %v1882, 0.0
        %v2366 = vmax.f32 %v1885, 0.0
        %v2367 = vmax.f32 %v1888, 0.0
        %v2368 = vmax.f32 %v1891, 0.0
        %v2369 = vmax.f32 %v1894, 0.0
        %v2370 = vmax.f32 %v1897, 0.0
        %v2371 = vmax.f32 %v1900, 0.0
        %v2372 = vmax.f32 %v1903, 0.0
        %v2373 = vmax.f32 %v1906, 0.0
        %v2374 = vmax.f32 %v1909, 0.0
        %v2375 = vmax.f32 %v1912, 0.0
        %v2376 = vmax.f32 %v1915, 0.0
        %v2377 = vmax.f32 %v1918, 0.0
        %v2378 = vmax.f32 %v1921, 0.0
        %v2379 = vmax.f32 %v1924, 0.0
        %v2380 = vmax.f32 %v1927, 0.0
        %v2381 = vmax.f32 %v1930, 0.0
        %v2382 = vmax.f32 %v1933, 0.0
        %v2383 = vmax.f32 %v1936, 0.0
        %v2384 = vmax.f32 %v1939, 0.0
        %v2385 = vmax.f32 %v1942, 0.0
        %v2386 = vmax.f32 %v1945, 0.0
        %v2387 = vmax.f32 %v1948, 0.0
        %v2388 = vmax.f32 %v1951, 0.0
        %v2389 = vmax.f32 %v1954, 0.0
        %v2390 = vmax.f32 %v1957, 0.0
        %v2391 = vmax.f32 %v1960, 0.0
        %v2392 = vmax.f32 %v1963, 0.0
        %v2393 = vmax.f32 %v1966, 0.0
        %v2394 = vmax.f32 %v1969, 0.0
        %v2395 = vmax.f32 %v1972, 0.0
        %v2396 = vmax.f32 %v1975, 0.0
        %v2397 = vmax.f32 %v1978, 0.0
        %v2398 = vmax.f32 %v1981, 0.0
        %v2399 = vmax.f32 %v1984, 0.0
        %v2400 = vmax.f32 %v1987, 0.0
        %v2401 = vmax.f32 %v1990, 0.0
        %v2402 = vmax.f32 %v1993, 0.0
        %v2403 = vmax.f32 %v1996, 0.0
        %v2404 = vmax.f32 %v1999, 0.0
        %v2405 = vmax.f32 %v2002, 0.0
        %v2406 = vmax.f32 %v2005, 0.0
        %v2407 = vmax.f32 %v2008, 0.0
        %v2408 = vmax.f32 %v2011, 0.0
        %v2409 = vmax.f32 %v2014, 0.0
        %v2410 = vmax.f32 %v2017, 0.0
        %v2411 = vmax.f32 %v2020, 0.0
        %v2412 = vmax.f32 %v2023, 0.0
        %v2413 = vmax.f32 %v2026, 0.0
        %v2414 = vmax.f32 %v2029, 0.0
        %v2415 = vmax.f32 %v2032, 0.0
        %v2416 = vmax.f32 %v2035, 0.0
        %v2417 = vmax.f32 %v2038, 0.0
        %v2418 = vmax.f32 %v2041, 0.0
        %v2419 = vmax.f32 %v2044, 0.0
        %v2420 = vmax.f32 %v2047, 0.0
        %v2421 = vmax.f32 %v2050, 0.0
        %v2422 = vmax.f32 %v2053, 0.0
        %v2423 = vmax.f32 %v2056, 0.0
        %v2424 = vmax.f32 %v2059, 0.0
        %v2425 = vmax.f32 %v2062, 0.0
        %v2426 = vmax.f32 %v2065, 0.0
        %v2427 = vmax.f32 %v2068, 0.0
        %v2428 = vmax.f32 %v2071, 0.0
        %v2429 = vmax.f32 %v2074, 0.0
        %v2430 = vmax.f32 %v2077, 0.0
        %v2431 = vmax.f32 %v2080, 0.0
        %v2432 = vmax.f32 %v2083, 0.0
        %v2433 = vmax.f32 %v2086, 0.0
        %v2434 = vmax.f32 %v2089, 0.0
        %v2435 = vmax.f32 %v2092, 0.0
        %v2436 = vmax.f32 %v2095, 0.0
        %v2437 = vmax.f32 %v2098, 0.0
        %v2438 = vmax.f32 %v2101, 0.0
        %v2439 = vmax.f32 %v2104, 0.0
        %v2440 = vmax.f32 %v2107, 0.0
        %v2441 = vmax.f32 %v2110, 0.0
        %v2442 = vmax.f32 %v2113, 0.0
        %v2443 = vmax.f32 %v2116, 0.0
        %v2444 = vmax.f32 %v2119, 0.0
        %v2445 = vmax.f32 %v2122, 0.0
        %v2446 = vmax.f32 %v2125, 0.0
        %v2447 = vmax.f32 %v2128, 0.0
        %v2448 = vmax.f32 %v2131, 0.0
        %v2449 = vmax.f32 %v2134, 0.0
        %v2450 = vmax.f32 %v2137, 0.0
        %v2451 = vmax.f32 %v2140, 0.0
        %v2452 = vmax.f32 %v2143, 0.0
        %v2453 = vmax.f32 %v2146, 0.0
        %v2454 = vmax.f32 %v2149, 0.0
        %v2455 = vmax.f32 %v2152, 0.0
        %v2456 = vmax.f32 %v2155, 0.0
        %v2457 = vmax.f32 %v2158, 0.0
        %v2458 = vmax.f32 %v2161, 0.0
        %v2459 = vmax.f32 %v2164, 0.0
        %v2460 = vmax.f32 %v2167, 0.0
        %v2461 = vmax.f32 %v2170, 0.0
        %v2462 = vmax.f32 %v2173, 0.0
        %v2463 = vmax.f32 %v2176, 0.0
        %v2464 = vmax.f32 %v2179, 0.0
        %v2465 = vmax.f32 %v2182, 0.0
        %v2466 = vmax.f32 %v2185, 0.0
        %v2467 = vmax.f32 %v2188, 0.0
        %v2468 = vmax.f32 %v2191, 0.0
        %v2469 = vmax.f32 %v2194, 0.0
        %v2470 = vmax.f32 %v2197, 0.0
        %v2471 = vmax.f32 %v2200, 0.0
        %v2472 = vmax.f32 %v2203, 0.0
        %v2473 = vmax.f32 %v2206, 0.0
        %v2474 = vmax.f32 %v2209, 0.0
        %v2475 = vmax.f32 %v2212, 0.0
        %v2476 = vmax.f32 %v2215, 0.0
        %v2477 = vmax.f32 %v2218, 0.0
        %v2478 = vmax.f32 %v2221, 0.0
        %v2479 = vadd.f32 %v2223, %v2224
        %v2480 = vadd.f32 %v2479, %v2225
        %v2481 = vadd.f32 %v2480, %v2226
        %v2482 = vadd.f32 %v2481, %v2227
        %v2483 = vadd.f32 %v2482, %v2228
        %v2484 = vadd.f32 %v2483, %v2229
        %v2485 = vadd.f32 %v2484, %v2230
        %v2486 = vadd.f32 %v2485, %v2231
        %v2487 = vadd.f32 %v2486, %v2232
        %v2488 = vadd.f32 %v2487, %v2233
        %v2489 = vadd.f32 %v2488, %v2234
        %v2490 = vadd.f32 %v2489, %v2235
        %v2491 = vadd.f32 %v2490, %v2236
        %v2492 = vadd.f32 %v2491, %v2237
        %v2493 = vadd.f32 %v2492, %v2238
        %v2494 = vadd.f32 %v2493, %v2239
        %v2495 = vadd.f32 %v2494, %v2240
        %v2496 = vadd.f32 %v2495, %v2241
        %v2497 = vadd.f32 %v2496, %v2242
        %v2498 = vadd.f32 %v2497, %v2243
        %v2499 = vadd.f32 %v2498, %v2244
        %v2500 = vadd.f32 %v2499, %v2245
        %v2501 = vadd.f32 %v2500, %v2246
        %v2502 = vadd.f32 %v2501, %v2247
        %v2503 = vadd.f32 %v2502, %v2248
        %v2504 = vadd.f32 %v2503, %v2249
        %v2505 = vadd.f32 %v2504, %v2250
        %v2506 = vadd.f32 %v2505, %v2251
        %v2507 = vadd.f32 %v2506, %v2252
        %v2508 = vadd.f32 %v2507, %v2253
        %v2509 = vadd.f32 %v2508, %v2254
        %v2510 = vrot.slane %v2509, 4
        %v2511 = vadd.f32 %v2509, %v2510
        %v2512 = vrot.slane %v2511, 2
        %v2513 = vadd.f32 %v2511, %v2512
        %v2514 = vrot.slane %v2513, 1
        %v2515 = vadd.f32 %v2513, %v2514
        %v2516 = vadd.f32 %v2255, %v2256
        %v2517 = vadd.f32 %v2516, %v2257
        %v2518 = vadd.f32 %v2517, %v2258
        %v2519 = vadd.f32 %v2518, %v2259
        %v2520 = vadd.f32 %v2519, %v2260
        %v2521 = vadd.f32 %v2520, %v2261
        %v2522 = vadd.f32 %v2521, %v2262
        %v2523 = vadd.f32 %v2522, %v2263
        %v2524 = vadd.f32 %v2523, %v2264
        %v2525 = vadd.f32 %v2524, %v2265
        %v2526 = vadd.f32 %v2525, %v2266
        %v2527 = vadd.f32 %v2526, %v2267
        %v2528 = vadd.f32 %v2527, %v2268
        %v2529 = vadd.f32 %v2528, %v2269
        %v2530 = vadd.f32 %v2529, %v2270
        %v2531 = vadd.f32 %v2530, %v2271
        %v2532 = vadd.f32 %v2531, %v2272
        %v2533 = vadd.f32 %v2532, %v2273
        %v2534 = vadd.f32 %v2533, %v2274
        %v2535 = vadd.f32 %v2534, %v2275
        %v2536 = vadd.f32 %v2535, %v2276
        %v2537 = vadd.f32 %v2536, %v2277
        %v2538 = vadd.f32 %v2537, %v2278
        %v2539 = vadd.f32 %v2538, %v2279
        %v2540 = vadd.f32 %v2539, %v2280
        %v2541 = vadd.f32 %v2540, %v2281
        %v2542 = vadd.f32 %v2541, %v2282
        %v2543 = vadd.f32 %v2542, %v2283
        %v2544 = vadd.f32 %v2543, %v2284
        %v2545 = vadd.f32 %v2544, %v2285
        %v2546 = vadd.f32 %v2545, %v2286
        %v2547 = vrot.slane %v2546, 4
        %v2548 = vadd.f32 %v2546, %v2547
        %v2549 = vrot.slane %v2548, 2
        %v2550 = vadd.f32 %v2548, %v2549
        %v2551 = vrot.slane %v2550, 1
        %v2552 = vadd.f32 %v2550, %v2551
        %v2553 = vadd.f32 %v2287, %v2288
        %v2554 = vadd.f32 %v2553, %v2289
        %v2555 = vadd.f32 %v2554, %v2290
        %v2556 = vadd.f32 %v2555, %v2291
        %v2557 = vadd.f32 %v2556, %v2292
        %v2558 = vadd.f32 %v2557, %v2293
        %v2559 = vadd.f32 %v2558, %v2294
        %v2560 = vadd.f32 %v2559, %v2295
        %v2561 = vadd.f32 %v2560, %v2296
        %v2562 = vadd.f32 %v2561, %v2297
        %v2563 = vadd.f32 %v2562, %v2298
        %v2564 = vadd.f32 %v2563, %v2299
        %v2565 = vadd.f32 %v2564, %v2300
        %v2566 = vadd.f32 %v2565, %v2301
        %v2567 = vadd.f32 %v2566, %v2302
        %v2568 = vadd.f32 %v2567, %v2303
        %v2569 = vadd.f32 %v2568, %v2304
        %v2570 = vadd.f32 %v2569, %v2305
        %v2571 = vadd.f32 %v2570, %v2306
        %v2572 = vadd.f32 %v2571, %v2307
        %v2573 = vadd.f32 %v2572, %v2308
        %v2574 = vadd.f32 %v2573, %v2309
        %v2575 = vadd.f32 %v2574, %v2310
        %v2576 = vadd.f32 %v2575, %v2311
        %v2577 = vadd.f32 %v2576, %v2312
        %v2578 = vadd.f32 %v2577, %v2313
        %v2579 = vadd.f32 %v2578, %v2314
        %v2580 = vadd.f32 %v2579, %v2315
        %v2581 = vadd.f32 %v2580, %v2316
        %v2582 = vadd.f32 %v2581, %v2317
        %v2583 = vadd.f32 %v2582, %v2318
        %v2584 = vrot.slane %v2583, 4
        %v2585 = vadd.f32 %v2583, %v2584
        %v2586 = vrot.slane %v2585, 2
        %v2587 = vadd.f32 %v2585, %v2586
        %v2588 = vrot.slane %v2587, 1
        %v2589 = vadd.f32 %v2587, %v2588
        %v2590 = vadd.f32 %v2319, %v2320
        %v2591 = vadd.f32 %v2590, %v2321
        %v2592 = vadd.f32 %v2591, %v2322
        %v2593 = vadd.f32 %v2592, %v2323
        %v2594 = vadd.f32 %v2593, %v2324
        %v2595 = vadd.f32 %v2594, %v2325
        %v2596 = vadd.f32 %v2595, %v2326
        %v2597 = vadd.f32 %v2596, %v2327
        %v2598 = vadd.f32 %v2597, %v2328
        %v2599 = vadd.f32 %v2598, %v2329
        %v2600 = vadd.f32 %v2599, %v2330
        %v2601 = vadd.f32 %v2600, %v2331
        %v2602 = vadd.f32 %v2601, %v2332
        %v2603 = vadd.f32 %v2602, %v2333
        %v2604 = vadd.f32 %v2603, %v2334
        %v2605 = vadd.f32 %v2604, %v2335
        %v2606 = vadd.f32 %v2605, %v2336
        %v2607 = vadd.f32 %v2606, %v2337
        %v2608 = vadd.f32 %v2607, %v2338
        %v2609 = vadd.f32 %v2608, %v2339
        %v2610 = vadd.f32 %v2609, %v2340
        %v2611 = vadd.f32 %v2610, %v2341
        %v2612 = vadd.f32 %v2611, %v2342
        %v2613 = vadd.f32 %v2612, %v2343
        %v2614 = vadd.f32 %v2613, %v2344
        %v2615 = vadd.f32 %v2614, %v2345
        %v2616 = vadd.f32 %v2615, %v2346
        %v2617 = vadd.f32 %v2616, %v2347
        %v2618 = vadd.f32 %v2617, %v2348
        %v2619 = vadd.f32 %v2618, %v2349
        %v2620 = vadd.f32 %v2619, %v2350
        %v2621 = vrot.slane %v2620, 4
        %v2622 = vadd.f32 %v2620, %v2621
        %v2623 = vrot.slane %v2622, 2
        %v2624 = vadd.f32 %v2622, %v2623
        %v2625 = vrot.slane %v2624, 1
        %v2626 = vadd.f32 %v2624, %v2625
        %v2627 = vadd.f32 %v2351, %v2352
        %v2628 = vadd.f32 %v2627, %v2353
        %v2629 = vadd.f32 %v2628, %v2354
        %v2630 = vadd.f32 %v2629, %v2355
        %v2631 = vadd.f32 %v2630, %v2356
        %v2632 = vadd.f32 %v2631, %v2357
        %v2633 = vadd.f32 %v2632, %v2358
        %v2634 = vadd.f32 %v2633, %v2359
        %v2635 = vadd.f32 %v2634, %v2360
        %v2636 = vadd.f32 %v2635, %v2361
        %v2637 = vadd.f32 %v2636, %v2362
        %v2638 = vadd.f32 %v2637, %v2363
        %v2639 = vadd.f32 %v2638, %v2364
        %v2640 = vadd.f32 %v2639, %v2365
        %v2641 = vadd.f32 %v2640, %v2366
        %v2642 = vadd.f32 %v2641, %v2367
        %v2643 = vadd.f32 %v2642, %v2368
        %v2644 = vadd.f32 %v2643, %v2369
        %v2645 = vadd.f32 %v2644, %v2370
        %v2646 = vadd.f32 %v2645, %v2371
        %v2647 = vadd.f32 %v2646, %v2372
        %v2648 = vadd.f32 %v2647, %v2373
        %v2649 = vadd.f32 %v2648, %v2374
        %v2650 = vadd.f32 %v2649, %v2375
        %v2651 = vadd.f32 %v2650, %v2376
        %v2652 = vadd.f32 %v2651, %v2377
        %v2653 = vadd.f32 %v2652, %v2378
        %v2654 = vadd.f32 %v2653, %v2379
        %v2655 = vadd.f32 %v2654, %v2380
        %v2656 = vadd.f32 %v2655, %v2381
        %v2657 = vadd.f32 %v2656, %v2382
        %v2658 = vrot.slane %v2657, 4
        %v2659 = vadd.f32 %v2657, %v2658
        %v2660 = vrot.slane %v2659, 2
        %v2661 = vadd.f32 %v2659, %v2660
        %v2662 = vrot.slane %v2661, 1
        %v2663 = vadd.f32 %v2661, %v2662
        %v2664 = vadd.f32 %v2383, %v2384
        %v2665 = vadd.f32 %v2664, %v2385
        %v2666 = vadd.f32 %v2665, %v2386
        %v2667 = vadd.f32 %v2666, %v2387
        %v2668 = vadd.f32 %v2667, %v2388
        %v2669 = vadd.f32 %v2668, %v2389
        %v2670 = vadd.f32 %v2669, %v2390
        %v2671 = vadd.f32 %v2670, %v2391
        %v2672 = vadd.f32 %v2671, %v2392
        %v2673 = vadd.f32 %v2672, %v2393
        %v2674 = vadd.f32 %v2673, %v2394
        %v2675 = vadd.f32 %v2674, %v2395
        %v2676 = vadd.f32 %v2675, %v2396
        %v2677 = vadd.f32 %v2676, %v2397
        %v2678 = vadd.f32 %v2677, %v2398
        %v2679 = vadd.f32 %v2678, %v2399
        %v2680 = vadd.f32 %v2679, %v2400
        %v2681 = vadd.f32 %v2680, %v2401
        %v2682 = vadd.f32 %v2681, %v2402
        %v2683 = vadd.f32 %v2682, %v2403
        %v2684 = vadd.f32 %v2683, %v2404
        %v2685 = vadd.f32 %v2684, %v2405
        %v2686 = vadd.f32 %v2685, %v2406
        %v2687 = vadd.f32 %v2686, %v2407
        %v2688 = vadd.f32 %v2687, %v2408
        %v2689 = vadd.f32 %v2688, %v2409
        %v2690 = vadd.f32 %v2689, %v2410
        %v2691 = vadd.f32 %v2690, %v2411
        %v2692 = vadd.f32 %v2691, %v2412
        %v2693 = vadd.f32 %v2692, %v2413
        %v2694 = vadd.f32 %v2693, %v2414
        %v2695 = vrot.slane %v2694, 4
        %v2696 = vadd.f32 %v2694, %v2695
        %v2697 = vrot.slane %v2696, 2
        %v2698 = vadd.f32 %v2696, %v2697
        %v2699 = vrot.slane %v2698, 1
        %v2700 = vadd.f32 %v2698, %v2699
        %v2701 = vadd.f32 %v2415, %v2416
        %v2702 = vadd.f32 %v2701, %v2417
        %v2703 = vadd.f32 %v2702, %v2418
        %v2704 = vadd.f32 %v2703, %v2419
        %v2705 = vadd.f32 %v2704, %v2420
        %v2706 = vadd.f32 %v2705, %v2421
        %v2707 = vadd.f32 %v2706, %v2422
        %v2708 = vadd.f32 %v2707, %v2423
        %v2709 = vadd.f32 %v2708, %v2424
        %v2710 = vadd.f32 %v2709, %v2425
        %v2711 = vadd.f32 %v2710, %v2426
        %v2712 = vadd.f32 %v2711, %v2427
        %v2713 = vadd.f32 %v2712, %v2428
        %v2714 = vadd.f32 %v2713, %v2429
        %v2715 = vadd.f32 %v2714, %v2430
        %v2716 = vadd.f32 %v2715, %v2431
        %v2717 = vadd.f32 %v2716, %v2432
        %v2718 = vadd.f32 %v2717, %v2433
        %v2719 = vadd.f32 %v2718, %v2434
        %v2720 = vadd.f32 %v2719, %v2435
        %v2721 = vadd.f32 %v2720, %v2436
        %v2722 = vadd.f32 %v2721, %v2437
        %v2723 = vadd.f32 %v2722, %v2438
        %v2724 = vadd.f32 %v2723, %v2439
        %v2725 = vadd.f32 %v2724, %v2440
        %v2726 = vadd.f32 %v2725, %v2441
        %v2727 = vadd.f32 %v2726, %v2442
        %v2728 = vadd.f32 %v2727, %v2443
        %v2729 = vadd.f32 %v2728, %v2444
        %v2730 = vadd.f32 %v2729, %v2445
        %v2731 = vadd.f32 %v2730, %v2446
        %v2732 = vrot.slane %v2731, 4
        %v2733 = vadd.f32 %v2731, %v2732
        %v2734 = vrot.slane %v2733, 2
        %v2735 = vadd.f32 %v2733, %v2734
        %v2736 = vrot.slane %v2735, 1
        %v2737 = vadd.f32 %v2735, %v2736
        %v2738 = vadd.f32 %v2447, %v2448
        %v2739 = vadd.f32 %v2738, %v2449
        %v2740 = vadd.f32 %v2739, %v2450
        %v2741 = vadd.f32 %v2740, %v2451
        %v2742 = vadd.f32 %v2741, %v2452
        %v2743 = vadd.f32 %v2742, %v2453
        %v2744 = vadd.f32 %v2743, %v2454
        %v2745 = vadd.f32 %v2744, %v2455
        %v2746 = vadd.f32 %v2745, %v2456
        %v2747 = vadd.f32 %v2746, %v2457
        %v2748 = vadd.f32 %v2747, %v2458
        %v2749 = vadd.f32 %v2748, %v2459
        %v2750 = vadd.f32 %v2749, %v2460
        %v2751 = vadd.f32 %v2750, %v2461
        %v2752 = vadd.f32 %v2751, %v2462
        %v2753 = vadd.f32 %v2752, %v2463
        %v2754 = vadd.f32 %v2753, %v2464
        %v2755 = vadd.f32 %v2754, %v2465
        %v2756 = vadd.f32 %v2755, %v2466
        %v2757 = vadd.f32 %v2756, %v2467
        %v2758 = vadd.f32 %v2757, %v2468
        %v2759 = vadd.f32 %v2758, %v2469
        %v2760 = vadd.f32 %v2759, %v2470
        %v2761 = vadd.f32 %v2760, %v2471
        %v2762 = vadd.f32 %v2761, %v2472
        %v2763 = vadd.f32 %v2762, %v2473
        %v2764 = vadd.f32 %v2763, %v2474
        %v2765 = vadd.f32 %v2764, %v2475
        %v2766 = vadd.f32 %v2765, %v2476
        %v2767 = vadd.f32 %v2766, %v2477
        %v2768 = vadd.f32 %v2767, %v2478
        %v2769 = vrot.slane %v2768, 4
        %v2770 = vadd.f32 %v2768, %v2769
        %v2771 = vrot.slane %v2770, 2
        %v2772 = vadd.f32 %v2770, %v2771
        %v2773 = vrot.slane %v2772, 1
        %v2774 = vadd.f32 %v2772, %v2773
        %v2775 = vrcp.pop 256.0
        %v2776 = vmul.f32 256.0, %v2775
        %v2777 = vsub.f32 1.0, %v2776
        %v2778 = vmul.f32 %v2775, %v2777
        %v2779 = vadd.f32 %v2775, %v2778
        %vm2780 = vweird.f32 %v2775
        %v2781 = vsel %vm2780, %v2775, %v2779
        %v2782 = vmul.f32 %v2515, %v2781
        %v2783 = vmul.f32 %v2552, %v2781
        %v2784 = vmul.f32 %v2589, %v2781
        %v2785 = vmul.f32 %v2626, %v2781
        %v2786 = vmul.f32 %v2663, %v2781
        %v2787 = vmul.f32 %v2700, %v2781
        %v2788 = vmul.f32 %v2737, %v2781
        %v2789 = vmul.f32 %v2774, %v2781
        %v2790 = vld [vmem:[%s3] sm:$0xff]
        %v2791 = vld [vmem:[%s3 + $0x8] sm:$0xff]
        %v2792 = vld [vmem:[%s3 + $0x10] sm:$0xff]
        %v2793 = vld [vmem:[%s3 + $0x18] sm:$0xff]
        %v2794 = vld [vmem:[%s3 + $0x20] sm:$0xff]
        %v2795 = vld [vmem:[%s3 + $0x28] sm:$0xff]
        %v2796 = vld [vmem:[%s3 + $0x30] sm:$0xff]
        %v2797 = vld [vmem:[%s3 + $0x38] sm:$0xff]
        %v2798 = vld [vmem:[%s3 + $0x40] sm:$0xff]
        %v2799 = vld [vmem:[%s3 + $0x48] sm:$0xff]
        %v2800 = vld [vmem:[%s3 + $0x50] sm:$0xff]
        %v2801 = vld [vmem:[%s3 + $0x58] sm:$0xff]
        %v2802 = vld [vmem:[%s3 + $0x60] sm:$0xff]
        %v2803 = vld [vmem:[%s3 + $0x68] sm:$0xff]
        %v2804 = vld [vmem:[%s3 + $0x70] sm:$0xff]
        %v2805 = vld [vmem:[%s3 + $0x78] sm:$0xff]
        %v2806 = vld [vmem:[%s3 + $0x80] sm:$0xff]
        %v2807 = vld [vmem:[%s3 + $0x88] sm:$0xff]
        %v2808 = vld [vmem:[%s3 + $0x90] sm:$0xff]
        %v2809 = vld [vmem:[%s3 + $0x98] sm:$0xff]
        %v2810 = vld [vmem:[%s3 + $0xa0] sm:$0xff]
        %v2811 = vld [vmem:[%s3 + $0xa8] sm:$0xff]
        %v2812 = vld [vmem:[%s3 + $0xb0] sm:$0xff]
        %v2813 = vld [vmem:[%s3 + $0xb8] sm:$0xff]
        %v2814 = vld [vmem:[%s3 + $0xc0] sm:$0xff]
        %v2815 = vld [vmem:[%s3 + $0xc8] sm:$0xff]
        %v2816 = vld [vmem:[%s3 + $0xd0] sm:$0xff]
        %v2817 = vld [vmem:[%s3 + $0xd8] sm:$0xff]
        %v2818 = vld [vmem:[%s3 + $0xe0] sm:$0xff]
        %v2819 = vld [vmem:[%s3 + $0xe8] sm:$0xff]
        %v2820 = vld [vmem:[%s3 + $0xf0] sm:$0xff]
        %v2821 = vld [vmem:[%s3 + $0xf8] sm:$0xff]
        %v2822 = vld [vmem:[%s4] sm:$0x3]
        %v2824 = vperm.slane %v2822, 0
        %v2825 = vperm.slane %v2822, 1
        %vm2836 = vcmask 1041409
        %v2837 = vsel %vm2836, %v2783, %v2782
        %vm2838 = vcmask 1042434
        %v2839 = vsel %vm2838, %v2784, %v2837
        %vm2840 = vcmask 1043459
        %v2841 = vsel %vm2840, %v2785, %v2839
        %vm2842 = vcmask 1044484
        %v2843 = vsel %vm2842, %v2786, %v2841
        %vm2844 = vcmask 1045509
        %v2845 = vsel %vm2844, %v2787, %v2843
        %vm2846 = vcmask 1046534
        %v2847 = vsel %vm2846, %v2788, %v2845
        %vm2848 = vcmask 1047559
        %v2849 = vsel %vm2848, %v2789, %v2847
        %2851 = vmatpush.msra.mxu0 %v2820
        %2852 = vmatpush.msra.mxu0 %v2818
        %2853 = vmatpush.msra.mxu0 %v2816
        %2854 = vmatpush.msra.mxu0 %v2814
        %2855 = vmatpush.msra.mxu0 %v2812
        %2856 = vmatpush.msra.mxu0 %v2810
        %2857 = vmatpush.msra.mxu0 %v2808
        %2858 = vmatpush.msra.mxu0 %v2806
        %2859 = vmatpush.msra.mxu0 %v2804
        %2860 = vmatpush.msra.mxu0 %v2802
        %2861 = vmatpush.msra.mxu0 %v2800
        %2862 = vmatpush.msra.mxu0 %v2798
        %2863 = vmatpush.msra.mxu0 %v2796
        %2864 = vmatpush.msra.mxu0 %v2794
        %2865 = vmatpush.msra.mxu0 %v2792
        %2866 = vmatpush.msra.mxu0 %v2790
        %2867 = vmatmul.f32.gmra.mxu0 %v2849
        %v2868 = vpop.f32.mrf.mxu0
        %v2869 = vadd.f32 %v2824, %v2868
        %2870 = vdwg.mxu0
        %2871 = vmatpush.msra.mxu0 %v2821
        %2872 = vmatpush.msra.mxu0 %v2819
        %2873 = vmatpush.msra.mxu0 %v2817
        %2874 = vmatpush.msra.mxu0 %v2815
        %2875 = vmatpush.msra.mxu0 %v2813
        %2876 = vmatpush.msra.mxu0 %v2811
        %2877 = vmatpush.msra.mxu0 %v2809
        %2878 = vmatpush.msra.mxu0 %v2807
        %2879 = vmatpush.msra.mxu0 %v2805
        %2880 = vmatpush.msra.mxu0 %v2803
        %2881 = vmatpush.msra.mxu0 %v2801
        %2882 = vmatpush.msra.mxu0 %v2799
        %2883 = vmatpush.msra.mxu0 %v2797
        %2884 = vmatpush.msra.mxu0 %v2795
        %2885 = vmatpush.msra.mxu0 %v2793
        %2886 = vmatpush.msra.mxu0 %v2791
        %2887 = vmatmul.f32.gmra.mxu0 %v2849
        %v2888 = vpop.f32.mrf.mxu0
        %v2889 = vadd.f32 %v2825, %v2888
        %2890 = vdwg.mxu0
        %s2891 = smul.u32 %s24, 8
        %s2892 = sshra.s32 %s2891, 3
        %s2893 = sand.u32 %s2891, 7
        %s2894 = smul.u32 %s2892, 2
        %s2895 = smul.addr %s2894, 8
        %s2896 = scalar_lea.vmem [#allocation2], %s2895
        %2897 = vst [vmem:[%s2896] sm:$0xff] %v2869
        %2898 = vst [vmem:[%s2896 + $0x8] sm:$0xff] %v2889
        %p2899 = scmp.eq.s32.totalorder %s24, 1
        // Predicated region
        $region69: #{tpu_custom_call.1} parent=67 // pred_check
          %p2900 = pneg %p2899
        $region70: #{tpu_custom_call.1} parent=67 // pred_check_branch
          %2902 = sbr.rel (%p2900) target = $region72
        $region71: #{tpu_custom_call.1} parent=67 // pred_region
          %v2903 = vld [vmem:[#allocation2] sm:$0xff]
          %v2904 = vld [vmem:[#allocation2 + $0x8] sm:$0xff]
          %v2905 = vld [vmem:[#allocation2 + $0x10] sm:$0xff]
          %v2906 = vld [vmem:[#allocation2 + $0x18] sm:$0xff]
          %v2907 = vld [vmem:[%s5] sm:$0x3f]
          %vm2908 = vcmask 130048
          %v2910 = vsel %vm2908, %v2907, 0
          %2912 = vmatpush.msra.mxu0 0.0
          %2913 = vmatpush.msra.mxu0 0.0
          %2914 = vmatpush.msra.mxu0 0.0
          %2915 = vmatpush.msra.mxu0 0.0
          %2916 = vmatpush.msra.mxu0 0.0
          %2917 = vmatpush.msra.mxu0 0.0
          %2918 = vmatpush.msra.mxu0 0.0
          %2919 = vmatpush.msra.mxu0 0.0
          %2920 = vmatpush.msra.mxu0 0.0
          %2921 = vmatpush.msra.mxu0 0.0
          %2922 = vmatpush.msra.mxu0 0.0
          %2923 = vmatpush.msra.mxu0 0.0
          %2924 = vmatpush.msra.mxu0 0.0
          %2925 = vmatpush.msra.mxu0 0.0
          %2926 = vmatpush.msra.mxu0 %v2905
          %2927 = vmatpush.msra.mxu0 %v2903
          %2928 = vmatmul.f32.gmra.mxu0 %v2910
          %v2929 = vpop.f32.mrf.mxu0
          %v2930 = vadd.f32 0.0, %v2929
          %2931 = vdwg.mxu0
          %2932 = vmatpush.msra.mxu0 0.0
          %2933 = vmatpush.msra.mxu0 0.0
          %2934 = vmatpush.msra.mxu0 0.0
          %2935 = vmatpush.msra.mxu0 0.0
          %2936 = vmatpush.msra.mxu0 0.0
          %2937 = vmatpush.msra.mxu0 0.0
          %2938 = vmatpush.msra.mxu0 0.0
          %2939 = vmatpush.msra.mxu0 0.0
          %2940 = vmatpush.msra.mxu0 0.0
          %2941 = vmatpush.msra.mxu0 0.0
          %2942 = vmatpush.msra.mxu0 0.0
          %2943 = vmatpush.msra.mxu0 0.0
          %2944 = vmatpush.msra.mxu0 0.0
          %2945 = vmatpush.msra.mxu0 0.0
          %2946 = vmatpush.msra.mxu0 %v2906
          %2947 = vmatpush.msra.mxu0 %v2904
          %2948 = vmatmul.f32.gmra.mxu0 %v2910
          %v2949 = vpop.f32.mrf.mxu0
          %v2950 = vadd.f32 0.0, %v2949
          %2951 = vdwg.mxu0
          %v2952 = vld [vmem:[%s6] sm:$0x3f]
          %v2954 = vsel %vm2908, %v2952, 0
          %2956 = vmatpush.msra.mxu0 0.0
          %2957 = vmatpush.msra.mxu0 0.0
          %2958 = vmatpush.msra.mxu0 0.0
          %2959 = vmatpush.msra.mxu0 0.0
          %2960 = vmatpush.msra.mxu0 0.0
          %2961 = vmatpush.msra.mxu0 0.0
          %2962 = vmatpush.msra.mxu0 0.0
          %2963 = vmatpush.msra.mxu0 0.0
          %2964 = vmatpush.msra.mxu0 0.0
          %2965 = vmatpush.msra.mxu0 0.0
          %2966 = vmatpush.msra.mxu0 0.0
          %2967 = vmatpush.msra.mxu0 0.0
          %2968 = vmatpush.msra.mxu0 0.0
          %2969 = vmatpush.msra.mxu0 0.0
          %2970 = vmatpush.msra.mxu0 %v2905
          %2971 = vmatpush.msra.mxu0 %v2903
          %2972 = vmatmul.f32.gmra.mxu0 %v2954
          %v2973 = vpop.f32.mrf.mxu0
          %v2974 = vadd.f32 0.0, %v2973
          %2975 = vdwg.mxu0
          %2976 = vmatpush.msra.mxu0 0.0
          %2977 = vmatpush.msra.mxu0 0.0
          %2978 = vmatpush.msra.mxu0 0.0
          %2979 = vmatpush.msra.mxu0 0.0
          %2980 = vmatpush.msra.mxu0 0.0
          %2981 = vmatpush.msra.mxu0 0.0
          %2982 = vmatpush.msra.mxu0 0.0
          %2983 = vmatpush.msra.mxu0 0.0
          %2984 = vmatpush.msra.mxu0 0.0
          %2985 = vmatpush.msra.mxu0 0.0
          %2986 = vmatpush.msra.mxu0 0.0
          %2987 = vmatpush.msra.mxu0 0.0
          %2988 = vmatpush.msra.mxu0 0.0
          %2989 = vmatpush.msra.mxu0 0.0
          %2990 = vmatpush.msra.mxu0 %v2906
          %2991 = vmatpush.msra.mxu0 %v2904
          %2992 = vmatmul.f32.gmra.mxu0 %v2954
          %v2993 = vpop.f32.mrf.mxu0
          %v2994 = vadd.f32 0.0, %v2993
          %2995 = vdwg.mxu0
          %v2996 = vld [vmem:[%s7] sm:$0xff]
          %v2997 = vld [vmem:[%s7 + $0x8] sm:$0xff]
          %v2998 = vld [vmem:[%s7 + $0x10] sm:$0xff]
          %v2999 = vld [vmem:[%s7 + $0x18] sm:$0xff]
          %v3000 = vld [vmem:[%s7 + $0x20] sm:$0xff]
          %v3001 = vld [vmem:[%s7 + $0x28] sm:$0xff]
          %v3002 = vld [vmem:[%s7 + $0x30] sm:$0xff]
          %v3003 = vld [vmem:[%s7 + $0x38] sm:$0xff]
          %v3004 = vld [vmem:[%s7 + $0x40] sm:$0xff]
          %v3005 = vld [vmem:[%s7 + $0x48] sm:$0xff]
          %v3006 = vld [vmem:[%s7 + $0x50] sm:$0xff]
          %v3007 = vld [vmem:[%s7 + $0x58] sm:$0xff]
          %v3008 = vld [vmem:[%s7 + $0x60] sm:$0xff]
          %v3009 = vld [vmem:[%s7 + $0x68] sm:$0xff]
          %v3010 = vld [vmem:[%s7 + $0x70] sm:$0xff]
          %v3011 = vld [vmem:[%s7 + $0x78] sm:$0xff]
          %v3012 = vld [vmem:[%s7 + $0x80] sm:$0xff]
          %v3013 = vld [vmem:[%s7 + $0x88] sm:$0xff]
          %v3014 = vld [vmem:[%s7 + $0x90] sm:$0xff]
          %v3015 = vld [vmem:[%s7 + $0x98] sm:$0xff]
          %v3016 = vld [vmem:[%s7 + $0xa0] sm:$0xff]
          %v3017 = vld [vmem:[%s7 + $0xa8] sm:$0xff]
          %v3018 = vld [vmem:[%s7 + $0xb0] sm:$0xff]
          %v3019 = vld [vmem:[%s7 + $0xb8] sm:$0xff]
          %v3020 = vld [vmem:[%s7 + $0xc0] sm:$0xff]
          %v3021 = vld [vmem:[%s7 + $0xc8] sm:$0xff]
          %v3022 = vld [vmem:[%s7 + $0xd0] sm:$0xff]
          %v3023 = vld [vmem:[%s7 + $0xd8] sm:$0xff]
          %v3024 = vld [vmem:[%s7 + $0xe0] sm:$0xff]
          %v3025 = vld [vmem:[%s7 + $0xe8] sm:$0xff]
          %v3026 = vld [vmem:[%s7 + $0xf0] sm:$0xff]
          %v3027 = vld [vmem:[%s7 + $0xf8] sm:$0xff]
          %v3028 = vld [vmem:[%s7 + $0x100] sm:$0xff]
          %v3029 = vld [vmem:[%s7 + $0x108] sm:$0xff]
          %v3030 = vld [vmem:[%s7 + $0x110] sm:$0xff]
          %v3031 = vld [vmem:[%s7 + $0x118] sm:$0xff]
          %v3032 = vld [vmem:[%s7 + $0x120] sm:$0xff]
          %v3033 = vld [vmem:[%s7 + $0x128] sm:$0xff]
          %v3034 = vld [vmem:[%s7 + $0x130] sm:$0xff]
          %v3035 = vld [vmem:[%s7 + $0x138] sm:$0xff]
          %v3036 = vld [vmem:[%s7 + $0x140] sm:$0xff]
          %v3037 = vld [vmem:[%s7 + $0x148] sm:$0xff]
          %v3038 = vld [vmem:[%s7 + $0x150] sm:$0xff]
          %v3039 = vld [vmem:[%s7 + $0x158] sm:$0xff]
          %v3040 = vld [vmem:[%s7 + $0x160] sm:$0xff]
          %v3041 = vld [vmem:[%s7 + $0x168] sm:$0xff]
          %v3042 = vld [vmem:[%s7 + $0x170] sm:$0xff]
          %v3043 = vld [vmem:[%s7 + $0x178] sm:$0xff]
          %v3044 = vld [vmem:[%s7 + $0x180] sm:$0xff]
          %v3045 = vld [vmem:[%s7 + $0x188] sm:$0xff]
          %v3046 = vld [vmem:[%s7 + $0x190] sm:$0xff]
          %v3047 = vld [vmem:[%s7 + $0x198] sm:$0xff]
          %v3048 = vld [vmem:[%s7 + $0x1a0] sm:$0xff]
          %v3049 = vld [vmem:[%s7 + $0x1a8] sm:$0xff]
          %v3050 = vld [vmem:[%s7 + $0x1b0] sm:$0xff]
          %v3051 = vld [vmem:[%s7 + $0x1b8] sm:$0xff]
          %v3052 = vld [vmem:[%s7 + $0x1c0] sm:$0xff]
          %v3053 = vld [vmem:[%s7 + $0x1c8] sm:$0xff]
          %v3054 = vld [vmem:[%s7 + $0x1d0] sm:$0xff]
          %v3055 = vld [vmem:[%s7 + $0x1d8] sm:$0xff]
          %v3056 = vld [vmem:[%s7 + $0x1e0] sm:$0xff]
          %v3057 = vld [vmem:[%s7 + $0x1e8] sm:$0xff]
          %v3058 = vld [vmem:[%s7 + $0x1f0] sm:$0xff]
          %v3059 = vld [vmem:[%s7 + $0x1f8] sm:$0xff]
          %v3060 = vld [vmem:[%s7 + $0x200] sm:$0xff]
          %v3061 = vld [vmem:[%s7 + $0x208] sm:$0xff]
          %v3062 = vld [vmem:[%s7 + $0x210] sm:$0xff]
          %v3063 = vld [vmem:[%s7 + $0x218] sm:$0xff]
          %v3064 = vld [vmem:[%s7 + $0x220] sm:$0xff]
          %v3065 = vld [vmem:[%s7 + $0x228] sm:$0xff]
          %v3066 = vld [vmem:[%s7 + $0x230] sm:$0xff]
          %v3067 = vld [vmem:[%s7 + $0x238] sm:$0xff]
          %v3068 = vld [vmem:[%s7 + $0x240] sm:$0xff]
          %v3069 = vld [vmem:[%s7 + $0x248] sm:$0xff]
          %v3070 = vld [vmem:[%s7 + $0x250] sm:$0xff]
          %v3071 = vld [vmem:[%s7 + $0x258] sm:$0xff]
          %v3072 = vld [vmem:[%s7 + $0x260] sm:$0xff]
          %v3073 = vld [vmem:[%s7 + $0x268] sm:$0xff]
          %v3074 = vld [vmem:[%s7 + $0x270] sm:$0xff]
          %v3075 = vld [vmem:[%s7 + $0x278] sm:$0xff]
          %v3076 = vld [vmem:[%s7 + $0x280] sm:$0xff]
          %v3077 = vld [vmem:[%s7 + $0x288] sm:$0xff]
          %v3078 = vld [vmem:[%s7 + $0x290] sm:$0xff]
          %v3079 = vld [vmem:[%s7 + $0x298] sm:$0xff]
          %v3080 = vld [vmem:[%s7 + $0x2a0] sm:$0xff]
          %v3081 = vld [vmem:[%s7 + $0x2a8] sm:$0xff]
          %v3082 = vld [vmem:[%s7 + $0x2b0] sm:$0xff]
          %v3083 = vld [vmem:[%s7 + $0x2b8] sm:$0xff]
          %v3084 = vld [vmem:[%s7 + $0x2c0] sm:$0xff]
          %v3085 = vld [vmem:[%s7 + $0x2c8] sm:$0xff]
          %v3086 = vld [vmem:[%s7 + $0x2d0] sm:$0xff]
          %v3087 = vld [vmem:[%s7 + $0x2d8] sm:$0xff]
          %v3088 = vld [vmem:[%s7 + $0x2e0] sm:$0xff]
          %v3089 = vld [vmem:[%s7 + $0x2e8] sm:$0xff]
          %v3090 = vld [vmem:[%s7 + $0x2f0] sm:$0xff]
          %v3091 = vld [vmem:[%s7 + $0x2f8] sm:$0xff]
          %v3092 = vld [vmem:[%s7 + $0x300] sm:$0xff]
          %v3093 = vld [vmem:[%s7 + $0x308] sm:$0xff]
          %v3094 = vld [vmem:[%s7 + $0x310] sm:$0xff]
          %v3095 = vld [vmem:[%s7 + $0x318] sm:$0xff]
          %v3096 = vld [vmem:[%s7 + $0x320] sm:$0xff]
          %v3097 = vld [vmem:[%s7 + $0x328] sm:$0xff]
          %v3098 = vld [vmem:[%s7 + $0x330] sm:$0xff]
          %v3099 = vld [vmem:[%s7 + $0x338] sm:$0xff]
          %v3100 = vld [vmem:[%s7 + $0x340] sm:$0xff]
          %v3101 = vld [vmem:[%s7 + $0x348] sm:$0xff]
          %v3102 = vld [vmem:[%s7 + $0x350] sm:$0xff]
          %v3103 = vld [vmem:[%s7 + $0x358] sm:$0xff]
          %v3104 = vld [vmem:[%s7 + $0x360] sm:$0xff]
          %v3105 = vld [vmem:[%s7 + $0x368] sm:$0xff]
          %v3106 = vld [vmem:[%s7 + $0x370] sm:$0xff]
          %v3107 = vld [vmem:[%s7 + $0x378] sm:$0xff]
          %v3108 = vld [vmem:[%s7 + $0x380] sm:$0xff]
          %v3109 = vld [vmem:[%s7 + $0x388] sm:$0xff]
          %v3110 = vld [vmem:[%s7 + $0x390] sm:$0xff]
          %v3111 = vld [vmem:[%s7 + $0x398] sm:$0xff]
          %v3112 = vld [vmem:[%s7 + $0x3a0] sm:$0xff]
          %v3113 = vld [vmem:[%s7 + $0x3a8] sm:$0xff]
          %v3114 = vld [vmem:[%s7 + $0x3b0] sm:$0xff]
          %v3115 = vld [vmem:[%s7 + $0x3b8] sm:$0xff]
          %v3116 = vld [vmem:[%s7 + $0x3c0] sm:$0xff]
          %v3117 = vld [vmem:[%s7 + $0x3c8] sm:$0xff]
          %v3118 = vld [vmem:[%s7 + $0x3d0] sm:$0xff]
          %v3119 = vld [vmem:[%s7 + $0x3d8] sm:$0xff]
          %v3120 = vld [vmem:[%s7 + $0x3e0] sm:$0xff]
          %v3121 = vld [vmem:[%s7 + $0x3e8] sm:$0xff]
          %v3122 = vld [vmem:[%s7 + $0x3f0] sm:$0xff]
          %v3123 = vld [vmem:[%s7 + $0x3f8] sm:$0xff]
          %v3124 = vld [vmem:[%s8] sm:$0xff]
          %v3125 = vld [vmem:[%s8 + $0x8] sm:$0xff]
          %v3126 = vld [vmem:[%s8 + $0x10] sm:$0xff]
          %v3127 = vld [vmem:[%s8 + $0x18] sm:$0xff]
          %v3128 = vld [vmem:[%s8 + $0x20] sm:$0xff]
          %v3129 = vld [vmem:[%s8 + $0x28] sm:$0xff]
          %v3130 = vld [vmem:[%s8 + $0x30] sm:$0xff]
          %v3131 = vld [vmem:[%s8 + $0x38] sm:$0xff]
          %v3132 = vld [vmem:[%s8 + $0x40] sm:$0xff]
          %v3133 = vld [vmem:[%s8 + $0x48] sm:$0xff]
          %v3134 = vld [vmem:[%s8 + $0x50] sm:$0xff]
          %v3135 = vld [vmem:[%s8 + $0x58] sm:$0xff]
          %v3136 = vld [vmem:[%s8 + $0x60] sm:$0xff]
          %v3137 = vld [vmem:[%s8 + $0x68] sm:$0xff]
          %v3138 = vld [vmem:[%s8 + $0x70] sm:$0xff]
          %v3139 = vld [vmem:[%s8 + $0x78] sm:$0xff]
          %v3140 = vld [vmem:[%s8 + $0x80] sm:$0xff]
          %v3141 = vld [vmem:[%s8 + $0x88] sm:$0xff]
          %v3142 = vld [vmem:[%s8 + $0x90] sm:$0xff]
          %v3143 = vld [vmem:[%s8 + $0x98] sm:$0xff]
          %v3144 = vld [vmem:[%s8 + $0xa0] sm:$0xff]
          %v3145 = vld [vmem:[%s8 + $0xa8] sm:$0xff]
          %v3146 = vld [vmem:[%s8 + $0xb0] sm:$0xff]
          %v3147 = vld [vmem:[%s8 + $0xb8] sm:$0xff]
          %v3148 = vld [vmem:[%s8 + $0xc0] sm:$0xff]
          %v3149 = vld [vmem:[%s8 + $0xc8] sm:$0xff]
          %v3150 = vld [vmem:[%s8 + $0xd0] sm:$0xff]
          %v3151 = vld [vmem:[%s8 + $0xd8] sm:$0xff]
          %v3152 = vld [vmem:[%s8 + $0xe0] sm:$0xff]
          %v3153 = vld [vmem:[%s8 + $0xe8] sm:$0xff]
          %v3154 = vld [vmem:[%s8 + $0xf0] sm:$0xff]
          %v3155 = vld [vmem:[%s8 + $0xf8] sm:$0xff]
          %v3156 = vld [vmem:[%s8 + $0x100] sm:$0xff]
          %v3157 = vld [vmem:[%s8 + $0x108] sm:$0xff]
          %v3158 = vld [vmem:[%s8 + $0x110] sm:$0xff]
          %v3159 = vld [vmem:[%s8 + $0x118] sm:$0xff]
          %v3160 = vld [vmem:[%s8 + $0x120] sm:$0xff]
          %v3161 = vld [vmem:[%s8 + $0x128] sm:$0xff]
          %v3162 = vld [vmem:[%s8 + $0x130] sm:$0xff]
          %v3163 = vld [vmem:[%s8 + $0x138] sm:$0xff]
          %v3164 = vld [vmem:[%s8 + $0x140] sm:$0xff]
          %v3165 = vld [vmem:[%s8 + $0x148] sm:$0xff]
          %v3166 = vld [vmem:[%s8 + $0x150] sm:$0xff]
          %v3167 = vld [vmem:[%s8 + $0x158] sm:$0xff]
          %v3168 = vld [vmem:[%s8 + $0x160] sm:$0xff]
          %v3169 = vld [vmem:[%s8 + $0x168] sm:$0xff]
          %v3170 = vld [vmem:[%s8 + $0x170] sm:$0xff]
          %v3171 = vld [vmem:[%s8 + $0x178] sm:$0xff]
          %v3172 = vld [vmem:[%s8 + $0x180] sm:$0xff]
          %v3173 = vld [vmem:[%s8 + $0x188] sm:$0xff]
          %v3174 = vld [vmem:[%s8 + $0x190] sm:$0xff]
          %v3175 = vld [vmem:[%s8 + $0x198] sm:$0xff]
          %v3176 = vld [vmem:[%s8 + $0x1a0] sm:$0xff]
          %v3177 = vld [vmem:[%s8 + $0x1a8] sm:$0xff]
          %v3178 = vld [vmem:[%s8 + $0x1b0] sm:$0xff]
          %v3179 = vld [vmem:[%s8 + $0x1b8] sm:$0xff]
          %v3180 = vld [vmem:[%s8 + $0x1c0] sm:$0xff]
          %v3181 = vld [vmem:[%s8 + $0x1c8] sm:$0xff]
          %v3182 = vld [vmem:[%s8 + $0x1d0] sm:$0xff]
          %v3183 = vld [vmem:[%s8 + $0x1d8] sm:$0xff]
          %v3184 = vld [vmem:[%s8 + $0x1e0] sm:$0xff]
          %v3185 = vld [vmem:[%s8 + $0x1e8] sm:$0xff]
          %v3186 = vld [vmem:[%s8 + $0x1f0] sm:$0xff]
          %v3187 = vld [vmem:[%s8 + $0x1f8] sm:$0xff]
          %v3188 = vld [vmem:[%s8 + $0x200] sm:$0xff]
          %v3189 = vld [vmem:[%s8 + $0x208] sm:$0xff]
          %v3190 = vld [vmem:[%s8 + $0x210] sm:$0xff]
          %v3191 = vld [vmem:[%s8 + $0x218] sm:$0xff]
          %v3192 = vld [vmem:[%s8 + $0x220] sm:$0xff]
          %v3193 = vld [vmem:[%s8 + $0x228] sm:$0xff]
          %v3194 = vld [vmem:[%s8 + $0x230] sm:$0xff]
          %v3195 = vld [vmem:[%s8 + $0x238] sm:$0xff]
          %v3196 = vld [vmem:[%s8 + $0x240] sm:$0xff]
          %v3197 = vld [vmem:[%s8 + $0x248] sm:$0xff]
          %v3198 = vld [vmem:[%s8 + $0x250] sm:$0xff]
          %v3199 = vld [vmem:[%s8 + $0x258] sm:$0xff]
          %v3200 = vld [vmem:[%s8 + $0x260] sm:$0xff]
          %v3201 = vld [vmem:[%s8 + $0x268] sm:$0xff]
          %v3202 = vld [vmem:[%s8 + $0x270] sm:$0xff]
          %v3203 = vld [vmem:[%s8 + $0x278] sm:$0xff]
          %v3204 = vld [vmem:[%s8 + $0x280] sm:$0xff]
          %v3205 = vld [vmem:[%s8 + $0x288] sm:$0xff]
          %v3206 = vld [vmem:[%s8 + $0x290] sm:$0xff]
          %v3207 = vld [vmem:[%s8 + $0x298] sm:$0xff]
          %v3208 = vld [vmem:[%s8 + $0x2a0] sm:$0xff]
          %v3209 = vld [vmem:[%s8 + $0x2a8] sm:$0xff]
          %v3210 = vld [vmem:[%s8 + $0x2b0] sm:$0xff]
          %v3211 = vld [vmem:[%s8 + $0x2b8] sm:$0xff]
          %v3212 = vld [vmem:[%s8 + $0x2c0] sm:$0xff]
          %v3213 = vld [vmem:[%s8 + $0x2c8] sm:$0xff]
          %v3214 = vld [vmem:[%s8 + $0x2d0] sm:$0xff]
          %v3215 = vld [vmem:[%s8 + $0x2d8] sm:$0xff]
          %v3216 = vld [vmem:[%s8 + $0x2e0] sm:$0xff]
          %v3217 = vld [vmem:[%s8 + $0x2e8] sm:$0xff]
          %v3218 = vld [vmem:[%s8 + $0x2f0] sm:$0xff]
          %v3219 = vld [vmem:[%s8 + $0x2f8] sm:$0xff]
          %v3220 = vld [vmem:[%s8 + $0x300] sm:$0xff]
          %v3221 = vld [vmem:[%s8 + $0x308] sm:$0xff]
          %v3222 = vld [vmem:[%s8 + $0x310] sm:$0xff]
          %v3223 = vld [vmem:[%s8 + $0x318] sm:$0xff]
          %v3224 = vld [vmem:[%s8 + $0x320] sm:$0xff]
          %v3225 = vld [vmem:[%s8 + $0x328] sm:$0xff]
          %v3226 = vld [vmem:[%s8 + $0x330] sm:$0xff]
          %v3227 = vld [vmem:[%s8 + $0x338] sm:$0xff]
          %v3228 = vld [vmem:[%s8 + $0x340] sm:$0xff]
          %v3229 = vld [vmem:[%s8 + $0x348] sm:$0xff]
          %v3230 = vld [vmem:[%s8 + $0x350] sm:$0xff]
          %v3231 = vld [vmem:[%s8 + $0x358] sm:$0xff]
          %v3232 = vld [vmem:[%s8 + $0x360] sm:$0xff]
          %v3233 = vld [vmem:[%s8 + $0x368] sm:$0xff]
          %v3234 = vld [vmem:[%s8 + $0x370] sm:$0xff]
          %v3235 = vld [vmem:[%s8 + $0x378] sm:$0xff]
          %v3236 = vld [vmem:[%s8 + $0x380] sm:$0xff]
          %v3237 = vld [vmem:[%s8 + $0x388] sm:$0xff]
          %v3238 = vld [vmem:[%s8 + $0x390] sm:$0xff]
          %v3239 = vld [vmem:[%s8 + $0x398] sm:$0xff]
          %v3240 = vld [vmem:[%s8 + $0x3a0] sm:$0xff]
          %v3241 = vld [vmem:[%s8 + $0x3a8] sm:$0xff]
          %v3242 = vld [vmem:[%s8 + $0x3b0] sm:$0xff]
          %v3243 = vld [vmem:[%s8 + $0x3b8] sm:$0xff]
          %v3244 = vld [vmem:[%s8 + $0x3c0] sm:$0xff]
          %v3245 = vld [vmem:[%s8 + $0x3c8] sm:$0xff]
          %v3246 = vld [vmem:[%s8 + $0x3d0] sm:$0xff]
          %v3247 = vld [vmem:[%s8 + $0x3d8] sm:$0xff]
          %v3248 = vld [vmem:[%s8 + $0x3e0] sm:$0xff]
          %v3249 = vld [vmem:[%s8 + $0x3e8] sm:$0xff]
          %v3250 = vld [vmem:[%s8 + $0x3f0] sm:$0xff]
          %v3251 = vld [vmem:[%s8 + $0x3f8] sm:$0xff]
          %3252 = vmatpush.msra.mxu0 %v3184
          %3253 = vmatpush.msra.mxu0 %v3180
          %3254 = vmatpush.msra.mxu0 %v3176
          %3255 = vmatpush.msra.mxu0 %v3172
          %3256 = vmatpush.msra.mxu0 %v3168
          %3257 = vmatpush.msra.mxu0 %v3164
          %3258 = vmatpush.msra.mxu0 %v3160
          %3259 = vmatpush.msra.mxu0 %v3156
          %3260 = vmatpush.msra.mxu0 %v3152
          %3261 = vmatpush.msra.mxu0 %v3148
          %3262 = vmatpush.msra.mxu0 %v3144
          %3263 = vmatpush.msra.mxu0 %v3140
          %3264 = vmatpush.msra.mxu0 %v3136
          %3265 = vmatpush.msra.mxu0 %v3132
          %3266 = vmatpush.msra.mxu0 %v3128
          %3267 = vmatpush.msra.mxu0 %v3124
          %3268 = vmatmul.f32.gmra.mxu0 %v2974
          %v3269 = vpop.f32.mrf.mxu0
          %v3270 = vadd.f32 0.0, %v3269
          %3271 = vdwg.mxu0
          %3272 = vmatpush.msra.mxu0 %v3248
          %3273 = vmatpush.msra.mxu0 %v3244
          %3274 = vmatpush.msra.mxu0 %v3240
          %3275 = vmatpush.msra.mxu0 %v3236
          %3276 = vmatpush.msra.mxu0 %v3232
          %3277 = vmatpush.msra.mxu0 %v3228
          %3278 = vmatpush.msra.mxu0 %v3224
          %3279 = vmatpush.msra.mxu0 %v3220
          %3280 = vmatpush.msra.mxu0 %v3216
          %3281 = vmatpush.msra.mxu0 %v3212
          %3282 = vmatpush.msra.mxu0 %v3208
          %3283 = vmatpush.msra.mxu0 %v3204
          %3284 = vmatpush.msra.mxu0 %v3200
          %3285 = vmatpush.msra.mxu0 %v3196
          %3286 = vmatpush.msra.mxu0 %v3192
          %3287 = vmatpush.msra.mxu0 %v3188
          %3288 = vmatmul.f32.gmra.mxu0 %v2994
          %v3289 = vpop.f32.mrf.mxu0
          %v3290 = vadd.f32 %v3270, %v3289
          %3291 = vdwg.mxu0
          %3292 = vmatpush.msra.mxu0 %v3185
          %3293 = vmatpush.msra.mxu0 %v3181
          %3294 = vmatpush.msra.mxu0 %v3177
          %3295 = vmatpush.msra.mxu0 %v3173
          %3296 = vmatpush.msra.mxu0 %v3169
          %3297 = vmatpush.msra.mxu0 %v3165
          %3298 = vmatpush.msra.mxu0 %v3161
          %3299 = vmatpush.msra.mxu0 %v3157
          %3300 = vmatpush.msra.mxu0 %v3153
          %3301 = vmatpush.msra.mxu0 %v3149
          %3302 = vmatpush.msra.mxu0 %v3145
          %3303 = vmatpush.msra.mxu0 %v3141
          %3304 = vmatpush.msra.mxu0 %v3137
          %3305 = vmatpush.msra.mxu0 %v3133
          %3306 = vmatpush.msra.mxu0 %v3129
          %3307 = vmatpush.msra.mxu0 %v3125
          %3308 = vmatmul.f32.gmra.mxu0 %v2974
          %v3309 = vpop.f32.mrf.mxu0
          %v3310 = vadd.f32 0.0, %v3309
          %3311 = vdwg.mxu0
          %3312 = vmatpush.msra.mxu0 %v3249
          %3313 = vmatpush.msra.mxu0 %v3245
          %3314 = vmatpush.msra.mxu0 %v3241
          %3315 = vmatpush.msra.mxu0 %v3237
          %3316 = vmatpush.msra.mxu0 %v3233
          %3317 = vmatpush.msra.mxu0 %v3229
          %3318 = vmatpush.msra.mxu0 %v3225
          %3319 = vmatpush.msra.mxu0 %v3221
          %3320 = vmatpush.msra.mxu0 %v3217
          %3321 = vmatpush.msra.mxu0 %v3213
          %3322 = vmatpush.msra.mxu0 %v3209
          %3323 = vmatpush.msra.mxu0 %v3205
          %3324 = vmatpush.msra.mxu0 %v3201
          %3325 = vmatpush.msra.mxu0 %v3197
          %3326 = vmatpush.msra.mxu0 %v3193
          %3327 = vmatpush.msra.mxu0 %v3189
          %3328 = vmatmul.f32.gmra.mxu0 %v2994
          %v3329 = vpop.f32.mrf.mxu0
          %v3330 = vadd.f32 %v3310, %v3329
          %3331 = vdwg.mxu0
          %3332 = vmatpush.msra.mxu0 %v3186
          %3333 = vmatpush.msra.mxu0 %v3182
          %3334 = vmatpush.msra.mxu0 %v3178
          %3335 = vmatpush.msra.mxu0 %v3174
          %3336 = vmatpush.msra.mxu0 %v3170
          %3337 = vmatpush.msra.mxu0 %v3166
          %3338 = vmatpush.msra.mxu0 %v3162
          %3339 = vmatpush.msra.mxu0 %v3158
          %3340 = vmatpush.msra.mxu0 %v3154
          %3341 = vmatpush.msra.mxu0 %v3150
          %3342 = vmatpush.msra.mxu0 %v3146
          %3343 = vmatpush.msra.mxu0 %v3142
          %3344 = vmatpush.msra.mxu0 %v3138
          %3345 = vmatpush.msra.mxu0 %v3134
          %3346 = vmatpush.msra.mxu0 %v3130
          %3347 = vmatpush.msra.mxu0 %v3126
          %3348 = vmatmul.f32.gmra.mxu0 %v2974
          %v3349 = vpop.f32.mrf.mxu0
          %v3350 = vadd.f32 0.0, %v3349
          %3351 = vdwg.mxu0
          %3352 = vmatpush.msra.mxu0 %v3250
          %3353 = vmatpush.msra.mxu0 %v3246
          %3354 = vmatpush.msra.mxu0 %v3242
          %3355 = vmatpush.msra.mxu0 %v3238
          %3356 = vmatpush.msra.mxu0 %v3234
          %3357 = vmatpush.msra.mxu0 %v3230
          %3358 = vmatpush.msra.mxu0 %v3226
          %3359 = vmatpush.msra.mxu0 %v3222
          %3360 = vmatpush.msra.mxu0 %v3218
          %3361 = vmatpush.msra.mxu0 %v3214
          %3362 = vmatpush.msra.mxu0 %v3210
          %3363 = vmatpush.msra.mxu0 %v3206
          %3364 = vmatpush.msra.mxu0 %v3202
          %3365 = vmatpush.msra.mxu0 %v3198
          %3366 = vmatpush.msra.mxu0 %v3194
          %3367 = vmatpush.msra.mxu0 %v3190
          %3368 = vmatmul.f32.gmra.mxu0 %v2994
          %v3369 = vpop.f32.mrf.mxu0
          %v3370 = vadd.f32 %v3350, %v3369
          %3371 = vdwg.mxu0
          %3372 = vmatpush.msra.mxu0 %v3187
          %3373 = vmatpush.msra.mxu0 %v3183
          %3374 = vmatpush.msra.mxu0 %v3179
          %3375 = vmatpush.msra.mxu0 %v3175
          %3376 = vmatpush.msra.mxu0 %v3171
          %3377 = vmatpush.msra.mxu0 %v3167
          %3378 = vmatpush.msra.mxu0 %v3163
          %3379 = vmatpush.msra.mxu0 %v3159
          %3380 = vmatpush.msra.mxu0 %v3155
          %3381 = vmatpush.msra.mxu0 %v3151
          %3382 = vmatpush.msra.mxu0 %v3147
          %3383 = vmatpush.msra.mxu0 %v3143
          %3384 = vmatpush.msra.mxu0 %v3139
          %3385 = vmatpush.msra.mxu0 %v3135
          %3386 = vmatpush.msra.mxu0 %v3131
          %3387 = vmatpush.msra.mxu0 %v3127
          %3388 = vmatmul.f32.gmra.mxu0 %v2974
          %v3389 = vpop.f32.mrf.mxu0
          %v3390 = vadd.f32 0.0, %v3389
          %3391 = vdwg.mxu0
          %3392 = vmatpush.msra.mxu0 %v3251
          %3393 = vmatpush.msra.mxu0 %v3247
          %3394 = vmatpush.msra.mxu0 %v3243
          %3395 = vmatpush.msra.mxu0 %v3239
          %3396 = vmatpush.msra.mxu0 %v3235
          %3397 = vmatpush.msra.mxu0 %v3231
          %3398 = vmatpush.msra.mxu0 %v3227
          %3399 = vmatpush.msra.mxu0 %v3223
          %3400 = vmatpush.msra.mxu0 %v3219
          %3401 = vmatpush.msra.mxu0 %v3215
          %3402 = vmatpush.msra.mxu0 %v3211
          %3403 = vmatpush.msra.mxu0 %v3207
          %3404 = vmatpush.msra.mxu0 %v3203
          %3405 = vmatpush.msra.mxu0 %v3199
          %3406 = vmatpush.msra.mxu0 %v3195
          %3407 = vmatpush.msra.mxu0 %v3191
          %3408 = vmatmul.f32.gmra.mxu0 %v2994
          %v3409 = vpop.f32.mrf.mxu0
          %v3410 = vadd.f32 %v3390, %v3409
          %3411 = vdwg.mxu0
          %3412 = vmatpush.msra.mxu0 %v3056
          %3413 = vmatpush.msra.mxu0 %v3052
          %3414 = vmatpush.msra.mxu0 %v3048
          %3415 = vmatpush.msra.mxu0 %v3044
          %3416 = vmatpush.msra.mxu0 %v3040
          %3417 = vmatpush.msra.mxu0 %v3036
          %3418 = vmatpush.msra.mxu0 %v3032
          %3419 = vmatpush.msra.mxu0 %v3028
          %3420 = vmatpush.msra.mxu0 %v3024
          %3421 = vmatpush.msra.mxu0 %v3020
          %3422 = vmatpush.msra.mxu0 %v3016
          %3423 = vmatpush.msra.mxu0 %v3012
          %3424 = vmatpush.msra.mxu0 %v3008
          %3425 = vmatpush.msra.mxu0 %v3004
          %3426 = vmatpush.msra.mxu0 %v3000
          %3427 = vmatpush.msra.mxu0 %v2996
          %3428 = vmatmul.f32.gmra.mxu0 %v2930
          %v3429 = vpop.f32.mrf.mxu0
          %v3430 = vadd.f32 %v3290, %v3429
          %3431 = vdwg.mxu0
          %3432 = vmatpush.msra.mxu0 %v3120
          %3433 = vmatpush.msra.mxu0 %v3116
          %3434 = vmatpush.msra.mxu0 %v3112
          %3435 = vmatpush.msra.mxu0 %v3108
          %3436 = vmatpush.msra.mxu0 %v3104
          %3437 = vmatpush.msra.mxu0 %v3100
          %3438 = vmatpush.msra.mxu0 %v3096
          %3439 = vmatpush.msra.mxu0 %v3092
          %3440 = vmatpush.msra.mxu0 %v3088
          %3441 = vmatpush.msra.mxu0 %v3084
          %3442 = vmatpush.msra.mxu0 %v3080
          %3443 = vmatpush.msra.mxu0 %v3076
          %3444 = vmatpush.msra.mxu0 %v3072
          %3445 = vmatpush.msra.mxu0 %v3068
          %3446 = vmatpush.msra.mxu0 %v3064
          %3447 = vmatpush.msra.mxu0 %v3060
          %3448 = vmatmul.f32.gmra.mxu0 %v2950
          %v3449 = vpop.f32.mrf.mxu0
          %v3450 = vadd.f32 %v3430, %v3449
          %3451 = vdwg.mxu0
          %3452 = vmatpush.msra.mxu0 %v3057
          %3453 = vmatpush.msra.mxu0 %v3053
          %3454 = vmatpush.msra.mxu0 %v3049
          %3455 = vmatpush.msra.mxu0 %v3045
          %3456 = vmatpush.msra.mxu0 %v3041
          %3457 = vmatpush.msra.mxu0 %v3037
          %3458 = vmatpush.msra.mxu0 %v3033
          %3459 = vmatpush.msra.mxu0 %v3029
          %3460 = vmatpush.msra.mxu0 %v3025
          %3461 = vmatpush.msra.mxu0 %v3021
          %3462 = vmatpush.msra.mxu0 %v3017
          %3463 = vmatpush.msra.mxu0 %v3013
          %3464 = vmatpush.msra.mxu0 %v3009
          %3465 = vmatpush.msra.mxu0 %v3005
          %3466 = vmatpush.msra.mxu0 %v3001
          %3467 = vmatpush.msra.mxu0 %v2997
          %3468 = vmatmul.f32.gmra.mxu0 %v2930
          %v3469 = vpop.f32.mrf.mxu0
          %v3470 = vadd.f32 %v3330, %v3469
          %3471 = vdwg.mxu0
          %3472 = vmatpush.msra.mxu0 %v3121
          %3473 = vmatpush.msra.mxu0 %v3117
          %3474 = vmatpush.msra.mxu0 %v3113
          %3475 = vmatpush.msra.mxu0 %v3109
          %3476 = vmatpush.msra.mxu0 %v3105
          %3477 = vmatpush.msra.mxu0 %v3101
          %3478 = vmatpush.msra.mxu0 %v3097
          %3479 = vmatpush.msra.mxu0 %v3093
          %3480 = vmatpush.msra.mxu0 %v3089
          %3481 = vmatpush.msra.mxu0 %v3085
          %3482 = vmatpush.msra.mxu0 %v3081
          %3483 = vmatpush.msra.mxu0 %v3077
          %3484 = vmatpush.msra.mxu0 %v3073
          %3485 = vmatpush.msra.mxu0 %v3069
          %3486 = vmatpush.msra.mxu0 %v3065
          %3487 = vmatpush.msra.mxu0 %v3061
          %3488 = vmatmul.f32.gmra.mxu0 %v2950
          %v3489 = vpop.f32.mrf.mxu0
          %v3490 = vadd.f32 %v3470, %v3489
          %3491 = vdwg.mxu0
          %3492 = vmatpush.msra.mxu0 %v3058
          %3493 = vmatpush.msra.mxu0 %v3054
          %3494 = vmatpush.msra.mxu0 %v3050
          %3495 = vmatpush.msra.mxu0 %v3046
          %3496 = vmatpush.msra.mxu0 %v3042
          %3497 = vmatpush.msra.mxu0 %v3038
          %3498 = vmatpush.msra.mxu0 %v3034
          %3499 = vmatpush.msra.mxu0 %v3030
          %3500 = vmatpush.msra.mxu0 %v3026
          %3501 = vmatpush.msra.mxu0 %v3022
          %3502 = vmatpush.msra.mxu0 %v3018
          %3503 = vmatpush.msra.mxu0 %v3014
          %3504 = vmatpush.msra.mxu0 %v3010
          %3505 = vmatpush.msra.mxu0 %v3006
          %3506 = vmatpush.msra.mxu0 %v3002
          %3507 = vmatpush.msra.mxu0 %v2998
          %3508 = vmatmul.f32.gmra.mxu0 %v2930
          %v3509 = vpop.f32.mrf.mxu0
          %v3510 = vadd.f32 %v3370, %v3509
          %3511 = vdwg.mxu0
          %3512 = vmatpush.msra.mxu0 %v3122
          %3513 = vmatpush.msra.mxu0 %v3118
          %3514 = vmatpush.msra.mxu0 %v3114
          %3515 = vmatpush.msra.mxu0 %v3110
          %3516 = vmatpush.msra.mxu0 %v3106
          %3517 = vmatpush.msra.mxu0 %v3102
          %3518 = vmatpush.msra.mxu0 %v3098
          %3519 = vmatpush.msra.mxu0 %v3094
          %3520 = vmatpush.msra.mxu0 %v3090
          %3521 = vmatpush.msra.mxu0 %v3086
          %3522 = vmatpush.msra.mxu0 %v3082
          %3523 = vmatpush.msra.mxu0 %v3078
          %3524 = vmatpush.msra.mxu0 %v3074
          %3525 = vmatpush.msra.mxu0 %v3070
          %3526 = vmatpush.msra.mxu0 %v3066
          %3527 = vmatpush.msra.mxu0 %v3062
          %3528 = vmatmul.f32.gmra.mxu0 %v2950
          %v3529 = vpop.f32.mrf.mxu0
          %v3530 = vadd.f32 %v3510, %v3529
          %3531 = vdwg.mxu0
          %3532 = vmatpush.msra.mxu0 %v3059
          %3533 = vmatpush.msra.mxu0 %v3055
          %3534 = vmatpush.msra.mxu0 %v3051
          %3535 = vmatpush.msra.mxu0 %v3047
          %3536 = vmatpush.msra.mxu0 %v3043
          %3537 = vmatpush.msra.mxu0 %v3039
          %3538 = vmatpush.msra.mxu0 %v3035
          %3539 = vmatpush.msra.mxu0 %v3031
          %3540 = vmatpush.msra.mxu0 %v3027
          %3541 = vmatpush.msra.mxu0 %v3023
          %3542 = vmatpush.msra.mxu0 %v3019
          %3543 = vmatpush.msra.mxu0 %v3015
          %3544 = vmatpush.msra.mxu0 %v3011
          %3545 = vmatpush.msra.mxu0 %v3007
          %3546 = vmatpush.msra.mxu0 %v3003
          %3547 = vmatpush.msra.mxu0 %v2999
          %3548 = vmatmul.f32.gmra.mxu0 %v2930
          %v3549 = vpop.f32.mrf.mxu0
          %v3550 = vadd.f32 %v3410, %v3549
          %3551 = vdwg.mxu0
          %3552 = vmatpush.msra.mxu0 %v3123
          %3553 = vmatpush.msra.mxu0 %v3119
          %3554 = vmatpush.msra.mxu0 %v3115
          %3555 = vmatpush.msra.mxu0 %v3111
          %3556 = vmatpush.msra.mxu0 %v3107
          %3557 = vmatpush.msra.mxu0 %v3103
          %3558 = vmatpush.msra.mxu0 %v3099
          %3559 = vmatpush.msra.mxu0 %v3095
          %3560 = vmatpush.msra.mxu0 %v3091
          %3561 = vmatpush.msra.mxu0 %v3087
          %3562 = vmatpush.msra.mxu0 %v3083
          %3563 = vmatpush.msra.mxu0 %v3079
          %3564 = vmatpush.msra.mxu0 %v3075
          %3565 = vmatpush.msra.mxu0 %v3071
          %3566 = vmatpush.msra.mxu0 %v3067
          %3567 = vmatpush.msra.mxu0 %v3063
          %3568 = vmatmul.f32.gmra.mxu0 %v2950
          %v3569 = vpop.f32.mrf.mxu0
          %v3570 = vadd.f32 %v3550, %v3569
          %3571 = vdwg.mxu0
          %v3572 = vld [vmem:[%s9] sm:$0xf]
          %v3574 = vperm.slane %v3572, 0
          %v3575 = vperm.slane %v3572, 1
          %v3576 = vperm.slane %v3572, 2
          %v3577 = vperm.slane %v3572, 3
          %v3582 = vadd.f32 %v3450, %v3574
          %v3583 = vadd.f32 %v3490, %v3575
          %v3584 = vadd.f32 %v3530, %v3576
          %v3585 = vadd.f32 %v3570, %v3577
          %v3586 = vmax.f32 %v3582, 0.0
          %v3587 = vmax.f32 %v3583, 0.0
          %v3588 = vmax.f32 %v3584, 0.0
          %v3589 = vmax.f32 %v3585, 0.0
          %v3590 = vld [vmem:[%s10] sm:$0xff]
          %v3591 = vld [vmem:[%s10 + $0x8] sm:$0xff]
          %v3592 = vld [vmem:[%s10 + $0x10] sm:$0xff]
          %v3593 = vld [vmem:[%s10 + $0x18] sm:$0xff]
          %v3594 = vld [vmem:[%s10 + $0x20] sm:$0xff]
          %v3595 = vld [vmem:[%s10 + $0x28] sm:$0xff]
          %v3596 = vld [vmem:[%s10 + $0x30] sm:$0xff]
          %v3597 = vld [vmem:[%s10 + $0x38] sm:$0xff]
          %v3598 = vld [vmem:[%s10 + $0x40] sm:$0xff]
          %v3599 = vld [vmem:[%s10 + $0x48] sm:$0xff]
          %v3600 = vld [vmem:[%s10 + $0x50] sm:$0xff]
          %v3601 = vld [vmem:[%s10 + $0x58] sm:$0xff]
          %v3602 = vld [vmem:[%s10 + $0x60] sm:$0xff]
          %v3603 = vld [vmem:[%s10 + $0x68] sm:$0xff]
          %v3604 = vld [vmem:[%s10 + $0x70] sm:$0xff]
          %v3605 = vld [vmem:[%s10 + $0x78] sm:$0xff]
          %v3606 = vld [vmem:[%s10 + $0x80] sm:$0xff]
          %v3607 = vld [vmem:[%s10 + $0x88] sm:$0xff]
          %v3608 = vld [vmem:[%s10 + $0x90] sm:$0xff]
          %v3609 = vld [vmem:[%s10 + $0x98] sm:$0xff]
          %v3610 = vld [vmem:[%s10 + $0xa0] sm:$0xff]
          %v3611 = vld [vmem:[%s10 + $0xa8] sm:$0xff]
          %v3612 = vld [vmem:[%s10 + $0xb0] sm:$0xff]
          %v3613 = vld [vmem:[%s10 + $0xb8] sm:$0xff]
          %v3614 = vld [vmem:[%s10 + $0xc0] sm:$0xff]
          %v3615 = vld [vmem:[%s10 + $0xc8] sm:$0xff]
          %v3616 = vld [vmem:[%s10 + $0xd0] sm:$0xff]
          %v3617 = vld [vmem:[%s10 + $0xd8] sm:$0xff]
          %v3618 = vld [vmem:[%s10 + $0xe0] sm:$0xff]
          %v3619 = vld [vmem:[%s10 + $0xe8] sm:$0xff]
          %v3620 = vld [vmem:[%s10 + $0xf0] sm:$0xff]
          %v3621 = vld [vmem:[%s10 + $0xf8] sm:$0xff]
          %v3622 = vld [vmem:[%s10 + $0x100] sm:$0xff]
          %v3623 = vld [vmem:[%s10 + $0x108] sm:$0xff]
          %v3624 = vld [vmem:[%s10 + $0x110] sm:$0xff]
          %v3625 = vld [vmem:[%s10 + $0x118] sm:$0xff]
          %v3626 = vld [vmem:[%s10 + $0x120] sm:$0xff]
          %v3627 = vld [vmem:[%s10 + $0x128] sm:$0xff]
          %v3628 = vld [vmem:[%s10 + $0x130] sm:$0xff]
          %v3629 = vld [vmem:[%s10 + $0x138] sm:$0xff]
          %v3630 = vld [vmem:[%s10 + $0x140] sm:$0xff]
          %v3631 = vld [vmem:[%s10 + $0x148] sm:$0xff]
          %v3632 = vld [vmem:[%s10 + $0x150] sm:$0xff]
          %v3633 = vld [vmem:[%s10 + $0x158] sm:$0xff]
          %v3634 = vld [vmem:[%s10 + $0x160] sm:$0xff]
          %v3635 = vld [vmem:[%s10 + $0x168] sm:$0xff]
          %v3636 = vld [vmem:[%s10 + $0x170] sm:$0xff]
          %v3637 = vld [vmem:[%s10 + $0x178] sm:$0xff]
          %v3638 = vld [vmem:[%s10 + $0x180] sm:$0xff]
          %v3639 = vld [vmem:[%s10 + $0x188] sm:$0xff]
          %v3640 = vld [vmem:[%s10 + $0x190] sm:$0xff]
          %v3641 = vld [vmem:[%s10 + $0x198] sm:$0xff]
          %v3642 = vld [vmem:[%s10 + $0x1a0] sm:$0xff]
          %v3643 = vld [vmem:[%s10 + $0x1a8] sm:$0xff]
          %v3644 = vld [vmem:[%s10 + $0x1b0] sm:$0xff]
          %v3645 = vld [vmem:[%s10 + $0x1b8] sm:$0xff]
          %v3646 = vld [vmem:[%s10 + $0x1c0] sm:$0xff]
          %v3647 = vld [vmem:[%s10 + $0x1c8] sm:$0xff]
          %v3648 = vld [vmem:[%s10 + $0x1d0] sm:$0xff]
          %v3649 = vld [vmem:[%s10 + $0x1d8] sm:$0xff]
          %v3650 = vld [vmem:[%s10 + $0x1e0] sm:$0xff]
          %v3651 = vld [vmem:[%s10 + $0x1e8] sm:$0xff]
          %v3652 = vld [vmem:[%s10 + $0x1f0] sm:$0xff]
          %v3653 = vld [vmem:[%s10 + $0x1f8] sm:$0xff]
          %v3654 = vld [vmem:[%s11] sm:$0x1]
          %v3656 = vperm.slane %v3654, 0
          %3658 = vmatpush.msra.mxu0 %v3605
          %3659 = vmatpush.msra.mxu0 %v3604
          %3660 = vmatpush.msra.mxu0 %v3603
          %3661 = vmatpush.msra.mxu0 %v3602
          %3662 = vmatpush.msra.mxu0 %v3601
          %3663 = vmatpush.msra.mxu0 %v3600
          %3664 = vmatpush.msra.mxu0 %v3599
          %3665 = vmatpush.msra.mxu0 %v3598
          %3666 = vmatpush.msra.mxu0 %v3597
          %3667 = vmatpush.msra.mxu0 %v3596
          %3668 = vmatpush.msra.mxu0 %v3595
          %3669 = vmatpush.msra.mxu0 %v3594
          %3670 = vmatpush.msra.mxu0 %v3593
          %3671 = vmatpush.msra.mxu0 %v3592
          %3672 = vmatpush.msra.mxu0 %v3591
          %3673 = vmatpush.msra.mxu0 %v3590
          %3674 = vmatmul.f32.gmra.mxu0 %v3586
          %v3675 = vpop.f32.mrf.mxu0
          %v3676 = vadd.f32 %v3656, %v3675
          %3677 = vdwg.mxu0
          %3678 = vmatpush.msra.mxu0 %v3621
          %3679 = vmatpush.msra.mxu0 %v3620
          %3680 = vmatpush.msra.mxu0 %v3619
          %3681 = vmatpush.msra.mxu0 %v3618
          %3682 = vmatpush.msra.mxu0 %v3617
          %3683 = vmatpush.msra.mxu0 %v3616
          %3684 = vmatpush.msra.mxu0 %v3615
          %3685 = vmatpush.msra.mxu0 %v3614
          %3686 = vmatpush.msra.mxu0 %v3613
          %3687 = vmatpush.msra.mxu0 %v3612
          %3688 = vmatpush.msra.mxu0 %v3611
          %3689 = vmatpush.msra.mxu0 %v3610
          %3690 = vmatpush.msra.mxu0 %v3609
          %3691 = vmatpush.msra.mxu0 %v3608
          %3692 = vmatpush.msra.mxu0 %v3607
          %3693 = vmatpush.msra.mxu0 %v3606
          %3694 = vmatmul.f32.gmra.mxu0 %v3587
          %v3695 = vpop.f32.mrf.mxu0
          %v3696 = vadd.f32 %v3676, %v3695
          %3697 = vdwg.mxu0
          %3698 = vmatpush.msra.mxu0 %v3637
          %3699 = vmatpush.msra.mxu0 %v3636
          %3700 = vmatpush.msra.mxu0 %v3635
          %3701 = vmatpush.msra.mxu0 %v3634
          %3702 = vmatpush.msra.mxu0 %v3633
          %3703 = vmatpush.msra.mxu0 %v3632
          %3704 = vmatpush.msra.mxu0 %v3631
          %3705 = vmatpush.msra.mxu0 %v3630
          %3706 = vmatpush.msra.mxu0 %v3629
          %3707 = vmatpush.msra.mxu0 %v3628
          %3708 = vmatpush.msra.mxu0 %v3627
          %3709 = vmatpush.msra.mxu0 %v3626
          %3710 = vmatpush.msra.mxu0 %v3625
          %3711 = vmatpush.msra.mxu0 %v3624
          %3712 = vmatpush.msra.mxu0 %v3623
          %3713 = vmatpush.msra.mxu0 %v3622
          %3714 = vmatmul.f32.gmra.mxu0 %v3588
          %v3715 = vpop.f32.mrf.mxu0
          %v3716 = vadd.f32 %v3696, %v3715
          %3717 = vdwg.mxu0
          %3718 = vmatpush.msra.mxu0 %v3653
          %3719 = vmatpush.msra.mxu0 %v3652
          %3720 = vmatpush.msra.mxu0 %v3651
          %3721 = vmatpush.msra.mxu0 %v3650
          %3722 = vmatpush.msra.mxu0 %v3649
          %3723 = vmatpush.msra.mxu0 %v3648
          %3724 = vmatpush.msra.mxu0 %v3647
          %3725 = vmatpush.msra.mxu0 %v3646
          %3726 = vmatpush.msra.mxu0 %v3645
          %3727 = vmatpush.msra.mxu0 %v3644
          %3728 = vmatpush.msra.mxu0 %v3643
          %3729 = vmatpush.msra.mxu0 %v3642
          %3730 = vmatpush.msra.mxu0 %v3641
          %3731 = vmatpush.msra.mxu0 %v3640
          %3732 = vmatpush.msra.mxu0 %v3639
          %3733 = vmatpush.msra.mxu0 %v3638
          %3734 = vmatmul.f32.gmra.mxu0 %v3589
          %v3735 = vpop.f32.mrf.mxu0
          %v3736 = vadd.f32 %v3716, %v3735
          %3737 = vdwg.mxu0
          %v3738 = vmul.f32 %v3736, %v3736
          %vm3739 = vcmask 259072
          %v3740 = vsel %vm3739, %v3738, 0.0
          %3741 = vadd.xlane.f32.xlu0 %v3740
          %v3742 = vpop.xlane.xlu0 %3741
          %v3743 = vrsqrt.pop %v3742
          %v3744 = vmul.f32 %v3743, %v3742
          %v3745 = vmul.f32 %v3744, %v3743
          %v3746 = vmul.f32 0.5, %v3745
          %v3747 = vsub.f32 1.5, %v3746
          %v3748 = vmul.f32 %v3743, %v3747
          %vm3749 = vweird.f32 %v3742
          %vm3750 = vweird.f32 %v3743
          %vm3751 = vmor %vm3749, %vm3750
          %v3752 = vsel %vm3751, %v3743, %v3748
          %v3753 = vmul.f32 %v3736, %v3752
          %3754 = vst.msk [vmem:[#allocation3] sm:$0x3f] %vm3739, %v3753
        $region72: #{tpu_custom_call.1} parent=67 // pred_fallthru
          _
        // Predicated region
        $region73: #{tpu_custom_call.1} parent=67 // pred_check
          %p3755 = pneg %p294
        $region74: #{tpu_custom_call.1} parent=67 // pred_check_branch
          %3757 = sbr.rel (%p3755) target = $region76
        $region75: #{tpu_custom_call.1} parent=67 // pred_region
          %3759 = vsyncadd [#allocation4], 0
          %s3761 = sshll.u32 [#allocation3], 4
          %s3762 = int_to_ptr.vmem [resolvable:$true] %s3761
          %s3763 = sshll.u32 %s12, 4
          %s3764 = int_to_ptr.hbm [resolvable:$true] %s3763
          %3766 = dma.vmem_to_hbm [thread:$0]  %s3762, 128, %s3764, [#allocation4]
        $region76: #{tpu_custom_call.1} parent=67 // pred_fallthru
          _
        // Predicated region
        $region77: #{tpu_custom_call.1} parent=67 // pred_check
          %p3767 = pneg %p294
        $region78: #{tpu_custom_call.1} parent=67 // pred_check_branch
          %3769 = sbr.rel (%p3767) target = $region80
        $region79: #{tpu_custom_call.1} parent=67 // pred_region
          %3771 = dma.done [#allocation4], 128
        $region80: #{tpu_custom_call.1} parent=67 // pred_fallthru
          _
      $region68: #{tpu_custom_call.1} parent=5 // pred_fallthru
        _
      %p3772 = scmp.le.s32.totalorder 2, %s19
      // Predicated region
      $region81: #{tpu_custom_call.1} parent=5 // pred_check
        %p3773 = pneg %p3772
      $region82: #{tpu_custom_call.1} parent=5 // pred_check_branch
        %3775 = sbr.rel (%p3773) target = $region84
      $region83: #{tpu_custom_call.1} parent=5 // pred_region
        %s3776 = ssub.s32 %s19, 2
      $region84: #{tpu_custom_call.1} parent=5 // pred_fallthru
        _
    $region6: #{tpu_custom_call.1} parent=1 // loop_footer
      %s23 = sadd.s32 1, %s19
    $region7: #{tpu_custom_call.1} parent=1 // loop_footer_branch
      %18 = sbr.rel target = $region3
    $region8: #{tpu_custom_call.1} parent=1 // loop_exit
      _
    %3777 = vsyncpa [#allocation4], 1
    %s3778 = scalar_lea.sflag [#allocation4], 1
    %3779 = vsyncpa %s3778, 1

</llo_original>
